<compile_context>
chip_gen: v6e
topology: v6e:2x2x1
jax: 0.10.0
libtpu: 0.0.40
codegen_flags: <defaults>
</compile_context>

<pallas_src>
import functools

import jax
import jax.numpy as jnp
from jax import lax
from jax.experimental import pallas as pl
from jax.experimental.pallas import tpu as pltpu

LN_EPS = 1e-5  # torch.nn.LayerNorm default


# ---------------------------------------------------------------------------
# in-kernel helpers (pure jnp, traced inside the Pallas kernel) — f32 math
# ---------------------------------------------------------------------------
def _layernorm(x, w, b):
    mu = jnp.mean(x, axis=-1, keepdims=True)
    var = jnp.mean(jnp.square(x - mu), axis=-1, keepdims=True)
    return (x - mu) * lax.rsqrt(var + LN_EPS) * w + b


def _gelu_exact(x):
    # torch.nn.GELU() default == exact erf-based GELU
    return 0.5 * x * (1.0 + lax.erf(x * 0.7071067811865476))


# ---------------------------------------------------------------------------
# fused whole-ViT kernel: patch embedding (+cls/pos via per-row bias),
# `depth` pre-norm transformer layers, cls pooling, LayerNorm + linear head.
# One grid step == one image; everything stays in VMEM/vregs per step.
# ---------------------------------------------------------------------------
def _vit_kernel(x_ref, wp_ref, br_ref,
                ln1w_ref, ln1b_ref, wqkv_ref, wo_ref, bo_ref,
                ln2w_ref, ln2b_ref, w1_ref, b1_ref, w2_ref, b2_ref,
                hlnw_ref, hlnb_ref, hw_ref, hb_ref,
                o_ref, *, depth, heads, dim_head, n_real):
    n_pad = x_ref.shape[1]
    inner = heads * dim_head

    # patch-embedding matmul; cls token / patch bias / positional embedding
    # arrive pre-folded into the per-row additive term br_ref (rows >= n_real
    # are zero input rows -> stay finite through LN / attention).
    x = (jnp.dot(x_ref[0], wp_ref[...], preferred_element_type=jnp.float32)
         + br_ref[...])                                        # (n_pad, dim) f32

    # additive key mask for the zero-padded sequence tail
    col = lax.broadcasted_iota(jnp.int32, (n_pad, n_pad), 1)
    key_mask = jnp.where(col < n_real, 0.0, -1e30).astype(jnp.float32)

    for l in range(depth):                                     # static unroll
        # ---- pre-norm multi-head attention ----
        xn = _layernorm(x, ln1w_ref[l], ln1b_ref[l]).astype(jnp.bfloat16)
        # fused qkv projection: N = 3*heads*dim_head = 384 MXU columns
        # (attention scale already folded into the q columns of the weight)
        qkv = jnp.dot(xn, wqkv_ref[l],
                      preferred_element_type=jnp.float32).astype(jnp.bfloat16)
        head_outs = []
        for h in range(heads):                                 # static unroll
            q = qkv[:, h * dim_head:(h + 1) * dim_head]
            k = qkv[:, inner + h * dim_head: inner + (h + 1) * dim_head]
            v = qkv[:, 2 * inner + h * dim_head: 2 * inner + (h + 1) * dim_head]
            # scores: contract last dims of q and k (no explicit k.T transpose)
            dots = lax.dot_general(q, k, (((1,), (1,)), ((), ())),
                                   preferred_element_type=jnp.float32)
            dots = dots + key_mask
            dots = dots - jnp.max(dots, axis=-1, keepdims=True)
            e = jnp.exp(dots)
            inv = pl.reciprocal(jnp.sum(e, axis=-1, keepdims=True), approx=True)
            head_outs.append(jnp.dot((e * inv).astype(jnp.bfloat16), v,
                                     preferred_element_type=jnp.float32))
        # lane-concat head outputs -> single (inner, dim) output projection
        attn_out = jnp.concatenate(head_outs, axis=-1).astype(jnp.bfloat16)
        x = (jnp.dot(attn_out, wo_ref[l], preferred_element_type=jnp.float32)
             + bo_ref[l] + x)                                  # to_out bias + residual

        # ---- pre-norm feed-forward ----
        xn2 = _layernorm(x, ln2w_ref[l], ln2b_ref[l]).astype(jnp.bfloat16)
        hdn = (jnp.dot(xn2, w1_ref[l], preferred_element_type=jnp.float32)
               + b1_ref[l])
        hdn = _gelu_exact(hdn).astype(jnp.bfloat16)
        x = (jnp.dot(hdn, w2_ref[l], preferred_element_type=jnp.float32)
             + b2_ref[l] + x)                                  # residual

    # ---- cls pool + mlp head (classes padded to 128 lanes) ----
    cls = x[0:1, :]
    cn = _layernorm(cls, hlnw_ref[...], hlnb_ref[...]).astype(jnp.bfloat16)
    o_ref[0] = (jnp.dot(cn, hw_ref[...], preferred_element_type=jnp.float32)
                + hb_ref[...])


# ---------------------------------------------------------------------------
# parameter init (deterministic, synthetic)
# ---------------------------------------------------------------------------
def init_params(key, *, image_size, patch_size, num_classes, dim, depth, heads,
                dim_head, mlp_dim, channels):
    p = patch_size
    num_patches = (image_size // p) * (image_size // p)
    patch_dim = channels * p * p
    inner = heads * dim_head
    nc_pad = max(128, -(-num_classes // 128) * 128)

    keys = iter(jax.random.split(key, 16))

    def nrm(shape, std=0.02):
        return std * jax.random.normal(next(keys), shape, jnp.float32)

    # fused qkv weight: columns = [q | k | v], head-major within each block;
    # attention scale folded into the q columns at init time.
    w_qkv = nrm((depth, dim, 3 * inner))
    w_qkv = w_qkv.at[:, :, :inner].multiply(dim_head ** -0.5)

    # head weight zero-padded to 128 lanes (real classes sliced outside)
    head_w = jnp.zeros((dim, nc_pad), jnp.float32)
    head_w = head_w.at[:, :num_classes].set(nrm((dim, num_classes)))

    return {
        "patch_w": nrm((patch_dim, dim)).astype(jnp.bfloat16),
        "patch_b": jnp.zeros((1, dim), jnp.float32),
        "pos": jax.random.normal(next(keys), (num_patches, dim), jnp.float32),
        "cls": jax.random.normal(next(keys), (dim,), jnp.float32),
        "ln1_w": jnp.ones((depth, 1, dim), jnp.float32),
        "ln1_b": jnp.zeros((depth, 1, dim), jnp.float32),
        "w_qkv": w_qkv.astype(jnp.bfloat16),
        "wo": nrm((depth, inner, dim)).astype(jnp.bfloat16),
        "bo": jnp.zeros((depth, 1, dim), jnp.float32),
        "ln2_w": jnp.ones((depth, 1, dim), jnp.float32),
        "ln2_b": jnp.zeros((depth, 1, dim), jnp.float32),
        "w1": nrm((depth, dim, mlp_dim)).astype(jnp.bfloat16),
        "b1": jnp.zeros((depth, 1, mlp_dim), jnp.float32),
        "w2": nrm((depth, mlp_dim, dim)).astype(jnp.bfloat16),
        "b2": jnp.zeros((depth, 1, dim), jnp.float32),
        "head_ln_w": jnp.ones((1, dim), jnp.float32),
        "head_ln_b": jnp.zeros((1, dim), jnp.float32),
        "head_w": head_w.astype(jnp.bfloat16),
        "head_b": jnp.zeros((1, nc_pad), jnp.float32),
    }


# ---------------------------------------------------------------------------
# full forward
# ---------------------------------------------------------------------------
def vit_forward(img, params, cfg):
    B, C, H, W = img.shape
    p = cfg["patch_size"]
    dim, depth = cfg["dim"], cfg["depth"]
    heads, dim_head = cfg["heads"], cfg["dim_head"]
    mlp_dim = cfg["mlp_dim"]
    num_classes = cfg["num_classes"]
    h, w = H // p, W // p
    n = h * w
    n_real = n + 1                        # patches + cls token
    n_pad = -(-n_real // 32) * 32         # sublane-aligned sequence length
    inner = heads * dim_head
    patch_dim = C * p * p
    nc_pad = params["head_w"].shape[1]

    # rearrange 'b c (h p1) (w p2) -> b (h w) (p1 p2 c)' (pure layout glue)
    x = img.reshape(B, C, h, p, w, p)
    x = jnp.transpose(x, (0, 2, 4, 3, 5, 1)).reshape(B, n, patch_dim)
    # row 0 reserved for the cls token; tail zero-padded to n_pad rows
    x_in = jnp.pad(x, ((0, 0), (1, n_pad - n_real), (0, 0))).astype(jnp.bfloat16)

    # per-row additive term: row0 = cls token, rows 1..n = patch bias + pos emb
    bias_rows = jnp.zeros((n_pad, dim), jnp.float32)
    bias_rows = bias_rows.at[0].set(params["cls"])
    bias_rows = bias_rows.at[1:n_real].set(params["patch_b"] + params["pos"])

    # TODO(synk): PatchDropout and nn.Dropout are training-only stochastic ops;
    # the eval-mode forward keeps all patches and applies no dropout.

    def cspec(shape):
        zeros = (0,) * len(shape)
        return pl.BlockSpec(shape, lambda bi, _z=zeros: _z)

    kernel = functools.partial(_vit_kernel, depth=depth, heads=heads,
                               dim_head=dim_head, n_real=n_real)

    out = pl.pallas_call(
        kernel,
        out_shape=jax.ShapeDtypeStruct((B, 1, nc_pad), jnp.float32),
        grid=(B,),
        in_specs=[
            pl.BlockSpec((1, n_pad, patch_dim), lambda bi: (bi, 0, 0)),
            cspec((patch_dim, dim)),                 # patch_w (bf16)
            cspec((n_pad, dim)),                     # per-row bias (cls/pos)
            cspec((depth, 1, dim)), cspec((depth, 1, dim)),      # attn LN
            cspec((depth, dim, 3 * inner)),          # fused qkv (bf16)
            cspec((depth, inner, dim)),              # wo (bf16)
            cspec((depth, 1, dim)),                  # bo
            cspec((depth, 1, dim)), cspec((depth, 1, dim)),      # ff LN
            cspec((depth, dim, mlp_dim)), cspec((depth, 1, mlp_dim)),
            cspec((depth, mlp_dim, dim)), cspec((depth, 1, dim)),
            cspec((1, dim)), cspec((1, dim)),        # head LN
            cspec((dim, nc_pad)), cspec((1, nc_pad)),
        ],
        out_specs=pl.BlockSpec((1, 1, nc_pad), lambda bi: (bi, 0, 0)),
        compiler_params=pltpu.CompilerParams(dimension_semantics=("parallel",)),
    )(x_in, params["patch_w"], bias_rows,
      params["ln1_w"], params["ln1_b"], params["w_qkv"], params["wo"],
      params["bo"], params["ln2_w"], params["ln2_b"], params["w1"],
      params["b1"], params["w2"], params["b2"],
      params["head_ln_w"], params["head_ln_b"],
      params["head_w"], params["head_b"])

    return out.reshape(B, nc_pad)[:, :num_classes]


if __name__ == "__main__":
    cfg = dict(image_size=32, patch_size=8, num_classes=10, dim=128, depth=2,
               heads=4, dim_head=32, mlp_dim=256, channels=3)

    key = jax.random.PRNGKey(0)
    k_img, k_par = jax.random.split(key)
    img = jax.random.normal(
        k_img, (2, cfg["channels"], cfg["image_size"], cfg["image_size"]),
        jnp.float32)
    params = init_params(k_par, **cfg)

    fwd = jax.jit(functools.partial(vit_forward, cfg=cfg))
    out = jax.block_until_ready(fwd(img, params))
    assert out.shape == (2, cfg["num_classes"])
    assert bool(jnp.all(jnp.isfinite(out)))
    print("KERNEL_OK")
</pallas_src>

<mosaic_0001>
module attributes {stable_mosaic.version = 11 : i64} {
  func.func @_vit_kernel(%arg0: i32, %arg1: memref<1x32x192xbf16, #tpu.memory_space<vmem>>, %arg2: memref<192x128xbf16, #tpu.memory_space<vmem>>, %arg3: memref<32x128xf32, #tpu.memory_space<vmem>>, %arg4: memref<2x1x128xf32, #tpu.memory_space<vmem>>, %arg5: memref<2x1x128xf32, #tpu.memory_space<vmem>>, %arg6: memref<2x128x384xbf16, #tpu.memory_space<vmem>>, %arg7: memref<2x128x128xbf16, #tpu.memory_space<vmem>>, %arg8: memref<2x1x128xf32, #tpu.memory_space<vmem>>, %arg9: memref<2x1x128xf32, #tpu.memory_space<vmem>>, %arg10: memref<2x1x128xf32, #tpu.memory_space<vmem>>, %arg11: memref<2x128x256xbf16, #tpu.memory_space<vmem>>, %arg12: memref<2x1x256xf32, #tpu.memory_space<vmem>>, %arg13: memref<2x256x128xbf16, #tpu.memory_space<vmem>>, %arg14: memref<2x1x128xf32, #tpu.memory_space<vmem>>, %arg15: memref<1x128xf32, #tpu.memory_space<vmem>>, %arg16: memref<1x128xf32, #tpu.memory_space<vmem>>, %arg17: memref<128x128xbf16, #tpu.memory_space<vmem>>, %arg18: memref<1x128xf32, #tpu.memory_space<vmem>>, %arg19: memref<1x1x128xf32, #tpu.memory_space<vmem>>) attributes {dimension_semantics = [#tpu.dimension_semantics<parallel>], iteration_bounds = array<i64: 2>, scalar_prefetch = 0 : i64, scratch_operands = 0 : i64, tpu.core_type = #tpu.core_type<tc>, window_params = [{transform_indices = @transform_0, window_bounds = array<i64: 1, 32, 192>}, {pipeline_mode = #tpu.pipeline_mode<synchronous>, transform_indices = @transform_1, window_bounds = array<i64: 192, 128>}, {pipeline_mode = #tpu.pipeline_mode<synchronous>, transform_indices = @transform_2, window_bounds = array<i64: 32, 128>}, {pipeline_mode = #tpu.pipeline_mode<synchronous>, transform_indices = @transform_3, window_bounds = array<i64: 2, 1, 128>}, {pipeline_mode = #tpu.pipeline_mode<synchronous>, transform_indices = @transform_4, window_bounds = array<i64: 2, 1, 128>}, {pipeline_mode = #tpu.pipeline_mode<synchronous>, transform_indices = @transform_5, window_bounds = array<i64: 2, 128, 384>}, {pipeline_mode = #tpu.pipeline_mode<synchronous>, transform_indices = @transform_6, window_bounds = array<i64: 2, 128, 128>}, {pipeline_mode = #tpu.pipeline_mode<synchronous>, transform_indices = @transform_7, window_bounds = array<i64: 2, 1, 128>}, {pipeline_mode = #tpu.pipeline_mode<synchronous>, transform_indices = @transform_8, window_bounds = array<i64: 2, 1, 128>}, {pipeline_mode = #tpu.pipeline_mode<synchronous>, transform_indices = @transform_9, window_bounds = array<i64: 2, 1, 128>}, {pipeline_mode = #tpu.pipeline_mode<synchronous>, transform_indices = @transform_10, window_bounds = array<i64: 2, 128, 256>}, {pipeline_mode = #tpu.pipeline_mode<synchronous>, transform_indices = @transform_11, window_bounds = array<i64: 2, 1, 256>}, {pipeline_mode = #tpu.pipeline_mode<synchronous>, transform_indices = @transform_12, window_bounds = array<i64: 2, 256, 128>}, {pipeline_mode = #tpu.pipeline_mode<synchronous>, transform_indices = @transform_13, window_bounds = array<i64: 2, 1, 128>}, {pipeline_mode = #tpu.pipeline_mode<synchronous>, transform_indices = @transform_14, window_bounds = array<i64: 1, 128>}, {pipeline_mode = #tpu.pipeline_mode<synchronous>, transform_indices = @transform_15, window_bounds = array<i64: 1, 128>}, {pipeline_mode = #tpu.pipeline_mode<synchronous>, transform_indices = @transform_16, window_bounds = array<i64: 128, 128>}, {pipeline_mode = #tpu.pipeline_mode<synchronous>, transform_indices = @transform_17, window_bounds = array<i64: 1, 128>}, {transform_indices = @transform_18, window_bounds = array<i64: 1, 1, 128>}]} {
    %c0 = arith.constant 0 : index
    %c0_0 = arith.constant 0 : index
    %c0_1 = arith.constant 0 : index
    %0 = vector.load %arg1[%c0, %c0_0, %c0_1] : memref<1x32x192xbf16, #tpu.memory_space<vmem>>, vector<1x32x192xbf16>
    %1 = vector.shape_cast %0 : vector<1x32x192xbf16> to vector<32x192xbf16>
    %c0_2 = arith.constant 0 : index
    %c0_3 = arith.constant 0 : index
    %2 = vector.load %arg2[%c0_2, %c0_3] : memref<192x128xbf16, #tpu.memory_space<vmem>>, vector<192x128xbf16>
    %cst = arith.constant dense<0.000000e+00> : vector<32x128xf32>
    %3 = tpu.matmul %1, %2, %cst {dimension_numbers = #tpu.dot_dimension_numbers<[1], [0], [0], [1], [0, 0, 1, 1], [], []>} : vector<32x192xbf16>, vector<192x128xbf16>, vector<32x128xf32> -> vector<32x128xf32>
    %c0_4 = arith.constant 0 : index
    %c0_5 = arith.constant 0 : index
    %4 = vector.load %arg3[%c0_4, %c0_5] : memref<32x128xf32, #tpu.memory_space<vmem>>, vector<32x128xf32>
    %5 = arith.addf %3, %4 : vector<32x128xf32>
    %6 = tpu.iota {dimensions = array<i32: 1>} : vector<32x32xi32>
    %c17_i32 = arith.constant 17 : i32
    %7 = vector.broadcast %c17_i32 : i32 to vector<32x32xi32>
    %8 = arith.cmpi slt, %6, %7 : vector<32x32xi32>
    %cst_6 = arith.constant 0.000000e+00 : f32
    %cst_7 = arith.constant -1.000000e+30 : f32
    %9 = vector.broadcast %cst_6 : f32 to vector<32x32xf32>
    %10 = vector.broadcast %cst_7 : f32 to vector<32x32xf32>
    %11 = arith.select %8, %9, %10 : vector<32x32xi1>, vector<32x32xf32>
    %c0_8 = arith.constant 0 : index
    %c0_9 = arith.constant 0 : index
    %c0_10 = arith.constant 0 : index
    %12 = vector.load %arg4[%c0_8, %c0_9, %c0_10] : memref<2x1x128xf32, #tpu.memory_space<vmem>>, vector<1x1x128xf32>
    %13 = vector.shape_cast %12 : vector<1x1x128xf32> to vector<1x128xf32>
    %c0_11 = arith.constant 0 : index
    %c0_12 = arith.constant 0 : index
    %c0_13 = arith.constant 0 : index
    %14 = vector.load %arg5[%c0_11, %c0_12, %c0_13] : memref<2x1x128xf32, #tpu.memory_space<vmem>>, vector<1x1x128xf32>
    %15 = vector.shape_cast %14 : vector<1x1x128xf32> to vector<1x128xf32>
    %cst_14 = arith.constant dense<0.000000e+00> : vector<32xf32>
    %16 = vector.multi_reduction <add>, %5, %cst_14 [1] : vector<32x128xf32> to vector<32xf32>
    %17 = vector.shape_cast %16 : vector<32xf32> to vector<32x1xf32>
    %cst_15 = arith.constant 1.280000e+02 : f32
    %18 = vector.broadcast %cst_15 : f32 to vector<32x1xf32>
    %19 = arith.divf %17, %18 : vector<32x1xf32>
    %20 = vector.broadcast %19 : vector<32x1xf32> to vector<32x128xf32>
    %21 = arith.subf %5, %20 : vector<32x128xf32>
    %22 = arith.mulf %21, %21 : vector<32x128xf32>
    %cst_16 = arith.constant dense<0.000000e+00> : vector<32xf32>
    %23 = vector.multi_reduction <add>, %22, %cst_16 [1] : vector<32x128xf32> to vector<32xf32>
    %24 = vector.shape_cast %23 : vector<32xf32> to vector<32x1xf32>
    %cst_17 = arith.constant 1.280000e+02 : f32
    %25 = vector.broadcast %cst_17 : f32 to vector<32x1xf32>
    %26 = arith.divf %24, %25 : vector<32x1xf32>
    %27 = vector.broadcast %19 : vector<32x1xf32> to vector<32x128xf32>
    %28 = arith.subf %5, %27 : vector<32x128xf32>
    %cst_18 = arith.constant 9.99999974E-6 : f32
    %29 = vector.broadcast %cst_18 : f32 to vector<32x1xf32>
    %30 = arith.addf %26, %29 : vector<32x1xf32>
    %31 = math.rsqrt %30 : vector<32x1xf32>
    %32 = vector.broadcast %31 : vector<32x1xf32> to vector<32x128xf32>
    %33 = arith.mulf %28, %32 : vector<32x128xf32>
    %34 = vector.broadcast %13 : vector<1x128xf32> to vector<32x128xf32>
    %35 = arith.mulf %33, %34 : vector<32x128xf32>
    %36 = vector.broadcast %15 : vector<1x128xf32> to vector<32x128xf32>
    %37 = arith.addf %35, %36 : vector<32x128xf32>
    %38 = arith.truncf %37 : vector<32x128xf32> to vector<32x128xbf16>
    %c0_19 = arith.constant 0 : index
    %c0_20 = arith.constant 0 : index
    %c0_21 = arith.constant 0 : index
    %39 = vector.load %arg6[%c0_19, %c0_20, %c0_21] : memref<2x128x384xbf16, #tpu.memory_space<vmem>>, vector<1x128x384xbf16>
    %40 = vector.shape_cast %39 : vector<1x128x384xbf16> to vector<128x384xbf16>
    %cst_22 = arith.constant dense<0.000000e+00> : vector<32x384xf32>
    %41 = tpu.matmul %38, %40, %cst_22 {dimension_numbers = #tpu.dot_dimension_numbers<[1], [0], [0], [1], [0, 0, 1, 1], [], []>} : vector<32x128xbf16>, vector<128x384xbf16>, vector<32x384xf32> -> vector<32x384xf32>
    %42 = arith.truncf %41 : vector<32x384xf32> to vector<32x384xbf16>
    %43 = vector.extract_strided_slice %42 {offsets = [0, 0], sizes = [32, 32], strides = [1, 1]} : vector<32x384xbf16> to vector<32x32xbf16>
    %44 = vector.extract_strided_slice %42 {offsets = [0, 128], sizes = [32, 32], strides = [1, 1]} : vector<32x384xbf16> to vector<32x32xbf16>
    %45 = vector.extract_strided_slice %42 {offsets = [0, 256], sizes = [32, 32], strides = [1, 1]} : vector<32x384xbf16> to vector<32x32xbf16>
    %cst_23 = arith.constant dense<0.000000e+00> : vector<32x32xf32>
    %46 = tpu.matmul %43, %44, %cst_23 {dimension_numbers = #tpu.dot_dimension_numbers<[1], [1], [0], [0], [0, 0, 1, 0], [], []>} : vector<32x32xbf16>, vector<32x32xbf16>, vector<32x32xf32> -> vector<32x32xf32>
    %47 = arith.addf %46, %11 : vector<32x32xf32>
    %cst_24 = arith.constant dense<0xFF800000> : vector<32xf32>
    %48 = vector.multi_reduction <maximumf>, %47, %cst_24 [1] : vector<32x32xf32> to vector<32xf32>
    %49 = vector.shape_cast %48 : vector<32xf32> to vector<32x1xf32>
    %50 = vector.broadcast %49 : vector<32x1xf32> to vector<32x32xf32>
    %51 = arith.subf %47, %50 : vector<32x32xf32>
    %52 = math.exp %51 : vector<32x32xf32>
    %cst_25 = arith.constant dense<0.000000e+00> : vector<32xf32>
    %53 = vector.multi_reduction <add>, %52, %cst_25 [1] : vector<32x32xf32> to vector<32xf32>
    %54 = vector.shape_cast %53 : vector<32xf32> to vector<32x1xf32>
    %55 = tpu.reciprocal %54 {approx = true} : vector<32x1xf32> -> vector<32x1xf32>
    %56 = vector.broadcast %55 : vector<32x1xf32> to vector<32x32xf32>
    %57 = arith.mulf %52, %56 : vector<32x32xf32>
    %58 = arith.truncf %57 : vector<32x32xf32> to vector<32x32xbf16>
    %cst_26 = arith.constant dense<0.000000e+00> : vector<32x32xf32>
    %59 = tpu.matmul %58, %45, %cst_26 {dimension_numbers = #tpu.dot_dimension_numbers<[1], [0], [0], [1], [0, 0, 1, 1], [], []>} : vector<32x32xbf16>, vector<32x32xbf16>, vector<32x32xf32> -> vector<32x32xf32>
    %60 = vector.extract_strided_slice %42 {offsets = [0, 32], sizes = [32, 32], strides = [1, 1]} : vector<32x384xbf16> to vector<32x32xbf16>
    %61 = vector.extract_strided_slice %42 {offsets = [0, 160], sizes = [32, 32], strides = [1, 1]} : vector<32x384xbf16> to vector<32x32xbf16>
    %62 = vector.extract_strided_slice %42 {offsets = [0, 288], sizes = [32, 32], strides = [1, 1]} : vector<32x384xbf16> to vector<32x32xbf16>
    %cst_27 = arith.constant dense<0.000000e+00> : vector<32x32xf32>
    %63 = tpu.matmul %60, %61, %cst_27 {dimension_numbers = #tpu.dot_dimension_numbers<[1], [1], [0], [0], [0, 0, 1, 0], [], []>} : vector<32x32xbf16>, vector<32x32xbf16>, vector<32x32xf32> -> vector<32x32xf32>
    %64 = arith.addf %63, %11 : vector<32x32xf32>
    %cst_28 = arith.constant dense<0xFF800000> : vector<32xf32>
    %65 = vector.multi_reduction <maximumf>, %64, %cst_28 [1] : vector<32x32xf32> to vector<32xf32>
    %66 = vector.shape_cast %65 : vector<32xf32> to vector<32x1xf32>
    %67 = vector.broadcast %66 : vector<32x1xf32> to vector<32x32xf32>
    %68 = arith.subf %64, %67 : vector<32x32xf32>
    %69 = math.exp %68 : vector<32x32xf32>
    %cst_29 = arith.constant dense<0.000000e+00> : vector<32xf32>
    %70 = vector.multi_reduction <add>, %69, %cst_29 [1] : vector<32x32xf32> to vector<32xf32>
    %71 = vector.shape_cast %70 : vector<32xf32> to vector<32x1xf32>
    %72 = tpu.reciprocal %71 {approx = true} : vector<32x1xf32> -> vector<32x1xf32>
    %73 = vector.broadcast %72 : vector<32x1xf32> to vector<32x32xf32>
    %74 = arith.mulf %69, %73 : vector<32x32xf32>
    %75 = arith.truncf %74 : vector<32x32xf32> to vector<32x32xbf16>
    %cst_30 = arith.constant dense<0.000000e+00> : vector<32x32xf32>
    %76 = tpu.matmul %75, %62, %cst_30 {dimension_numbers = #tpu.dot_dimension_numbers<[1], [0], [0], [1], [0, 0, 1, 1], [], []>} : vector<32x32xbf16>, vector<32x32xbf16>, vector<32x32xf32> -> vector<32x32xf32>
    %77 = vector.extract_strided_slice %42 {offsets = [0, 64], sizes = [32, 32], strides = [1, 1]} : vector<32x384xbf16> to vector<32x32xbf16>
    %78 = vector.extract_strided_slice %42 {offsets = [0, 192], sizes = [32, 32], strides = [1, 1]} : vector<32x384xbf16> to vector<32x32xbf16>
    %79 = vector.extract_strided_slice %42 {offsets = [0, 320], sizes = [32, 32], strides = [1, 1]} : vector<32x384xbf16> to vector<32x32xbf16>
    %cst_31 = arith.constant dense<0.000000e+00> : vector<32x32xf32>
    %80 = tpu.matmul %77, %78, %cst_31 {dimension_numbers = #tpu.dot_dimension_numbers<[1], [1], [0], [0], [0, 0, 1, 0], [], []>} : vector<32x32xbf16>, vector<32x32xbf16>, vector<32x32xf32> -> vector<32x32xf32>
    %81 = arith.addf %80, %11 : vector<32x32xf32>
    %cst_32 = arith.constant dense<0xFF800000> : vector<32xf32>
    %82 = vector.multi_reduction <maximumf>, %81, %cst_32 [1] : vector<32x32xf32> to vector<32xf32>
    %83 = vector.shape_cast %82 : vector<32xf32> to vector<32x1xf32>
    %84 = vector.broadcast %83 : vector<32x1xf32> to vector<32x32xf32>
    %85 = arith.subf %81, %84 : vector<32x32xf32>
    %86 = math.exp %85 : vector<32x32xf32>
    %cst_33 = arith.constant dense<0.000000e+00> : vector<32xf32>
    %87 = vector.multi_reduction <add>, %86, %cst_33 [1] : vector<32x32xf32> to vector<32xf32>
    %88 = vector.shape_cast %87 : vector<32xf32> to vector<32x1xf32>
    %89 = tpu.reciprocal %88 {approx = true} : vector<32x1xf32> -> vector<32x1xf32>
    %90 = vector.broadcast %89 : vector<32x1xf32> to vector<32x32xf32>
    %91 = arith.mulf %86, %90 : vector<32x32xf32>
    %92 = arith.truncf %91 : vector<32x32xf32> to vector<32x32xbf16>
    %cst_34 = arith.constant dense<0.000000e+00> : vector<32x32xf32>
    %93 = tpu.matmul %92, %79, %cst_34 {dimension_numbers = #tpu.dot_dimension_numbers<[1], [0], [0], [1], [0, 0, 1, 1], [], []>} : vector<32x32xbf16>, vector<32x32xbf16>, vector<32x32xf32> -> vector<32x32xf32>
    %94 = vector.extract_strided_slice %42 {offsets = [0, 96], sizes = [32, 32], strides = [1, 1]} : vector<32x384xbf16> to vector<32x32xbf16>
    %95 = vector.extract_strided_slice %42 {offsets = [0, 224], sizes = [32, 32], strides = [1, 1]} : vector<32x384xbf16> to vector<32x32xbf16>
    %96 = vector.extract_strided_slice %42 {offsets = [0, 352], sizes = [32, 32], strides = [1, 1]} : vector<32x384xbf16> to vector<32x32xbf16>
    %cst_35 = arith.constant dense<0.000000e+00> : vector<32x32xf32>
    %97 = tpu.matmul %94, %95, %cst_35 {dimension_numbers = #tpu.dot_dimension_numbers<[1], [1], [0], [0], [0, 0, 1, 0], [], []>} : vector<32x32xbf16>, vector<32x32xbf16>, vector<32x32xf32> -> vector<32x32xf32>
    %98 = arith.addf %97, %11 : vector<32x32xf32>
    %cst_36 = arith.constant dense<0xFF800000> : vector<32xf32>
    %99 = vector.multi_reduction <maximumf>, %98, %cst_36 [1] : vector<32x32xf32> to vector<32xf32>
    %100 = vector.shape_cast %99 : vector<32xf32> to vector<32x1xf32>
    %101 = vector.broadcast %100 : vector<32x1xf32> to vector<32x32xf32>
    %102 = arith.subf %98, %101 : vector<32x32xf32>
    %103 = math.exp %102 : vector<32x32xf32>
    %cst_37 = arith.constant dense<0.000000e+00> : vector<32xf32>
    %104 = vector.multi_reduction <add>, %103, %cst_37 [1] : vector<32x32xf32> to vector<32xf32>
    %105 = vector.shape_cast %104 : vector<32xf32> to vector<32x1xf32>
    %106 = tpu.reciprocal %105 {approx = true} : vector<32x1xf32> -> vector<32x1xf32>
    %107 = vector.broadcast %106 : vector<32x1xf32> to vector<32x32xf32>
    %108 = arith.mulf %103, %107 : vector<32x32xf32>
    %109 = arith.truncf %108 : vector<32x32xf32> to vector<32x32xbf16>
    %cst_38 = arith.constant dense<0.000000e+00> : vector<32x32xf32>
    %110 = tpu.matmul %109, %96, %cst_38 {dimension_numbers = #tpu.dot_dimension_numbers<[1], [0], [0], [1], [0, 0, 1, 1], [], []>} : vector<32x32xbf16>, vector<32x32xbf16>, vector<32x32xf32> -> vector<32x32xf32>
    %111 = tpu.concatenate %59, %76, %93, %110 in 1 : vector<32x32xf32>, vector<32x32xf32>, vector<32x32xf32>, vector<32x32xf32> -> vector<32x128xf32>
    %112 = arith.truncf %111 : vector<32x128xf32> to vector<32x128xbf16>
    %c0_39 = arith.constant 0 : index
    %c0_40 = arith.constant 0 : index
    %c0_41 = arith.constant 0 : index
    %113 = vector.load %arg7[%c0_39, %c0_40, %c0_41] : memref<2x128x128xbf16, #tpu.memory_space<vmem>>, vector<1x128x128xbf16>
    %114 = vector.shape_cast %113 : vector<1x128x128xbf16> to vector<128x128xbf16>
    %cst_42 = arith.constant dense<0.000000e+00> : vector<32x128xf32>
    %115 = tpu.matmul %112, %114, %cst_42 {dimension_numbers = #tpu.dot_dimension_numbers<[1], [0], [0], [1], [0, 0, 1, 1], [], []>} : vector<32x128xbf16>, vector<128x128xbf16>, vector<32x128xf32> -> vector<32x128xf32>
    %c0_43 = arith.constant 0 : index
    %c0_44 = arith.constant 0 : index
    %c0_45 = arith.constant 0 : index
    %116 = vector.load %arg8[%c0_43, %c0_44, %c0_45] : memref<2x1x128xf32, #tpu.memory_space<vmem>>, vector<1x1x128xf32>
    %117 = vector.shape_cast %116 : vector<1x1x128xf32> to vector<1x128xf32>
    %118 = vector.broadcast %117 : vector<1x128xf32> to vector<32x128xf32>
    %119 = arith.addf %115, %118 : vector<32x128xf32>
    %120 = arith.addf %119, %5 : vector<32x128xf32>
    %c0_46 = arith.constant 0 : index
    %c0_47 = arith.constant 0 : index
    %c0_48 = arith.constant 0 : index
    %121 = vector.load %arg9[%c0_46, %c0_47, %c0_48] : memref<2x1x128xf32, #tpu.memory_space<vmem>>, vector<1x1x128xf32>
    %122 = vector.shape_cast %121 : vector<1x1x128xf32> to vector<1x128xf32>
    %c0_49 = arith.constant 0 : index
    %c0_50 = arith.constant 0 : index
    %c0_51 = arith.constant 0 : index
    %123 = vector.load %arg10[%c0_49, %c0_50, %c0_51] : memref<2x1x128xf32, #tpu.memory_space<vmem>>, vector<1x1x128xf32>
    %124 = vector.shape_cast %123 : vector<1x1x128xf32> to vector<1x128xf32>
    %cst_52 = arith.constant dense<0.000000e+00> : vector<32xf32>
    %125 = vector.multi_reduction <add>, %120, %cst_52 [1] : vector<32x128xf32> to vector<32xf32>
    %126 = vector.shape_cast %125 : vector<32xf32> to vector<32x1xf32>
    %cst_53 = arith.constant 1.280000e+02 : f32
    %127 = vector.broadcast %cst_53 : f32 to vector<32x1xf32>
    %128 = arith.divf %126, %127 : vector<32x1xf32>
    %129 = vector.broadcast %128 : vector<32x1xf32> to vector<32x128xf32>
    %130 = arith.subf %120, %129 : vector<32x128xf32>
    %131 = arith.mulf %130, %130 : vector<32x128xf32>
    %cst_54 = arith.constant dense<0.000000e+00> : vector<32xf32>
    %132 = vector.multi_reduction <add>, %131, %cst_54 [1] : vector<32x128xf32> to vector<32xf32>
    %133 = vector.shape_cast %132 : vector<32xf32> to vector<32x1xf32>
    %cst_55 = arith.constant 1.280000e+02 : f32
    %134 = vector.broadcast %cst_55 : f32 to vector<32x1xf32>
    %135 = arith.divf %133, %134 : vector<32x1xf32>
    %136 = vector.broadcast %128 : vector<32x1xf32> to vector<32x128xf32>
    %137 = arith.subf %120, %136 : vector<32x128xf32>
    %cst_56 = arith.constant 9.99999974E-6 : f32
    %138 = vector.broadcast %cst_56 : f32 to vector<32x1xf32>
    %139 = arith.addf %135, %138 : vector<32x1xf32>
    %140 = math.rsqrt %139 : vector<32x1xf32>
    %141 = vector.broadcast %140 : vector<32x1xf32> to vector<32x128xf32>
    %142 = arith.mulf %137, %141 : vector<32x128xf32>
    %143 = vector.broadcast %122 : vector<1x128xf32> to vector<32x128xf32>
    %144 = arith.mulf %142, %143 : vector<32x128xf32>
    %145 = vector.broadcast %124 : vector<1x128xf32> to vector<32x128xf32>
    %146 = arith.addf %144, %145 : vector<32x128xf32>
    %147 = arith.truncf %146 : vector<32x128xf32> to vector<32x128xbf16>
    %c0_57 = arith.constant 0 : index
    %c0_58 = arith.constant 0 : index
    %c0_59 = arith.constant 0 : index
    %148 = vector.load %arg11[%c0_57, %c0_58, %c0_59] : memref<2x128x256xbf16, #tpu.memory_space<vmem>>, vector<1x128x256xbf16>
    %149 = vector.shape_cast %148 : vector<1x128x256xbf16> to vector<128x256xbf16>
    %cst_60 = arith.constant dense<0.000000e+00> : vector<32x256xf32>
    %150 = tpu.matmul %147, %149, %cst_60 {dimension_numbers = #tpu.dot_dimension_numbers<[1], [0], [0], [1], [0, 0, 1, 1], [], []>} : vector<32x128xbf16>, vector<128x256xbf16>, vector<32x256xf32> -> vector<32x256xf32>
    %c0_61 = arith.constant 0 : index
    %c0_62 = arith.constant 0 : index
    %c0_63 = arith.constant 0 : index
    %151 = vector.load %arg12[%c0_61, %c0_62, %c0_63] : memref<2x1x256xf32, #tpu.memory_space<vmem>>, vector<1x1x256xf32>
    %152 = vector.shape_cast %151 : vector<1x1x256xf32> to vector<1x256xf32>
    %153 = vector.broadcast %152 : vector<1x256xf32> to vector<32x256xf32>
    %154 = arith.addf %150, %153 : vector<32x256xf32>
    %cst_64 = arith.constant 5.000000e-01 : f32
    %155 = vector.broadcast %cst_64 : f32 to vector<32x256xf32>
    %156 = arith.mulf %155, %154 : vector<32x256xf32>
    %cst_65 = arith.constant 0.707106769 : f32
    %157 = vector.broadcast %cst_65 : f32 to vector<32x256xf32>
    %158 = arith.mulf %154, %157 : vector<32x256xf32>
    %159 = math.erf %158 : vector<32x256xf32>
    %cst_66 = arith.constant 1.000000e+00 : f32
    %160 = vector.broadcast %cst_66 : f32 to vector<32x256xf32>
    %161 = arith.addf %160, %159 : vector<32x256xf32>
    %162 = arith.mulf %156, %161 : vector<32x256xf32>
    %163 = arith.truncf %162 : vector<32x256xf32> to vector<32x256xbf16>
    %c0_67 = arith.constant 0 : index
    %c0_68 = arith.constant 0 : index
    %c0_69 = arith.constant 0 : index
    %164 = vector.load %arg13[%c0_67, %c0_68, %c0_69] : memref<2x256x128xbf16, #tpu.memory_space<vmem>>, vector<1x256x128xbf16>
    %165 = vector.shape_cast %164 : vector<1x256x128xbf16> to vector<256x128xbf16>
    %cst_70 = arith.constant dense<0.000000e+00> : vector<32x128xf32>
    %166 = tpu.matmul %163, %165, %cst_70 {dimension_numbers = #tpu.dot_dimension_numbers<[1], [0], [0], [1], [0, 0, 1, 1], [], []>} : vector<32x256xbf16>, vector<256x128xbf16>, vector<32x128xf32> -> vector<32x128xf32>
    %c0_71 = arith.constant 0 : index
    %c0_72 = arith.constant 0 : index
    %c0_73 = arith.constant 0 : index
    %167 = vector.load %arg14[%c0_71, %c0_72, %c0_73] : memref<2x1x128xf32, #tpu.memory_space<vmem>>, vector<1x1x128xf32>
    %168 = vector.shape_cast %167 : vector<1x1x128xf32> to vector<1x128xf32>
    %169 = vector.broadcast %168 : vector<1x128xf32> to vector<32x128xf32>
    %170 = arith.addf %166, %169 : vector<32x128xf32>
    %171 = arith.addf %170, %120 : vector<32x128xf32>
    %c1 = arith.constant 1 : index
    %c0_74 = arith.constant 0 : index
    %c0_75 = arith.constant 0 : index
    %172 = vector.load %arg4[%c1, %c0_74, %c0_75] : memref<2x1x128xf32, #tpu.memory_space<vmem>>, vector<1x1x128xf32>
    %173 = vector.shape_cast %172 : vector<1x1x128xf32> to vector<1x128xf32>
    %c1_76 = arith.constant 1 : index
    %c0_77 = arith.constant 0 : index
    %c0_78 = arith.constant 0 : index
    %174 = vector.load %arg5[%c1_76, %c0_77, %c0_78] : memref<2x1x128xf32, #tpu.memory_space<vmem>>, vector<1x1x128xf32>
    %175 = vector.shape_cast %174 : vector<1x1x128xf32> to vector<1x128xf32>
    %cst_79 = arith.constant dense<0.000000e+00> : vector<32xf32>
    %176 = vector.multi_reduction <add>, %171, %cst_79 [1] : vector<32x128xf32> to vector<32xf32>
    %177 = vector.shape_cast %176 : vector<32xf32> to vector<32x1xf32>
    %cst_80 = arith.constant 1.280000e+02 : f32
    %178 = vector.broadcast %cst_80 : f32 to vector<32x1xf32>
    %179 = arith.divf %177, %178 : vector<32x1xf32>
    %180 = vector.broadcast %179 : vector<32x1xf32> to vector<32x128xf32>
    %181 = arith.subf %171, %180 : vector<32x128xf32>
    %182 = arith.mulf %181, %181 : vector<32x128xf32>
    %cst_81 = arith.constant dense<0.000000e+00> : vector<32xf32>
    %183 = vector.multi_reduction <add>, %182, %cst_81 [1] : vector<32x128xf32> to vector<32xf32>
    %184 = vector.shape_cast %183 : vector<32xf32> to vector<32x1xf32>
    %cst_82 = arith.constant 1.280000e+02 : f32
    %185 = vector.broadcast %cst_82 : f32 to vector<32x1xf32>
    %186 = arith.divf %184, %185 : vector<32x1xf32>
    %187 = vector.broadcast %179 : vector<32x1xf32> to vector<32x128xf32>
    %188 = arith.subf %171, %187 : vector<32x128xf32>
    %cst_83 = arith.constant 9.99999974E-6 : f32
    %189 = vector.broadcast %cst_83 : f32 to vector<32x1xf32>
    %190 = arith.addf %186, %189 : vector<32x1xf32>
    %191 = math.rsqrt %190 : vector<32x1xf32>
    %192 = vector.broadcast %191 : vector<32x1xf32> to vector<32x128xf32>
    %193 = arith.mulf %188, %192 : vector<32x128xf32>
    %194 = vector.broadcast %173 : vector<1x128xf32> to vector<32x128xf32>
    %195 = arith.mulf %193, %194 : vector<32x128xf32>
    %196 = vector.broadcast %175 : vector<1x128xf32> to vector<32x128xf32>
    %197 = arith.addf %195, %196 : vector<32x128xf32>
    %198 = arith.truncf %197 : vector<32x128xf32> to vector<32x128xbf16>
    %c1_84 = arith.constant 1 : index
    %c0_85 = arith.constant 0 : index
    %c0_86 = arith.constant 0 : index
    %199 = vector.load %arg6[%c1_84, %c0_85, %c0_86] : memref<2x128x384xbf16, #tpu.memory_space<vmem>>, vector<1x128x384xbf16>
    %200 = vector.shape_cast %199 : vector<1x128x384xbf16> to vector<128x384xbf16>
    %cst_87 = arith.constant dense<0.000000e+00> : vector<32x384xf32>
    %201 = tpu.matmul %198, %200, %cst_87 {dimension_numbers = #tpu.dot_dimension_numbers<[1], [0], [0], [1], [0, 0, 1, 1], [], []>} : vector<32x128xbf16>, vector<128x384xbf16>, vector<32x384xf32> -> vector<32x384xf32>
    %202 = arith.truncf %201 : vector<32x384xf32> to vector<32x384xbf16>
    %203 = vector.extract_strided_slice %202 {offsets = [0, 0], sizes = [32, 32], strides = [1, 1]} : vector<32x384xbf16> to vector<32x32xbf16>
    %204 = vector.extract_strided_slice %202 {offsets = [0, 128], sizes = [32, 32], strides = [1, 1]} : vector<32x384xbf16> to vector<32x32xbf16>
    %205 = vector.extract_strided_slice %202 {offsets = [0, 256], sizes = [32, 32], strides = [1, 1]} : vector<32x384xbf16> to vector<32x32xbf16>
    %cst_88 = arith.constant dense<0.000000e+00> : vector<32x32xf32>
    %206 = tpu.matmul %203, %204, %cst_88 {dimension_numbers = #tpu.dot_dimension_numbers<[1], [1], [0], [0], [0, 0, 1, 0], [], []>} : vector<32x32xbf16>, vector<32x32xbf16>, vector<32x32xf32> -> vector<32x32xf32>
    %207 = arith.addf %206, %11 : vector<32x32xf32>
    %cst_89 = arith.constant dense<0xFF800000> : vector<32xf32>
    %208 = vector.multi_reduction <maximumf>, %207, %cst_89 [1] : vector<32x32xf32> to vector<32xf32>
    %209 = vector.shape_cast %208 : vector<32xf32> to vector<32x1xf32>
    %210 = vector.broadcast %209 : vector<32x1xf32> to vector<32x32xf32>
    %211 = arith.subf %207, %210 : vector<32x32xf32>
    %212 = math.exp %211 : vector<32x32xf32>
    %cst_90 = arith.constant dense<0.000000e+00> : vector<32xf32>
    %213 = vector.multi_reduction <add>, %212, %cst_90 [1] : vector<32x32xf32> to vector<32xf32>
    %214 = vector.shape_cast %213 : vector<32xf32> to vector<32x1xf32>
    %215 = tpu.reciprocal %214 {approx = true} : vector<32x1xf32> -> vector<32x1xf32>
    %216 = vector.broadcast %215 : vector<32x1xf32> to vector<32x32xf32>
    %217 = arith.mulf %212, %216 : vector<32x32xf32>
    %218 = arith.truncf %217 : vector<32x32xf32> to vector<32x32xbf16>
    %cst_91 = arith.constant dense<0.000000e+00> : vector<32x32xf32>
    %219 = tpu.matmul %218, %205, %cst_91 {dimension_numbers = #tpu.dot_dimension_numbers<[1], [0], [0], [1], [0, 0, 1, 1], [], []>} : vector<32x32xbf16>, vector<32x32xbf16>, vector<32x32xf32> -> vector<32x32xf32>
    %220 = vector.extract_strided_slice %202 {offsets = [0, 32], sizes = [32, 32], strides = [1, 1]} : vector<32x384xbf16> to vector<32x32xbf16>
    %221 = vector.extract_strided_slice %202 {offsets = [0, 160], sizes = [32, 32], strides = [1, 1]} : vector<32x384xbf16> to vector<32x32xbf16>
    %222 = vector.extract_strided_slice %202 {offsets = [0, 288], sizes = [32, 32], strides = [1, 1]} : vector<32x384xbf16> to vector<32x32xbf16>
    %cst_92 = arith.constant dense<0.000000e+00> : vector<32x32xf32>
    %223 = tpu.matmul %220, %221, %cst_92 {dimension_numbers = #tpu.dot_dimension_numbers<[1], [1], [0], [0], [0, 0, 1, 0], [], []>} : vector<32x32xbf16>, vector<32x32xbf16>, vector<32x32xf32> -> vector<32x32xf32>
    %224 = arith.addf %223, %11 : vector<32x32xf32>
    %cst_93 = arith.constant dense<0xFF800000> : vector<32xf32>
    %225 = vector.multi_reduction <maximumf>, %224, %cst_93 [1] : vector<32x32xf32> to vector<32xf32>
    %226 = vector.shape_cast %225 : vector<32xf32> to vector<32x1xf32>
    %227 = vector.broadcast %226 : vector<32x1xf32> to vector<32x32xf32>
    %228 = arith.subf %224, %227 : vector<32x32xf32>
    %229 = math.exp %228 : vector<32x32xf32>
    %cst_94 = arith.constant dense<0.000000e+00> : vector<32xf32>
    %230 = vector.multi_reduction <add>, %229, %cst_94 [1] : vector<32x32xf32> to vector<32xf32>
    %231 = vector.shape_cast %230 : vector<32xf32> to vector<32x1xf32>
    %232 = tpu.reciprocal %231 {approx = true} : vector<32x1xf32> -> vector<32x1xf32>
    %233 = vector.broadcast %232 : vector<32x1xf32> to vector<32x32xf32>
    %234 = arith.mulf %229, %233 : vector<32x32xf32>
    %235 = arith.truncf %234 : vector<32x32xf32> to vector<32x32xbf16>
    %cst_95 = arith.constant dense<0.000000e+00> : vector<32x32xf32>
    %236 = tpu.matmul %235, %222, %cst_95 {dimension_numbers = #tpu.dot_dimension_numbers<[1], [0], [0], [1], [0, 0, 1, 1], [], []>} : vector<32x32xbf16>, vector<32x32xbf16>, vector<32x32xf32> -> vector<32x32xf32>
    %237 = vector.extract_strided_slice %202 {offsets = [0, 64], sizes = [32, 32], strides = [1, 1]} : vector<32x384xbf16> to vector<32x32xbf16>
    %238 = vector.extract_strided_slice %202 {offsets = [0, 192], sizes = [32, 32], strides = [1, 1]} : vector<32x384xbf16> to vector<32x32xbf16>
    %239 = vector.extract_strided_slice %202 {offsets = [0, 320], sizes = [32, 32], strides = [1, 1]} : vector<32x384xbf16> to vector<32x32xbf16>
    %cst_96 = arith.constant dense<0.000000e+00> : vector<32x32xf32>
    %240 = tpu.matmul %237, %238, %cst_96 {dimension_numbers = #tpu.dot_dimension_numbers<[1], [1], [0], [0], [0, 0, 1, 0], [], []>} : vector<32x32xbf16>, vector<32x32xbf16>, vector<32x32xf32> -> vector<32x32xf32>
    %241 = arith.addf %240, %11 : vector<32x32xf32>
    %cst_97 = arith.constant dense<0xFF800000> : vector<32xf32>
    %242 = vector.multi_reduction <maximumf>, %241, %cst_97 [1] : vector<32x32xf32> to vector<32xf32>
    %243 = vector.shape_cast %242 : vector<32xf32> to vector<32x1xf32>
    %244 = vector.broadcast %243 : vector<32x1xf32> to vector<32x32xf32>
    %245 = arith.subf %241, %244 : vector<32x32xf32>
    %246 = math.exp %245 : vector<32x32xf32>
    %cst_98 = arith.constant dense<0.000000e+00> : vector<32xf32>
    %247 = vector.multi_reduction <add>, %246, %cst_98 [1] : vector<32x32xf32> to vector<32xf32>
    %248 = vector.shape_cast %247 : vector<32xf32> to vector<32x1xf32>
    %249 = tpu.reciprocal %248 {approx = true} : vector<32x1xf32> -> vector<32x1xf32>
    %250 = vector.broadcast %249 : vector<32x1xf32> to vector<32x32xf32>
    %251 = arith.mulf %246, %250 : vector<32x32xf32>
    %252 = arith.truncf %251 : vector<32x32xf32> to vector<32x32xbf16>
    %cst_99 = arith.constant dense<0.000000e+00> : vector<32x32xf32>
    %253 = tpu.matmul %252, %239, %cst_99 {dimension_numbers = #tpu.dot_dimension_numbers<[1], [0], [0], [1], [0, 0, 1, 1], [], []>} : vector<32x32xbf16>, vector<32x32xbf16>, vector<32x32xf32> -> vector<32x32xf32>
    %254 = vector.extract_strided_slice %202 {offsets = [0, 96], sizes = [32, 32], strides = [1, 1]} : vector<32x384xbf16> to vector<32x32xbf16>
    %255 = vector.extract_strided_slice %202 {offsets = [0, 224], sizes = [32, 32], strides = [1, 1]} : vector<32x384xbf16> to vector<32x32xbf16>
    %256 = vector.extract_strided_slice %202 {offsets = [0, 352], sizes = [32, 32], strides = [1, 1]} : vector<32x384xbf16> to vector<32x32xbf16>
    %cst_100 = arith.constant dense<0.000000e+00> : vector<32x32xf32>
    %257 = tpu.matmul %254, %255, %cst_100 {dimension_numbers = #tpu.dot_dimension_numbers<[1], [1], [0], [0], [0, 0, 1, 0], [], []>} : vector<32x32xbf16>, vector<32x32xbf16>, vector<32x32xf32> -> vector<32x32xf32>
    %258 = arith.addf %257, %11 : vector<32x32xf32>
    %cst_101 = arith.constant dense<0xFF800000> : vector<32xf32>
    %259 = vector.multi_reduction <maximumf>, %258, %cst_101 [1] : vector<32x32xf32> to vector<32xf32>
    %260 = vector.shape_cast %259 : vector<32xf32> to vector<32x1xf32>
    %261 = vector.broadcast %260 : vector<32x1xf32> to vector<32x32xf32>
    %262 = arith.subf %258, %261 : vector<32x32xf32>
    %263 = math.exp %262 : vector<32x32xf32>
    %cst_102 = arith.constant dense<0.000000e+00> : vector<32xf32>
    %264 = vector.multi_reduction <add>, %263, %cst_102 [1] : vector<32x32xf32> to vector<32xf32>
    %265 = vector.shape_cast %264 : vector<32xf32> to vector<32x1xf32>
    %266 = tpu.reciprocal %265 {approx = true} : vector<32x1xf32> -> vector<32x1xf32>
    %267 = vector.broadcast %266 : vector<32x1xf32> to vector<32x32xf32>
    %268 = arith.mulf %263, %267 : vector<32x32xf32>
    %269 = arith.truncf %268 : vector<32x32xf32> to vector<32x32xbf16>
    %cst_103 = arith.constant dense<0.000000e+00> : vector<32x32xf32>
    %270 = tpu.matmul %269, %256, %cst_103 {dimension_numbers = #tpu.dot_dimension_numbers<[1], [0], [0], [1], [0, 0, 1, 1], [], []>} : vector<32x32xbf16>, vector<32x32xbf16>, vector<32x32xf32> -> vector<32x32xf32>
    %271 = tpu.concatenate %219, %236, %253, %270 in 1 : vector<32x32xf32>, vector<32x32xf32>, vector<32x32xf32>, vector<32x32xf32> -> vector<32x128xf32>
    %272 = arith.truncf %271 : vector<32x128xf32> to vector<32x128xbf16>
    %c1_104 = arith.constant 1 : index
    %c0_105 = arith.constant 0 : index
    %c0_106 = arith.constant 0 : index
    %273 = vector.load %arg7[%c1_104, %c0_105, %c0_106] : memref<2x128x128xbf16, #tpu.memory_space<vmem>>, vector<1x128x128xbf16>
    %274 = vector.shape_cast %273 : vector<1x128x128xbf16> to vector<128x128xbf16>
    %cst_107 = arith.constant dense<0.000000e+00> : vector<32x128xf32>
    %275 = tpu.matmul %272, %274, %cst_107 {dimension_numbers = #tpu.dot_dimension_numbers<[1], [0], [0], [1], [0, 0, 1, 1], [], []>} : vector<32x128xbf16>, vector<128x128xbf16>, vector<32x128xf32> -> vector<32x128xf32>
    %c1_108 = arith.constant 1 : index
    %c0_109 = arith.constant 0 : index
    %c0_110 = arith.constant 0 : index
    %276 = vector.load %arg8[%c1_108, %c0_109, %c0_110] : memref<2x1x128xf32, #tpu.memory_space<vmem>>, vector<1x1x128xf32>
    %277 = vector.shape_cast %276 : vector<1x1x128xf32> to vector<1x128xf32>
    %278 = vector.broadcast %277 : vector<1x128xf32> to vector<32x128xf32>
    %279 = arith.addf %275, %278 : vector<32x128xf32>
    %280 = arith.addf %279, %171 : vector<32x128xf32>
    %c1_111 = arith.constant 1 : index
    %c0_112 = arith.constant 0 : index
    %c0_113 = arith.constant 0 : index
    %281 = vector.load %arg9[%c1_111, %c0_112, %c0_113] : memref<2x1x128xf32, #tpu.memory_space<vmem>>, vector<1x1x128xf32>
    %282 = vector.shape_cast %281 : vector<1x1x128xf32> to vector<1x128xf32>
    %c1_114 = arith.constant 1 : index
    %c0_115 = arith.constant 0 : index
    %c0_116 = arith.constant 0 : index
    %283 = vector.load %arg10[%c1_114, %c0_115, %c0_116] : memref<2x1x128xf32, #tpu.memory_space<vmem>>, vector<1x1x128xf32>
    %284 = vector.shape_cast %283 : vector<1x1x128xf32> to vector<1x128xf32>
    %cst_117 = arith.constant dense<0.000000e+00> : vector<32xf32>
    %285 = vector.multi_reduction <add>, %280, %cst_117 [1] : vector<32x128xf32> to vector<32xf32>
    %286 = vector.shape_cast %285 : vector<32xf32> to vector<32x1xf32>
    %cst_118 = arith.constant 1.280000e+02 : f32
    %287 = vector.broadcast %cst_118 : f32 to vector<32x1xf32>
    %288 = arith.divf %286, %287 : vector<32x1xf32>
    %289 = vector.broadcast %288 : vector<32x1xf32> to vector<32x128xf32>
    %290 = arith.subf %280, %289 : vector<32x128xf32>
    %291 = arith.mulf %290, %290 : vector<32x128xf32>
    %cst_119 = arith.constant dense<0.000000e+00> : vector<32xf32>
    %292 = vector.multi_reduction <add>, %291, %cst_119 [1] : vector<32x128xf32> to vector<32xf32>
    %293 = vector.shape_cast %292 : vector<32xf32> to vector<32x1xf32>
    %cst_120 = arith.constant 1.280000e+02 : f32
    %294 = vector.broadcast %cst_120 : f32 to vector<32x1xf32>
    %295 = arith.divf %293, %294 : vector<32x1xf32>
    %296 = vector.broadcast %288 : vector<32x1xf32> to vector<32x128xf32>
    %297 = arith.subf %280, %296 : vector<32x128xf32>
    %cst_121 = arith.constant 9.99999974E-6 : f32
    %298 = vector.broadcast %cst_121 : f32 to vector<32x1xf32>
    %299 = arith.addf %295, %298 : vector<32x1xf32>
    %300 = math.rsqrt %299 : vector<32x1xf32>
    %301 = vector.broadcast %300 : vector<32x1xf32> to vector<32x128xf32>
    %302 = arith.mulf %297, %301 : vector<32x128xf32>
    %303 = vector.broadcast %282 : vector<1x128xf32> to vector<32x128xf32>
    %304 = arith.mulf %302, %303 : vector<32x128xf32>
    %305 = vector.broadcast %284 : vector<1x128xf32> to vector<32x128xf32>
    %306 = arith.addf %304, %305 : vector<32x128xf32>
    %307 = arith.truncf %306 : vector<32x128xf32> to vector<32x128xbf16>
    %c1_122 = arith.constant 1 : index
    %c0_123 = arith.constant 0 : index
    %c0_124 = arith.constant 0 : index
    %308 = vector.load %arg11[%c1_122, %c0_123, %c0_124] : memref<2x128x256xbf16, #tpu.memory_space<vmem>>, vector<1x128x256xbf16>
    %309 = vector.shape_cast %308 : vector<1x128x256xbf16> to vector<128x256xbf16>
    %cst_125 = arith.constant dense<0.000000e+00> : vector<32x256xf32>
    %310 = tpu.matmul %307, %309, %cst_125 {dimension_numbers = #tpu.dot_dimension_numbers<[1], [0], [0], [1], [0, 0, 1, 1], [], []>} : vector<32x128xbf16>, vector<128x256xbf16>, vector<32x256xf32> -> vector<32x256xf32>
    %c1_126 = arith.constant 1 : index
    %c0_127 = arith.constant 0 : index
    %c0_128 = arith.constant 0 : index
    %311 = vector.load %arg12[%c1_126, %c0_127, %c0_128] : memref<2x1x256xf32, #tpu.memory_space<vmem>>, vector<1x1x256xf32>
    %312 = vector.shape_cast %311 : vector<1x1x256xf32> to vector<1x256xf32>
    %313 = vector.broadcast %312 : vector<1x256xf32> to vector<32x256xf32>
    %314 = arith.addf %310, %313 : vector<32x256xf32>
    %cst_129 = arith.constant 5.000000e-01 : f32
    %315 = vector.broadcast %cst_129 : f32 to vector<32x256xf32>
    %316 = arith.mulf %315, %314 : vector<32x256xf32>
    %cst_130 = arith.constant 0.707106769 : f32
    %317 = vector.broadcast %cst_130 : f32 to vector<32x256xf32>
    %318 = arith.mulf %314, %317 : vector<32x256xf32>
    %319 = math.erf %318 : vector<32x256xf32>
    %cst_131 = arith.constant 1.000000e+00 : f32
    %320 = vector.broadcast %cst_131 : f32 to vector<32x256xf32>
    %321 = arith.addf %320, %319 : vector<32x256xf32>
    %322 = arith.mulf %316, %321 : vector<32x256xf32>
    %323 = arith.truncf %322 : vector<32x256xf32> to vector<32x256xbf16>
    %c1_132 = arith.constant 1 : index
    %c0_133 = arith.constant 0 : index
    %c0_134 = arith.constant 0 : index
    %324 = vector.load %arg13[%c1_132, %c0_133, %c0_134] : memref<2x256x128xbf16, #tpu.memory_space<vmem>>, vector<1x256x128xbf16>
    %325 = vector.shape_cast %324 : vector<1x256x128xbf16> to vector<256x128xbf16>
    %cst_135 = arith.constant dense<0.000000e+00> : vector<32x128xf32>
    %326 = tpu.matmul %323, %325, %cst_135 {dimension_numbers = #tpu.dot_dimension_numbers<[1], [0], [0], [1], [0, 0, 1, 1], [], []>} : vector<32x256xbf16>, vector<256x128xbf16>, vector<32x128xf32> -> vector<32x128xf32>
    %c1_136 = arith.constant 1 : index
    %c0_137 = arith.constant 0 : index
    %c0_138 = arith.constant 0 : index
    %327 = vector.load %arg14[%c1_136, %c0_137, %c0_138] : memref<2x1x128xf32, #tpu.memory_space<vmem>>, vector<1x1x128xf32>
    %328 = vector.shape_cast %327 : vector<1x1x128xf32> to vector<1x128xf32>
    %329 = vector.broadcast %328 : vector<1x128xf32> to vector<32x128xf32>
    %330 = arith.addf %326, %329 : vector<32x128xf32>
    %331 = arith.addf %330, %280 : vector<32x128xf32>
    %332 = vector.extract_strided_slice %331 {offsets = [0, 0], sizes = [1, 128], strides = [1, 1]} : vector<32x128xf32> to vector<1x128xf32>
    %c0_139 = arith.constant 0 : index
    %c0_140 = arith.constant 0 : index
    %333 = vector.load %arg15[%c0_139, %c0_140] : memref<1x128xf32, #tpu.memory_space<vmem>>, vector<1x128xf32>
    %c0_141 = arith.constant 0 : index
    %c0_142 = arith.constant 0 : index
    %334 = vector.load %arg16[%c0_141, %c0_142] : memref<1x128xf32, #tpu.memory_space<vmem>>, vector<1x128xf32>
    %cst_143 = arith.constant dense<0.000000e+00> : vector<1xf32>
    %335 = vector.multi_reduction <add>, %332, %cst_143 [1] : vector<1x128xf32> to vector<1xf32>
    %336 = vector.shape_cast %335 : vector<1xf32> to vector<1x1xf32>
    %cst_144 = arith.constant 1.280000e+02 : f32
    %337 = vector.broadcast %cst_144 : f32 to vector<1x1xf32>
    %338 = arith.divf %336, %337 : vector<1x1xf32>
    %339 = vector.broadcast %338 : vector<1x1xf32> to vector<1x128xf32>
    %340 = arith.subf %332, %339 : vector<1x128xf32>
    %341 = arith.mulf %340, %340 : vector<1x128xf32>
    %cst_145 = arith.constant dense<0.000000e+00> : vector<1xf32>
    %342 = vector.multi_reduction <add>, %341, %cst_145 [1] : vector<1x128xf32> to vector<1xf32>
    %343 = vector.shape_cast %342 : vector<1xf32> to vector<1x1xf32>
    %cst_146 = arith.constant 1.280000e+02 : f32
    %344 = vector.broadcast %cst_146 : f32 to vector<1x1xf32>
    %345 = arith.divf %343, %344 : vector<1x1xf32>
    %346 = vector.broadcast %338 : vector<1x1xf32> to vector<1x128xf32>
    %347 = arith.subf %332, %346 : vector<1x128xf32>
    %cst_147 = arith.constant 9.99999974E-6 : f32
    %348 = vector.broadcast %cst_147 : f32 to vector<1x1xf32>
    %349 = arith.addf %345, %348 : vector<1x1xf32>
    %350 = math.rsqrt %349 : vector<1x1xf32>
    %351 = vector.broadcast %350 : vector<1x1xf32> to vector<1x128xf32>
    %352 = arith.mulf %347, %351 : vector<1x128xf32>
    %353 = arith.mulf %352, %333 : vector<1x128xf32>
    %354 = arith.addf %353, %334 : vector<1x128xf32>
    %355 = arith.truncf %354 : vector<1x128xf32> to vector<1x128xbf16>
    %c0_148 = arith.constant 0 : index
    %c0_149 = arith.constant 0 : index
    %356 = vector.load %arg17[%c0_148, %c0_149] : memref<128x128xbf16, #tpu.memory_space<vmem>>, vector<128x128xbf16>
    %cst_150 = arith.constant dense<0.000000e+00> : vector<1x128xf32>
    %357 = tpu.matmul %355, %356, %cst_150 {dimension_numbers = #tpu.dot_dimension_numbers<[1], [0], [0], [1], [0, 0, 1, 1], [], []>} : vector<1x128xbf16>, vector<128x128xbf16>, vector<1x128xf32> -> vector<1x128xf32>
    %c0_151 = arith.constant 0 : index
    %c0_152 = arith.constant 0 : index
    %358 = vector.load %arg18[%c0_151, %c0_152] : memref<1x128xf32, #tpu.memory_space<vmem>>, vector<1x128xf32>
    %359 = arith.addf %357, %358 : vector<1x128xf32>
    %c0_153 = arith.constant 0 : index
    %c0_154 = arith.constant 0 : index
    %c0_155 = arith.constant 0 : index
    %360 = vector.load %arg19[%c0_153, %c0_154, %c0_155] : memref<1x1x128xf32, #tpu.memory_space<vmem>>, vector<1x1x128xf32>
    %361 = vector.shape_cast %360 : vector<1x1x128xf32> to vector<1x128xf32>
    %362 = vector.shape_cast %359 : vector<1x128xf32> to vector<1x1x128xf32>
    tpu.vector_store %arg19[%c0_153, %c0_154, %c0_155], %362 {strides = array<i32>} : memref<1x1x128xf32, #tpu.memory_space<vmem>>, vector<1x1x128xf32>,
    return
  }
  func.func @transform_0(%arg0: i32) -> (i32, i32, i32) {
    %c0_i32 = arith.constant 0 : i32
    %c0_i32_0 = arith.constant 0 : i32
    %c0_i32_1 = arith.constant 0 : i32
    return %arg0, %c0_i32, %c0_i32_0 : i32, i32, i32
  }
  func.func @transform_1(%arg0: i32) -> (i32, i32) {
    %c0_i32 = arith.constant 0 : i32
    %c0_i32_0 = arith.constant 0 : i32
    %c0_i32_1 = arith.constant 0 : i32
    return %c0_i32, %c0_i32_0 : i32, i32
  }
  func.func @transform_2(%arg0: i32) -> (i32, i32) {
    %c0_i32 = arith.constant 0 : i32
    %c0_i32_0 = arith.constant 0 : i32
    %c0_i32_1 = arith.constant 0 : i32
    return %c0_i32, %c0_i32_0 : i32, i32
  }
  func.func @transform_3(%arg0: i32) -> (i32, i32, i32) {
    %c0_i32 = arith.constant 0 : i32
    %c0_i32_0 = arith.constant 0 : i32
    %c0_i32_1 = arith.constant 0 : i32
    %c0_i32_2 = arith.constant 0 : i32
    return %c0_i32, %c0_i32_0, %c0_i32_1 : i32, i32, i32
  }
  func.func @transform_4(%arg0: i32) -> (i32, i32, i32) {
    %c0_i32 = arith.constant 0 : i32
    %c0_i32_0 = arith.constant 0 : i32
    %c0_i32_1 = arith.constant 0 : i32
    %c0_i32_2 = arith.constant 0 : i32
    return %c0_i32, %c0_i32_0, %c0_i32_1 : i32, i32, i32
  }
  func.func @transform_5(%arg0: i32) -> (i32, i32, i32) {
    %c0_i32 = arith.constant 0 : i32
    %c0_i32_0 = arith.constant 0 : i32
    %c0_i32_1 = arith.constant 0 : i32
    %c0_i32_2 = arith.constant 0 : i32
    return %c0_i32, %c0_i32_0, %c0_i32_1 : i32, i32, i32
  }
  func.func @transform_6(%arg0: i32) -> (i32, i32, i32) {
    %c0_i32 = arith.constant 0 : i32
    %c0_i32_0 = arith.constant 0 : i32
    %c0_i32_1 = arith.constant 0 : i32
    %c0_i32_2 = arith.constant 0 : i32
    return %c0_i32, %c0_i32_0, %c0_i32_1 : i32, i32, i32
  }
  func.func @transform_7(%arg0: i32) -> (i32, i32, i32) {
    %c0_i32 = arith.constant 0 : i32
    %c0_i32_0 = arith.constant 0 : i32
    %c0_i32_1 = arith.constant 0 : i32
    %c0_i32_2 = arith.constant 0 : i32
    return %c0_i32, %c0_i32_0, %c0_i32_1 : i32, i32, i32
  }
  func.func @transform_8(%arg0: i32) -> (i32, i32, i32) {
    %c0_i32 = arith.constant 0 : i32
    %c0_i32_0 = arith.constant 0 : i32
    %c0_i32_1 = arith.constant 0 : i32
    %c0_i32_2 = arith.constant 0 : i32
    return %c0_i32, %c0_i32_0, %c0_i32_1 : i32, i32, i32
  }
  func.func @transform_9(%arg0: i32) -> (i32, i32, i32) {
    %c0_i32 = arith.constant 0 : i32
    %c0_i32_0 = arith.constant 0 : i32
    %c0_i32_1 = arith.constant 0 : i32
    %c0_i32_2 = arith.constant 0 : i32
    return %c0_i32, %c0_i32_0, %c0_i32_1 : i32, i32, i32
  }
  func.func @transform_10(%arg0: i32) -> (i32, i32, i32) {
    %c0_i32 = arith.constant 0 : i32
    %c0_i32_0 = arith.constant 0 : i32
    %c0_i32_1 = arith.constant 0 : i32
    %c0_i32_2 = arith.constant 0 : i32
    return %c0_i32, %c0_i32_0, %c0_i32_1 : i32, i32, i32
  }
  func.func @transform_11(%arg0: i32) -> (i32, i32, i32) {
    %c0_i32 = arith.constant 0 : i32
    %c0_i32_0 = arith.constant 0 : i32
    %c0_i32_1 = arith.constant 0 : i32
    %c0_i32_2 = arith.constant 0 : i32
    return %c0_i32, %c0_i32_0, %c0_i32_1 : i32, i32, i32
  }
  func.func @transform_12(%arg0: i32) -> (i32, i32, i32) {
    %c0_i32 = arith.constant 0 : i32
    %c0_i32_0 = arith.constant 0 : i32
    %c0_i32_1 = arith.constant 0 : i32
    %c0_i32_2 = arith.constant 0 : i32
    return %c0_i32, %c0_i32_0, %c0_i32_1 : i32, i32, i32
  }
  func.func @transform_13(%arg0: i32) -> (i32, i32, i32) {
    %c0_i32 = arith.constant 0 : i32
    %c0_i32_0 = arith.constant 0 : i32
    %c0_i32_1 = arith.constant 0 : i32
    %c0_i32_2 = arith.constant 0 : i32
    return %c0_i32, %c0_i32_0, %c0_i32_1 : i32, i32, i32
  }
  func.func @transform_14(%arg0: i32) -> (i32, i32) {
    %c0_i32 = arith.constant 0 : i32
    %c0_i32_0 = arith.constant 0 : i32
    %c0_i32_1 = arith.constant 0 : i32
    return %c0_i32, %c0_i32_0 : i32, i32
  }
  func.func @transform_15(%arg0: i32) -> (i32, i32) {
    %c0_i32 = arith.constant 0 : i32
    %c0_i32_0 = arith.constant 0 : i32
    %c0_i32_1 = arith.constant 0 : i32
    return %c0_i32, %c0_i32_0 : i32, i32
  }
  func.func @transform_16(%arg0: i32) -> (i32, i32) {
    %c0_i32 = arith.constant 0 : i32
    %c0_i32_0 = arith.constant 0 : i32
    %c0_i32_1 = arith.constant 0 : i32
    return %c0_i32, %c0_i32_0 : i32, i32
  }
  func.func @transform_17(%arg0: i32) -> (i32, i32) {
    %c0_i32 = arith.constant 0 : i32
    %c0_i32_0 = arith.constant 0 : i32
    %c0_i32_1 = arith.constant 0 : i32
    return %c0_i32, %c0_i32_0 : i32, i32
  }
  func.func @transform_18(%arg0: i32) -> (i32, i32, i32) {
    %c0_i32 = arith.constant 0 : i32
    %c0_i32_0 = arith.constant 0 : i32
    %c0_i32_1 = arith.constant 0 : i32
    return %arg0, %c0_i32, %c0_i32_0 : i32, i32, i32
  }
}

</mosaic_0001>

<llo_original>
// kernel: vit_forward.1
$region0: #{vit_forward.1}
  #allocation0 [shape = 'u32[]', space=smem, size = 0x4, offset = 0x4, fixed_abs, tag = 'smem constant byte address 0x4 - core index']
  #allocation1 [shape = 'u32[144,128]{1,0:T(1,128)}', space=vmem, size = 0x12000, scoped, tag = 'internal scratch']
  %s0 = inlined_call_operand.vmem [shape: bf16[2,32,192], index: 0, kind: input, shape index: {}]
  %s1 = inlined_call_operand.vmem [shape: bf16[192,128], index: 1, kind: input, shape index: {}]
  %s2 = inlined_call_operand.vmem [shape: f32[32,128], index: 2, kind: input, shape index: {}]
  %s3 = inlined_call_operand.vmem [shape: f32[2,1,128], index: 3, kind: input, shape index: {}]
  %s4 = inlined_call_operand.vmem [shape: f32[2,1,128], index: 4, kind: input, shape index: {}]
  %s5 = inlined_call_operand.vmem [shape: bf16[2,128,384], index: 5, kind: input, shape index: {}]
  %s6 = inlined_call_operand.vmem [shape: bf16[2,128,128], index: 6, kind: input, shape index: {}]
  %s7 = inlined_call_operand.vmem [shape: f32[2,1,128], index: 7, kind: input, shape index: {}]
  %s8 = inlined_call_operand.vmem [shape: f32[2,1,128], index: 8, kind: input, shape index: {}]
  %s9 = inlined_call_operand.vmem [shape: f32[2,1,128], index: 9, kind: input, shape index: {}]
  %s10 = inlined_call_operand.vmem [shape: bf16[2,128,256], index: 10, kind: input, shape index: {}]
  %s11 = inlined_call_operand.vmem [shape: f32[2,1,256], index: 11, kind: input, shape index: {}]
  %s12 = inlined_call_operand.vmem [shape: bf16[2,256,128], index: 12, kind: input, shape index: {}]
  %s13 = inlined_call_operand.vmem [shape: f32[2,1,128], index: 13, kind: input, shape index: {}]
  %s14 = inlined_call_operand.vmem [shape: f32[1,128], index: 14, kind: input, shape index: {}]
  %s15 = inlined_call_operand.vmem [shape: f32[1,128], index: 15, kind: input, shape index: {}]
  %s16 = inlined_call_operand.vmem [shape: bf16[128,128], index: 16, kind: input, shape index: {}]
  %s17 = inlined_call_operand.vmem [shape: f32[1,128], index: 17, kind: input, shape index: {}]
  %s18 = inlined_call_operand.hbm [shape: f32[2,1,128], index: 18, kind: output, shape index: {}]
  %s19 = sld [smem:[#allocation0]]
  $region105: #{vit_forward.1} parent=0
    _
  %s21 = ssub.s32 1, %s19
  %s22 = scalar_select 0, %s21, %s19
  $region1: #{vit_forward.1} parent=0
    #allocation2 [shape = 'u8[1024]{0}', space=vmem, size = 0x400, scoped, tag = 'output window, operand 0']
    #allocation3 [shape = 's32[2]{0}', space=sflag, size = 0x8, scoped, tag = 'scoped memory for vit_forward.1']
    %23 = vsyncpa [#allocation3], 0
    %s24 = scalar_lea.sflag [#allocation3], 1
    %25 = vsyncpa %s24, 0
    loop: start=0, step=1, limit=4
    $region2: #{vit_forward.1} parent=1 // loop_pre_header
      _
    $region3: #{vit_forward.1} parent=1 // loop_header
      %s27 = sphi 0, %s31
      %p28 = scmp.ge.s32.totalorder %s27, 4
      %s37 = sphi 0, %s39
      %s40 = sphi 0, %s37
      %s41 = sphi 0, %s40
      %s57 = sphi 0, %s41
      %s61 = sphi 0, %s61
      %s63 = sphi 0, %s61
      %s64 = sphi 0, %s63
      %s78 = sphi 0, %s64
      %s82 = sphi 0, %s82
      %s84 = sphi 0, %s82
      %s85 = sphi 0, %s84
      %s99 = sphi 0, %s85
      %s103 = sphi 0, %s103
      %s105 = sphi 0, %s103
      %s106 = sphi 0, %s105
      %s120 = sphi 0, %s106
      %s124 = sphi 0, %s124
      %s126 = sphi 0, %s124
      %s127 = sphi 0, %s126
      %s141 = sphi 0, %s127
      %s145 = sphi 0, %s145
      %s147 = sphi 0, %s145
      %s148 = sphi 0, %s147
      %s162 = sphi 0, %s148
      %s166 = sphi 0, %s166
      %s168 = sphi 0, %s166
      %s169 = sphi 0, %s168
      %s183 = sphi 0, %s169
      %s187 = sphi 0, %s187
      %s189 = sphi 0, %s187
      %s190 = sphi 0, %s189
      %s204 = sphi 0, %s190
      %s208 = sphi 0, %s208
      %s210 = sphi 0, %s208
      %s211 = sphi 0, %s210
      %s225 = sphi 0, %s211
      %s229 = sphi 0, %s229
      %s231 = sphi 0, %s229
      %s232 = sphi 0, %s231
      %s246 = sphi 0, %s232
      %s250 = sphi 0, %s250
      %s252 = sphi 0, %s250
      %s253 = sphi 0, %s252
      %s267 = sphi 0, %s253
      %s271 = sphi 0, %s271
      %s273 = sphi 0, %s271
      %s274 = sphi 0, %s273
      %s288 = sphi 0, %s274
      %s292 = sphi 0, %s292
      %s294 = sphi 0, %s292
      %s295 = sphi 0, %s294
      %s309 = sphi 0, %s295
      %s313 = sphi 0, %s313
      %s315 = sphi 0, %s313
      %s316 = sphi 0, %s315
      %s330 = sphi 0, %s316
      %s334 = sphi 0, %s334
      %s336 = sphi 0, %s334
      %s337 = sphi 0, %s336
      %s351 = sphi 0, %s337
      %s355 = sphi 0, %s355
      %s357 = sphi 0, %s355
      %s358 = sphi 0, %s357
      %s372 = sphi 0, %s358
      %s376 = sphi 0, %s376
      %s378 = sphi 0, %s376
      %s379 = sphi 0, %s378
      %s393 = sphi 0, %s379
      %s397 = sphi 0, %s397
      %s399 = sphi 0, %s397
      %s400 = sphi 0, %s399
      %s414 = sphi 0, %s400
      %s420 = sphi 0, %s422
      %s423 = sphi 0, %s420
      %s424 = sphi 0, %s423
      %s440 = sphi 0, %s424
    $region4: #{vit_forward.1} parent=1 // loop_header_branch
      %30 = sbr.rel (%p28) target = $region8
    $region5: #{vit_forward.1} parent=1 // loop_body
      %s32 = ssub.s32 %s27, 1
      %s33 = ssub.s32 %s27, 2
      %s34 = sadd.s32 %s27, 1
      %s35 = ssub.s32 %s27, %s34
      %p36 = scmp.eq.s32.totalorder %s35, 0
      %s38 = sadd.s32 %s37, 1
      %s39 = scalar_select %p36, %s37, %s38
      %p42 = pneg %p36
      %p43 = scmp.eq.s32.totalorder %s27, 1
      %p44 = por %p42, %p43
      %p45 = scmp.ne.s32.totalorder %s37, %s40
      %p46 = scmp.eq.s32.totalorder %s27, 0
      %p47 = por %p45, %p46
      %p48 = scmp.ne.s32.totalorder %s37, %s40
      %p49 = scmp.eq.s32.totalorder %s32, 1
      %p50 = por %p48, %p49
      %p51 = scmp.ne.s32.totalorder %s40, %s41
      %p52 = scmp.eq.s32.totalorder %s32, 0
      %p53 = por %p51, %p52
      %p54 = scmp.ne.s32.totalorder %s40, %s41
      %p55 = scmp.eq.s32.totalorder %s33, 1
      %p56 = por %p54, %p55
      %p58 = scmp.ne.s32.totalorder %s41, %s57
      %p59 = scmp.eq.s32.totalorder %s33, 0
      %p60 = por %p58, %p59
      %s62 = sadd.s32 %s61, 1
      %p65 = scmp.eq.s32.totalorder %s27, 1
      %p66 = scmp.ne.s32.totalorder %s61, %s63
      %p67 = scmp.eq.s32.totalorder %s27, 0
      %p68 = por %p66, %p67
      %p69 = scmp.ne.s32.totalorder %s61, %s63
      %p70 = scmp.eq.s32.totalorder %s32, 1
      %p71 = por %p69, %p70
      %p72 = scmp.ne.s32.totalorder %s63, %s64
      %p73 = scmp.eq.s32.totalorder %s32, 0
      %p74 = por %p72, %p73
      %p75 = scmp.ne.s32.totalorder %s63, %s64
      %p76 = scmp.eq.s32.totalorder %s33, 1
      %p77 = por %p75, %p76
      %p79 = scmp.ne.s32.totalorder %s64, %s78
      %p80 = scmp.eq.s32.totalorder %s33, 0
      %p81 = por %p79, %p80
      %s83 = sadd.s32 %s82, 1
      %p86 = scmp.eq.s32.totalorder %s27, 1
      %p87 = scmp.ne.s32.totalorder %s82, %s84
      %p88 = scmp.eq.s32.totalorder %s27, 0
      %p89 = por %p87, %p88
      %p90 = scmp.ne.s32.totalorder %s82, %s84
      %p91 = scmp.eq.s32.totalorder %s32, 1
      %p92 = por %p90, %p91
      %p93 = scmp.ne.s32.totalorder %s84, %s85
      %p94 = scmp.eq.s32.totalorder %s32, 0
      %p95 = por %p93, %p94
      %p96 = scmp.ne.s32.totalorder %s84, %s85
      %p97 = scmp.eq.s32.totalorder %s33, 1
      %p98 = por %p96, %p97
      %p100 = scmp.ne.s32.totalorder %s85, %s99
      %p101 = scmp.eq.s32.totalorder %s33, 0
      %p102 = por %p100, %p101
      %s104 = sadd.s32 %s103, 1
      %p107 = scmp.eq.s32.totalorder %s27, 1
      %p108 = scmp.ne.s32.totalorder %s103, %s105
      %p109 = scmp.eq.s32.totalorder %s27, 0
      %p110 = por %p108, %p109
      %p111 = scmp.ne.s32.totalorder %s103, %s105
      %p112 = scmp.eq.s32.totalorder %s32, 1
      %p113 = por %p111, %p112
      %p114 = scmp.ne.s32.totalorder %s105, %s106
      %p115 = scmp.eq.s32.totalorder %s32, 0
      %p116 = por %p114, %p115
      %p117 = scmp.ne.s32.totalorder %s105, %s106
      %p118 = scmp.eq.s32.totalorder %s33, 1
      %p119 = por %p117, %p118
      %p121 = scmp.ne.s32.totalorder %s106, %s120
      %p122 = scmp.eq.s32.totalorder %s33, 0
      %p123 = por %p121, %p122
      %s125 = sadd.s32 %s124, 1
      %p128 = scmp.eq.s32.totalorder %s27, 1
      %p129 = scmp.ne.s32.totalorder %s124, %s126
      %p130 = scmp.eq.s32.totalorder %s27, 0
      %p131 = por %p129, %p130
      %p132 = scmp.ne.s32.totalorder %s124, %s126
      %p133 = scmp.eq.s32.totalorder %s32, 1
      %p134 = por %p132, %p133
      %p135 = scmp.ne.s32.totalorder %s126, %s127
      %p136 = scmp.eq.s32.totalorder %s32, 0
      %p137 = por %p135, %p136
      %p138 = scmp.ne.s32.totalorder %s126, %s127
      %p139 = scmp.eq.s32.totalorder %s33, 1
      %p140 = por %p138, %p139
      %p142 = scmp.ne.s32.totalorder %s127, %s141
      %p143 = scmp.eq.s32.totalorder %s33, 0
      %p144 = por %p142, %p143
      %s146 = sadd.s32 %s145, 1
      %p149 = scmp.eq.s32.totalorder %s27, 1
      %p150 = scmp.ne.s32.totalorder %s145, %s147
      %p151 = scmp.eq.s32.totalorder %s27, 0
      %p152 = por %p150, %p151
      %p153 = scmp.ne.s32.totalorder %s145, %s147
      %p154 = scmp.eq.s32.totalorder %s32, 1
      %p155 = por %p153, %p154
      %p156 = scmp.ne.s32.totalorder %s147, %s148
      %p157 = scmp.eq.s32.totalorder %s32, 0
      %p158 = por %p156, %p157
      %p159 = scmp.ne.s32.totalorder %s147, %s148
      %p160 = scmp.eq.s32.totalorder %s33, 1
      %p161 = por %p159, %p160
      %p163 = scmp.ne.s32.totalorder %s148, %s162
      %p164 = scmp.eq.s32.totalorder %s33, 0
      %p165 = por %p163, %p164
      %s167 = sadd.s32 %s166, 1
      %p170 = scmp.eq.s32.totalorder %s27, 1
      %p171 = scmp.ne.s32.totalorder %s166, %s168
      %p172 = scmp.eq.s32.totalorder %s27, 0
      %p173 = por %p171, %p172
      %p174 = scmp.ne.s32.totalorder %s166, %s168
      %p175 = scmp.eq.s32.totalorder %s32, 1
      %p176 = por %p174, %p175
      %p177 = scmp.ne.s32.totalorder %s168, %s169
      %p178 = scmp.eq.s32.totalorder %s32, 0
      %p179 = por %p177, %p178
      %p180 = scmp.ne.s32.totalorder %s168, %s169
      %p181 = scmp.eq.s32.totalorder %s33, 1
      %p182 = por %p180, %p181
      %p184 = scmp.ne.s32.totalorder %s169, %s183
      %p185 = scmp.eq.s32.totalorder %s33, 0
      %p186 = por %p184, %p185
      %s188 = sadd.s32 %s187, 1
      %p191 = scmp.eq.s32.totalorder %s27, 1
      %p192 = scmp.ne.s32.totalorder %s187, %s189
      %p193 = scmp.eq.s32.totalorder %s27, 0
      %p194 = por %p192, %p193
      %p195 = scmp.ne.s32.totalorder %s187, %s189
      %p196 = scmp.eq.s32.totalorder %s32, 1
      %p197 = por %p195, %p196
      %p198 = scmp.ne.s32.totalorder %s189, %s190
      %p199 = scmp.eq.s32.totalorder %s32, 0
      %p200 = por %p198, %p199
      %p201 = scmp.ne.s32.totalorder %s189, %s190
      %p202 = scmp.eq.s32.totalorder %s33, 1
      %p203 = por %p201, %p202
      %p205 = scmp.ne.s32.totalorder %s190, %s204
      %p206 = scmp.eq.s32.totalorder %s33, 0
      %p207 = por %p205, %p206
      %s209 = sadd.s32 %s208, 1
      %p212 = scmp.eq.s32.totalorder %s27, 1
      %p213 = scmp.ne.s32.totalorder %s208, %s210
      %p214 = scmp.eq.s32.totalorder %s27, 0
      %p215 = por %p213, %p214
      %p216 = scmp.ne.s32.totalorder %s208, %s210
      %p217 = scmp.eq.s32.totalorder %s32, 1
      %p218 = por %p216, %p217
      %p219 = scmp.ne.s32.totalorder %s210, %s211
      %p220 = scmp.eq.s32.totalorder %s32, 0
      %p221 = por %p219, %p220
      %p222 = scmp.ne.s32.totalorder %s210, %s211
      %p223 = scmp.eq.s32.totalorder %s33, 1
      %p224 = por %p222, %p223
      %p226 = scmp.ne.s32.totalorder %s211, %s225
      %p227 = scmp.eq.s32.totalorder %s33, 0
      %p228 = por %p226, %p227
      %s230 = sadd.s32 %s229, 1
      %p233 = scmp.eq.s32.totalorder %s27, 1
      %p234 = scmp.ne.s32.totalorder %s229, %s231
      %p235 = scmp.eq.s32.totalorder %s27, 0
      %p236 = por %p234, %p235
      %p237 = scmp.ne.s32.totalorder %s229, %s231
      %p238 = scmp.eq.s32.totalorder %s32, 1
      %p239 = por %p237, %p238
      %p240 = scmp.ne.s32.totalorder %s231, %s232
      %p241 = scmp.eq.s32.totalorder %s32, 0
      %p242 = por %p240, %p241
      %p243 = scmp.ne.s32.totalorder %s231, %s232
      %p244 = scmp.eq.s32.totalorder %s33, 1
      %p245 = por %p243, %p244
      %p247 = scmp.ne.s32.totalorder %s232, %s246
      %p248 = scmp.eq.s32.totalorder %s33, 0
      %p249 = por %p247, %p248
      %s251 = sadd.s32 %s250, 1
      %p254 = scmp.eq.s32.totalorder %s27, 1
      %p255 = scmp.ne.s32.totalorder %s250, %s252
      %p256 = scmp.eq.s32.totalorder %s27, 0
      %p257 = por %p255, %p256
      %p258 = scmp.ne.s32.totalorder %s250, %s252
      %p259 = scmp.eq.s32.totalorder %s32, 1
      %p260 = por %p258, %p259
      %p261 = scmp.ne.s32.totalorder %s252, %s253
      %p262 = scmp.eq.s32.totalorder %s32, 0
      %p263 = por %p261, %p262
      %p264 = scmp.ne.s32.totalorder %s252, %s253
      %p265 = scmp.eq.s32.totalorder %s33, 1
      %p266 = por %p264, %p265
      %p268 = scmp.ne.s32.totalorder %s253, %s267
      %p269 = scmp.eq.s32.totalorder %s33, 0
      %p270 = por %p268, %p269
      %s272 = sadd.s32 %s271, 1
      %p275 = scmp.eq.s32.totalorder %s27, 1
      %p276 = scmp.ne.s32.totalorder %s271, %s273
      %p277 = scmp.eq.s32.totalorder %s27, 0
      %p278 = por %p276, %p277
      %p279 = scmp.ne.s32.totalorder %s271, %s273
      %p280 = scmp.eq.s32.totalorder %s32, 1
      %p281 = por %p279, %p280
      %p282 = scmp.ne.s32.totalorder %s273, %s274
      %p283 = scmp.eq.s32.totalorder %s32, 0
      %p284 = por %p282, %p283
      %p285 = scmp.ne.s32.totalorder %s273, %s274
      %p286 = scmp.eq.s32.totalorder %s33, 1
      %p287 = por %p285, %p286
      %p289 = scmp.ne.s32.totalorder %s274, %s288
      %p290 = scmp.eq.s32.totalorder %s33, 0
      %p291 = por %p289, %p290
      %s293 = sadd.s32 %s292, 1
      %p296 = scmp.eq.s32.totalorder %s27, 1
      %p297 = scmp.ne.s32.totalorder %s292, %s294
      %p298 = scmp.eq.s32.totalorder %s27, 0
      %p299 = por %p297, %p298
      %p300 = scmp.ne.s32.totalorder %s292, %s294
      %p301 = scmp.eq.s32.totalorder %s32, 1
      %p302 = por %p300, %p301
      %p303 = scmp.ne.s32.totalorder %s294, %s295
      %p304 = scmp.eq.s32.totalorder %s32, 0
      %p305 = por %p303, %p304
      %p306 = scmp.ne.s32.totalorder %s294, %s295
      %p307 = scmp.eq.s32.totalorder %s33, 1
      %p308 = por %p306, %p307
      %p310 = scmp.ne.s32.totalorder %s295, %s309
      %p311 = scmp.eq.s32.totalorder %s33, 0
      %p312 = por %p310, %p311
      %s314 = sadd.s32 %s313, 1
      %p317 = scmp.eq.s32.totalorder %s27, 1
      %p318 = scmp.ne.s32.totalorder %s313, %s315
      %p319 = scmp.eq.s32.totalorder %s27, 0
      %p320 = por %p318, %p319
      %p321 = scmp.ne.s32.totalorder %s313, %s315
      %p322 = scmp.eq.s32.totalorder %s32, 1
      %p323 = por %p321, %p322
      %p324 = scmp.ne.s32.totalorder %s315, %s316
      %p325 = scmp.eq.s32.totalorder %s32, 0
      %p326 = por %p324, %p325
      %p327 = scmp.ne.s32.totalorder %s315, %s316
      %p328 = scmp.eq.s32.totalorder %s33, 1
      %p329 = por %p327, %p328
      %p331 = scmp.ne.s32.totalorder %s316, %s330
      %p332 = scmp.eq.s32.totalorder %s33, 0
      %p333 = por %p331, %p332
      %s335 = sadd.s32 %s334, 1
      %p338 = scmp.eq.s32.totalorder %s27, 1
      %p339 = scmp.ne.s32.totalorder %s334, %s336
      %p340 = scmp.eq.s32.totalorder %s27, 0
      %p341 = por %p339, %p340
      %p342 = scmp.ne.s32.totalorder %s334, %s336
      %p343 = scmp.eq.s32.totalorder %s32, 1
      %p344 = por %p342, %p343
      %p345 = scmp.ne.s32.totalorder %s336, %s337
      %p346 = scmp.eq.s32.totalorder %s32, 0
      %p347 = por %p345, %p346
      %p348 = scmp.ne.s32.totalorder %s336, %s337
      %p349 = scmp.eq.s32.totalorder %s33, 1
      %p350 = por %p348, %p349
      %p352 = scmp.ne.s32.totalorder %s337, %s351
      %p353 = scmp.eq.s32.totalorder %s33, 0
      %p354 = por %p352, %p353
      %s356 = sadd.s32 %s355, 1
      %p359 = scmp.eq.s32.totalorder %s27, 1
      %p360 = scmp.ne.s32.totalorder %s355, %s357
      %p361 = scmp.eq.s32.totalorder %s27, 0
      %p362 = por %p360, %p361
      %p363 = scmp.ne.s32.totalorder %s355, %s357
      %p364 = scmp.eq.s32.totalorder %s32, 1
      %p365 = por %p363, %p364
      %p366 = scmp.ne.s32.totalorder %s357, %s358
      %p367 = scmp.eq.s32.totalorder %s32, 0
      %p368 = por %p366, %p367
      %p369 = scmp.ne.s32.totalorder %s357, %s358
      %p370 = scmp.eq.s32.totalorder %s33, 1
      %p371 = por %p369, %p370
      %p373 = scmp.ne.s32.totalorder %s358, %s372
      %p374 = scmp.eq.s32.totalorder %s33, 0
      %p375 = por %p373, %p374
      %s377 = sadd.s32 %s376, 1
      %p380 = scmp.eq.s32.totalorder %s27, 1
      %p381 = scmp.ne.s32.totalorder %s376, %s378
      %p382 = scmp.eq.s32.totalorder %s27, 0
      %p383 = por %p381, %p382
      %p384 = scmp.ne.s32.totalorder %s376, %s378
      %p385 = scmp.eq.s32.totalorder %s32, 1
      %p386 = por %p384, %p385
      %p387 = scmp.ne.s32.totalorder %s378, %s379
      %p388 = scmp.eq.s32.totalorder %s32, 0
      %p389 = por %p387, %p388
      %p390 = scmp.ne.s32.totalorder %s378, %s379
      %p391 = scmp.eq.s32.totalorder %s33, 1
      %p392 = por %p390, %p391
      %p394 = scmp.ne.s32.totalorder %s379, %s393
      %p395 = scmp.eq.s32.totalorder %s33, 0
      %p396 = por %p394, %p395
      %s398 = sadd.s32 %s397, 1
      %p401 = scmp.eq.s32.totalorder %s27, 1
      %p402 = scmp.ne.s32.totalorder %s397, %s399
      %p403 = scmp.eq.s32.totalorder %s27, 0
      %p404 = por %p402, %p403
      %p405 = scmp.ne.s32.totalorder %s397, %s399
      %p406 = scmp.eq.s32.totalorder %s32, 1
      %p407 = por %p405, %p406
      %p408 = scmp.ne.s32.totalorder %s399, %s400
      %p409 = scmp.eq.s32.totalorder %s32, 0
      %p410 = por %p408, %p409
      %p411 = scmp.ne.s32.totalorder %s399, %s400
      %p412 = scmp.eq.s32.totalorder %s33, 1
      %p413 = por %p411, %p412
      %p415 = scmp.ne.s32.totalorder %s400, %s414
      %p416 = scmp.eq.s32.totalorder %s33, 0
      %p417 = por %p415, %p416
      %s418 = ssub.s32 %s27, %s34
      %p419 = scmp.eq.s32.totalorder %s418, 0
      %s421 = sadd.s32 %s420, 1
      %s422 = scalar_select %p419, %s420, %s421
      %p425 = pneg %p419
      %p426 = scmp.eq.s32.totalorder %s27, 1
      %p427 = por %p425, %p426
      %p428 = scmp.ne.s32.totalorder %s420, %s423
      %p429 = scmp.eq.s32.totalorder %s27, 0
      %p430 = por %p428, %p429
      %p431 = scmp.ne.s32.totalorder %s420, %s423
      %p432 = scmp.eq.s32.totalorder %s32, 1
      %p433 = por %p431, %p432
      %p434 = scmp.ne.s32.totalorder %s423, %s424
      %p435 = scmp.eq.s32.totalorder %s32, 0
      %p436 = por %p434, %p435
      %p437 = scmp.ne.s32.totalorder %s423, %s424
      %p438 = scmp.eq.s32.totalorder %s33, 1
      %p439 = por %p437, %p438
      %p441 = scmp.ne.s32.totalorder %s424, %s440
      %p442 = scmp.eq.s32.totalorder %s33, 0
      %p443 = por %p441, %p442
      %p444 = scmp.le.s32.totalorder 1, %s27
      %p445 = scmp.lt.s32.totalorder %s27, 3
      %p446 = pnand %p444, %p445
      %p447 = pneg %p446
      // Predicated region
      $region9: #{vit_forward.1} parent=5 // pred_check
        _
      $region10: #{vit_forward.1} parent=5 // pred_check_branch
        %449 = sbr.rel (%p446) target = $region12
      $region11: #{vit_forward.1} parent=5 // pred_region
        %s450 = ssub.s32 %s27, 1
        // Predicated region
        $region13: #{vit_forward.1} parent=11 // pred_check
          %p451 = pneg %p74
        $region14: #{vit_forward.1} parent=11 // pred_check_branch
          %453 = sbr.rel (%p451) target = $region16
        $region15: #{vit_forward.1} parent=11 // pred_region
          _
        $region16: #{vit_forward.1} parent=11 // pred_fallthru
          _
        // Predicated region
        $region17: #{vit_forward.1} parent=11 // pred_check
          %p454 = pneg %p95
        $region18: #{vit_forward.1} parent=11 // pred_check_branch
          %456 = sbr.rel (%p454) target = $region20
        $region19: #{vit_forward.1} parent=11 // pred_region
          _
        $region20: #{vit_forward.1} parent=11 // pred_fallthru
          _
        // Predicated region
        $region21: #{vit_forward.1} parent=11 // pred_check
          %p457 = pneg %p116
        $region22: #{vit_forward.1} parent=11 // pred_check_branch
          %459 = sbr.rel (%p457) target = $region24
        $region23: #{vit_forward.1} parent=11 // pred_region
          _
        $region24: #{vit_forward.1} parent=11 // pred_fallthru
          _
        // Predicated region
        $region25: #{vit_forward.1} parent=11 // pred_check
          %p460 = pneg %p137
        $region26: #{vit_forward.1} parent=11 // pred_check_branch
          %462 = sbr.rel (%p460) target = $region28
        $region27: #{vit_forward.1} parent=11 // pred_region
          _
        $region28: #{vit_forward.1} parent=11 // pred_fallthru
          _
        // Predicated region
        $region29: #{vit_forward.1} parent=11 // pred_check
          %p463 = pneg %p158
        $region30: #{vit_forward.1} parent=11 // pred_check_branch
          %465 = sbr.rel (%p463) target = $region32
        $region31: #{vit_forward.1} parent=11 // pred_region
          _
        $region32: #{vit_forward.1} parent=11 // pred_fallthru
          _
        // Predicated region
        $region33: #{vit_forward.1} parent=11 // pred_check
          %p466 = pneg %p179
        $region34: #{vit_forward.1} parent=11 // pred_check_branch
          %468 = sbr.rel (%p466) target = $region36
        $region35: #{vit_forward.1} parent=11 // pred_region
          _
        $region36: #{vit_forward.1} parent=11 // pred_fallthru
          _
        // Predicated region
        $region37: #{vit_forward.1} parent=11 // pred_check
          %p469 = pneg %p200
        $region38: #{vit_forward.1} parent=11 // pred_check_branch
          %471 = sbr.rel (%p469) target = $region40
        $region39: #{vit_forward.1} parent=11 // pred_region
          _
        $region40: #{vit_forward.1} parent=11 // pred_fallthru
          _
        // Predicated region
        $region41: #{vit_forward.1} parent=11 // pred_check
          %p472 = pneg %p221
        $region42: #{vit_forward.1} parent=11 // pred_check_branch
          %474 = sbr.rel (%p472) target = $region44
        $region43: #{vit_forward.1} parent=11 // pred_region
          _
        $region44: #{vit_forward.1} parent=11 // pred_fallthru
          _
        // Predicated region
        $region45: #{vit_forward.1} parent=11 // pred_check
          %p475 = pneg %p242
        $region46: #{vit_forward.1} parent=11 // pred_check_branch
          %477 = sbr.rel (%p475) target = $region48
        $region47: #{vit_forward.1} parent=11 // pred_region
          _
        $region48: #{vit_forward.1} parent=11 // pred_fallthru
          _
        // Predicated region
        $region49: #{vit_forward.1} parent=11 // pred_check
          %p478 = pneg %p263
        $region50: #{vit_forward.1} parent=11 // pred_check_branch
          %480 = sbr.rel (%p478) target = $region52
        $region51: #{vit_forward.1} parent=11 // pred_region
          _
        $region52: #{vit_forward.1} parent=11 // pred_fallthru
          _
        // Predicated region
        $region53: #{vit_forward.1} parent=11 // pred_check
          %p481 = pneg %p284
        $region54: #{vit_forward.1} parent=11 // pred_check_branch
          %483 = sbr.rel (%p481) target = $region56
        $region55: #{vit_forward.1} parent=11 // pred_region
          _
        $region56: #{vit_forward.1} parent=11 // pred_fallthru
          _
        // Predicated region
        $region57: #{vit_forward.1} parent=11 // pred_check
          %p484 = pneg %p305
        $region58: #{vit_forward.1} parent=11 // pred_check_branch
          %486 = sbr.rel (%p484) target = $region60
        $region59: #{vit_forward.1} parent=11 // pred_region
          _
        $region60: #{vit_forward.1} parent=11 // pred_fallthru
          _
        // Predicated region
        $region61: #{vit_forward.1} parent=11 // pred_check
          %p487 = pneg %p326
        $region62: #{vit_forward.1} parent=11 // pred_check_branch
          %489 = sbr.rel (%p487) target = $region64
        $region63: #{vit_forward.1} parent=11 // pred_region
          _
        $region64: #{vit_forward.1} parent=11 // pred_fallthru
          _
        // Predicated region
        $region65: #{vit_forward.1} parent=11 // pred_check
          %p490 = pneg %p347
        $region66: #{vit_forward.1} parent=11 // pred_check_branch
          %492 = sbr.rel (%p490) target = $region68
        $region67: #{vit_forward.1} parent=11 // pred_region
          _
        $region68: #{vit_forward.1} parent=11 // pred_fallthru
          _
        // Predicated region
        $region69: #{vit_forward.1} parent=11 // pred_check
          %p493 = pneg %p368
        $region70: #{vit_forward.1} parent=11 // pred_check_branch
          %495 = sbr.rel (%p493) target = $region72
        $region71: #{vit_forward.1} parent=11 // pred_region
          _
        $region72: #{vit_forward.1} parent=11 // pred_fallthru
          _
        // Predicated region
        $region73: #{vit_forward.1} parent=11 // pred_check
          %p496 = pneg %p389
        $region74: #{vit_forward.1} parent=11 // pred_check_branch
          %498 = sbr.rel (%p496) target = $region76
        $region75: #{vit_forward.1} parent=11 // pred_region
          _
        $region76: #{vit_forward.1} parent=11 // pred_fallthru
          _
        // Predicated region
        $region77: #{vit_forward.1} parent=11 // pred_check
          %p499 = pneg %p410
        $region78: #{vit_forward.1} parent=11 // pred_check_branch
          %501 = sbr.rel (%p499) target = $region80
        $region79: #{vit_forward.1} parent=11 // pred_region
          _
        $region80: #{vit_forward.1} parent=11 // pred_fallthru
          _
      $region12: #{vit_forward.1} parent=5 // pred_fallthru
        _
      %p502 = scmp.lt.s32.totalorder %s27, 2
      // Predicated region
      $region81: #{vit_forward.1} parent=5 // pred_check
        %p503 = pneg %p502
      $region82: #{vit_forward.1} parent=5 // pred_check_branch
        %505 = sbr.rel (%p503) target = $region84
      $region83: #{vit_forward.1} parent=5 // pred_region
        // Predicated region
        $region85: #{vit_forward.1} parent=83 // pred_check
          %p506 = pneg %p47
        $region86: #{vit_forward.1} parent=83 // pred_check_branch
          %508 = sbr.rel (%p506) target = $region88
        $region87: #{vit_forward.1} parent=83 // pred_region
          %p509 = scmp.lt.s32.totalorder %s27, 1
          %s510 = scalar_select %p509, %s27, 1
          %s511 = smul.addr %s510, 8
          %s512 = smul.addr %s511, 4
          %s513 = scalar_lea.vmem %s0, %s512
        $region88: #{vit_forward.1} parent=83 // pred_fallthru
          _
      $region84: #{vit_forward.1} parent=5 // pred_fallthru
        _
      %p514 = scmp.le.s32.totalorder 1, %s27
      %p515 = scmp.lt.s32.totalorder %s27, 3
      %p516 = pnand %p514, %p515
      %p517 = pneg %p516
      // Predicated region
      $region89: #{vit_forward.1} parent=5 // pred_check
        _
      $region90: #{vit_forward.1} parent=5 // pred_check_branch
        %519 = sbr.rel (%p516) target = $region92
      $region91: #{vit_forward.1} parent=5 // pred_region
        %s520 = ssub.s32 %s27, 1
        %p521 = scmp.lt.s32.totalorder %s32, 1
        %s522 = scalar_select %p521, %s32, 1
        %s523 = smul.addr %s522, 8
        %s524 = smul.addr %s523, 4
        %s525 = scalar_lea.vmem %s0, %s524
        %p526 = pneg %p53
        %p527 = pneg %p50
        %p528 = pneg %p74
        %p529 = pneg %p71
        %p530 = pneg %p95
        %p531 = pneg %p92
        %p532 = pneg %p116
        %p533 = pneg %p113
        %p534 = pneg %p137
        %p535 = pneg %p134
        %p536 = pneg %p158
        %p537 = pneg %p155
        %p538 = pneg %p179
        %p539 = pneg %p176
        %p540 = pneg %p200
        %p541 = pneg %p197
        %p542 = pneg %p221
        %p543 = pneg %p218
        %p544 = pneg %p242
        %p545 = pneg %p239
        %p546 = pneg %p263
        %p547 = pneg %p260
        %p548 = pneg %p284
        %p549 = pneg %p281
        %p550 = pneg %p305
        %p551 = pneg %p302
        %p552 = pneg %p326
        %p553 = pneg %p323
        %p554 = pneg %p347
        %p555 = pneg %p344
        %p556 = pneg %p368
        %p557 = pneg %p365
        %p558 = pneg %p389
        %p559 = pneg %p386
        %p560 = pneg %p410
        %p561 = pneg %p407
        %p562 = pneg %p436
        %p563 = pneg %p433
        %s564 = sand.u32 %s423, 1
        %s565 = scalar_lea.sflag [#allocation3], %s564
        %s566 = sand.u32 %s423, 1
        %s567 = scalar_lea.vmem [#allocation2], %s566
        %p568 = scmp.lt.s32.totalorder %s32, 1
        %s569 = scalar_select %p568, %s32, 1
        %s570 = smul.addr %s569, 8
        %s571 = smul.addr %s570, 4
        %s572 = scalar_lea.vmem %s0, %s571
        %v574 = vld [vmem:[%s572] sm:$0xff]
        %v575 = vld [vmem:[%s572 + $0x8] sm:$0xff]
        %v576 = vld [vmem:[%s572 + $0x10] sm:$0xff]
        %v577 = vld [vmem:[%s572 + $0x18] sm:$0xff]
        %v578 = vld [vmem:[%s1] sm:$0xf]
        %v579 = vld [vmem:[%s1 + $0x4] sm:$0xf]
        %v580 = vld [vmem:[%s1 + $0x8] sm:$0xf]
        %v581 = vld [vmem:[%s1 + $0xc] sm:$0xf]
        %v582 = vld [vmem:[%s1 + $0x10] sm:$0xf]
        %v583 = vld [vmem:[%s1 + $0x14] sm:$0xf]
        %v584 = vld [vmem:[%s1 + $0x18] sm:$0xf]
        %v585 = vld [vmem:[%s1 + $0x1c] sm:$0xf]
        %v586 = vld [vmem:[%s1 + $0x20] sm:$0xf]
        %v587 = vld [vmem:[%s1 + $0x24] sm:$0xf]
        %v588 = vld [vmem:[%s1 + $0x28] sm:$0xf]
        %v589 = vld [vmem:[%s1 + $0x2c] sm:$0xf]
        %v590 = vld [vmem:[%s1 + $0x30] sm:$0xf]
        %v591 = vld [vmem:[%s1 + $0x34] sm:$0xf]
        %v592 = vld [vmem:[%s1 + $0x38] sm:$0xf]
        %v593 = vld [vmem:[%s1 + $0x3c] sm:$0xf]
        %v594 = vld [vmem:[%s1 + $0x40] sm:$0xf]
        %v595 = vld [vmem:[%s1 + $0x44] sm:$0xf]
        %v596 = vld [vmem:[%s1 + $0x48] sm:$0xf]
        %v597 = vld [vmem:[%s1 + $0x4c] sm:$0xf]
        %v598 = vld [vmem:[%s1 + $0x50] sm:$0xf]
        %v599 = vld [vmem:[%s1 + $0x54] sm:$0xf]
        %v600 = vld [vmem:[%s1 + $0x58] sm:$0xf]
        %v601 = vld [vmem:[%s1 + $0x5c] sm:$0xf]
        %v602 = vld [vmem:[%s2] sm:$0xff]
        %v603 = vld [vmem:[%s2 + $0x8] sm:$0xff]
        %v604 = vld [vmem:[%s2 + $0x10] sm:$0xff]
        %v605 = vld [vmem:[%s2 + $0x18] sm:$0xff]
        %v610 = vunpack.c.l.b16 %v574
        %v611 = vunpack.c.h.b16 %v574
        %v612 = vunpack.c.l.b16 %v575
        %v613 = vunpack.c.h.b16 %v575
        %v614 = vunpack.c.l.b16 %v576
        %v615 = vunpack.c.h.b16 %v576
        %v616 = vunpack.c.l.b16 %v577
        %v617 = vunpack.c.h.b16 %v577
        %v618 = vpack.c.b16 %v612, %v610
        %v619 = vpack.c.b16 %v613, %v611
        %v620 = vpack.c.b16 %v616, %v614
        %v621 = vpack.c.b16 %v617, %v615
        %v648 = vunpack.c.l.b16 %v578
        %v649 = vunpack.c.l.b16 %v579
        %v650 = vunpack.c.l.b16 %v580
        %v651 = vunpack.c.l.b16 %v581
        %v652 = vunpack.c.l.b16 %v582
        %v653 = vunpack.c.l.b16 %v583
        %v654 = vunpack.c.l.b16 %v584
        %v655 = vunpack.c.l.b16 %v585
        %v656 = vunpack.c.l.b16 %v586
        %v657 = vunpack.c.l.b16 %v587
        %v658 = vunpack.c.l.b16 %v588
        %v659 = vunpack.c.l.b16 %v589
        %v660 = vunpack.c.l.b16 %v590
        %v661 = vunpack.c.l.b16 %v591
        %v662 = vunpack.c.l.b16 %v592
        %v663 = vunpack.c.l.b16 %v593
        %v664 = vunpack.c.l.b16 %v594
        %v665 = vunpack.c.l.b16 %v595
        %v666 = vunpack.c.l.b16 %v596
        %v667 = vunpack.c.l.b16 %v597
        %v668 = vunpack.c.l.b16 %v598
        %v669 = vunpack.c.l.b16 %v599
        %v670 = vunpack.c.l.b16 %v600
        %v671 = vunpack.c.l.b16 %v601
        %v672 = vpack.c.b16 %v649, %v648
        %v673 = vpack.c.b16 %v651, %v650
        %v674 = vpack.c.b16 %v653, %v652
        %v675 = vpack.c.b16 %v655, %v654
        %v676 = vpack.c.b16 %v657, %v656
        %v677 = vpack.c.b16 %v659, %v658
        %v678 = vpack.c.b16 %v661, %v660
        %v679 = vpack.c.b16 %v663, %v662
        %v680 = vpack.c.b16 %v665, %v664
        %v681 = vpack.c.b16 %v667, %v666
        %v682 = vpack.c.b16 %v669, %v668
        %v683 = vpack.c.b16 %v671, %v670
        %vm696 = vcmask 523264
        %v698 = vsel %vm696, %v619, 0
        %v701 = vsel %vm696, %v621, 0
        %703 = vmatprep.subr.bf16.mxu0 0
        %704 = vmatpush1.bf16.msra.mxu0 %v679
        %705 = vmatprep.subr.bf16.mxu0 0
        %706 = vmatpush1.bf16.msra.mxu0 %v678
        %707 = vmatprep.subr.bf16.mxu0 0
        %708 = vmatpush1.bf16.msra.mxu0 %v677
        %709 = vmatprep.subr.bf16.mxu0 0
        %710 = vmatpush1.bf16.msra.mxu0 %v676
        %711 = vmatprep.subr.bf16.mxu0 0
        %712 = vmatpush1.bf16.msra.mxu0 %v675
        %713 = vmatprep.subr.bf16.mxu0 0
        %714 = vmatpush1.bf16.msra.mxu0 %v674
        %715 = vmatprep.subr.bf16.mxu0 0
        %716 = vmatpush1.bf16.msra.mxu0 %v673
        %717 = vmatprep.subr.bf16.mxu0 0
        %718 = vmatpush1.bf16.msra.mxu0 %v672
        %719 = vmatprep.subr.bf16.mxu0 0
        %720 = vmatpush2.bf16.msra.mxu0 0
        %721 = vmatprep.subr.bf16.mxu0 0
        %722 = vmatpush2.bf16.msra.mxu0 0
        %723 = vmatprep.subr.bf16.mxu0 0
        %724 = vmatpush2.bf16.msra.mxu0 0
        %725 = vmatprep.subr.bf16.mxu0 0
        %726 = vmatpush2.bf16.msra.mxu0 0
        %727 = vmatprep.subr.bf16.mxu0 0
        %728 = vmatpush2.bf16.msra.mxu0 %v683
        %729 = vmatprep.subr.bf16.mxu0 0
        %730 = vmatpush2.bf16.msra.mxu0 %v682
        %731 = vmatprep.subr.bf16.mxu0 0
        %732 = vmatpush2.bf16.msra.mxu0 %v681
        %733 = vmatprep.subr.bf16.mxu0 0
        %734 = vmatpush2.bf16.msra.mxu0 %v680
        %735 = vmatprep.mubr.bf16.mxu0 %v698
        %736 = vmatmul.mubr.bf16.gmra.mxu0 %v618
        %v737 = vpop.f32.mrf.mxu0
        %v738 = vadd.f32 %v602, %v737
        %v739 = vpop.f32.mrf.mxu0
        %v740 = vpop.f32.mrf.mxu0
        %v741 = vadd.f32 %v603, %v740
        %v742 = vpop.f32.mrf.mxu0
        %743 = vmatprep.mubr.bf16.mxu0 %v701
        %744 = vmatmul.mubr.bf16.gmra.mxu0 %v620
        %v745 = vpop.f32.mrf.mxu0
        %v746 = vadd.f32 %v604, %v745
        %v747 = vpop.f32.mrf.mxu0
        %v748 = vpop.f32.mrf.mxu0
        %v749 = vadd.f32 %v605, %v748
        %v750 = vpop.f32.mrf.mxu0
        %751 = vdwg.mxu0
        %v752 = vlaneseq
        %v753 = vand.u32 %v752, 127
        %vm754 = vcmp.lt.s32.totalorder %v753, 17
        %v755 = vsel %vm754, 0.0, -1e+30
        %v756 = vld [vmem:[%s3] sm:$0x1]
        %v757 = vld [vmem:[%s4] sm:$0x1]
        %758 = vadd.xlane.f32.xlu0 %v738
        %v759 = vpop.xlane.xlu0 %758
        %760 = vadd.xlane.f32.xlu0 %v741
        %v761 = vpop.xlane.xlu0 %760
        %762 = vadd.xlane.f32.xlu0 %v746
        %v763 = vpop.xlane.xlu0 %762
        %764 = vadd.xlane.f32.xlu0 %v749
        %v765 = vpop.xlane.xlu0 %764
        %v766 = vrcp.pop 128.0
        %v767 = vmul.f32 %v759, %v766
        %v768 = vmul.f32 %v761, %v766
        %v769 = vmul.f32 %v763, %v766
        %v770 = vmul.f32 %v765, %v766
        %v771 = vsub.f32 %v738, %v767
        %v772 = vsub.f32 %v741, %v768
        %v773 = vsub.f32 %v746, %v769
        %v774 = vsub.f32 %v749, %v770
        %v775 = vmul.f32 %v771, %v771
        %v776 = vmul.f32 %v772, %v772
        %v777 = vmul.f32 %v773, %v773
        %v778 = vmul.f32 %v774, %v774
        %779 = vadd.xlane.f32.xlu0 %v775
        %v780 = vpop.xlane.xlu0 %779
        %781 = vadd.xlane.f32.xlu0 %v776
        %v782 = vpop.xlane.xlu0 %781
        %783 = vadd.xlane.f32.xlu0 %v777
        %v784 = vpop.xlane.xlu0 %783
        %785 = vadd.xlane.f32.xlu0 %v778
        %v786 = vpop.xlane.xlu0 %785
        %v787 = vmul.f32 %v780, %v766
        %v788 = vmul.f32 %v782, %v766
        %v789 = vmul.f32 %v784, %v766
        %v790 = vmul.f32 %v786, %v766
        %v791 = vadd.f32 %v787, 1e-05
        %v792 = vadd.f32 %v788, 1e-05
        %v793 = vadd.f32 %v789, 1e-05
        %v794 = vadd.f32 %v790, 1e-05
        %v795 = vrsqrt.pop %v791
        %v796 = vrsqrt.pop %v792
        %v797 = vrsqrt.pop %v793
        %v798 = vrsqrt.pop %v794
        %v799 = vmul.f32 %v771, %v795
        %v800 = vmul.f32 %v772, %v796
        %v801 = vmul.f32 %v773, %v797
        %v802 = vmul.f32 %v774, %v798
        %v804 = vlaneseq
        %v805 = vshrl.u32 %v804, 7
        %v806 = vsub.s32 0, %v805
        %v807 = vrot.slane %v756, %v806
        %v809 = vmul.f32 %v799, %v807
        %v810 = vmul.f32 %v800, %v807
        %v811 = vmul.f32 %v801, %v807
        %v812 = vmul.f32 %v802, %v807
        %v814 = vlaneseq
        %v815 = vshrl.u32 %v814, 7
        %v816 = vsub.s32 0, %v815
        %v817 = vrot.slane %v757, %v816
        %v819 = vadd.f32 %v809, %v817
        %v820 = vadd.f32 %v810, %v817
        %v821 = vadd.f32 %v811, %v817
        %v822 = vadd.f32 %v812, %v817
        %v823 = vpack.c.bf16 %v820, %v819
        %v824 = vpack.c.bf16 %v822, %v821
        %v825 = vld [vmem:[%s5] sm:$0xff]
        %v826 = vld [vmem:[%s5 + $0x8] sm:$0xf]
        %v827 = vld [vmem:[%s5 + $0xc] sm:$0xff]
        %v828 = vld [vmem:[%s5 + $0x14] sm:$0xf]
        %v829 = vld [vmem:[%s5 + $0x18] sm:$0xff]
        %v830 = vld [vmem:[%s5 + $0x20] sm:$0xf]
        %v831 = vld [vmem:[%s5 + $0x24] sm:$0xff]
        %v832 = vld [vmem:[%s5 + $0x2c] sm:$0xf]
        %v833 = vld [vmem:[%s5 + $0x30] sm:$0xff]
        %v834 = vld [vmem:[%s5 + $0x38] sm:$0xf]
        %v835 = vld [vmem:[%s5 + $0x3c] sm:$0xff]
        %v836 = vld [vmem:[%s5 + $0x44] sm:$0xf]
        %v837 = vld [vmem:[%s5 + $0x48] sm:$0xff]
        %v838 = vld [vmem:[%s5 + $0x50] sm:$0xf]
        %v839 = vld [vmem:[%s5 + $0x54] sm:$0xff]
        %v840 = vld [vmem:[%s5 + $0x5c] sm:$0xf]
        %v841 = vld [vmem:[%s5 + $0x60] sm:$0xff]
        %v842 = vld [vmem:[%s5 + $0x68] sm:$0xf]
        %v843 = vld [vmem:[%s5 + $0x6c] sm:$0xff]
        %v844 = vld [vmem:[%s5 + $0x74] sm:$0xf]
        %v845 = vld [vmem:[%s5 + $0x78] sm:$0xff]
        %v846 = vld [vmem:[%s5 + $0x80] sm:$0xf]
        %v847 = vld [vmem:[%s5 + $0x84] sm:$0xff]
        %v848 = vld [vmem:[%s5 + $0x8c] sm:$0xf]
        %v849 = vld [vmem:[%s5 + $0x90] sm:$0xff]
        %v850 = vld [vmem:[%s5 + $0x98] sm:$0xf]
        %v851 = vld [vmem:[%s5 + $0x9c] sm:$0xff]
        %v852 = vld [vmem:[%s5 + $0xa4] sm:$0xf]
        %v853 = vld [vmem:[%s5 + $0xa8] sm:$0xff]
        %v854 = vld [vmem:[%s5 + $0xb0] sm:$0xf]
        %v855 = vld [vmem:[%s5 + $0xb4] sm:$0xff]
        %v856 = vld [vmem:[%s5 + $0xbc] sm:$0xf]
        %v889 = vunpack.c.l.b16 %v825
        %v890 = vunpack.c.h.b16 %v825
        %v891 = vunpack.c.l.b16 %v826
        %v892 = vunpack.c.l.b16 %v827
        %v893 = vunpack.c.h.b16 %v827
        %v894 = vunpack.c.l.b16 %v828
        %v895 = vunpack.c.l.b16 %v829
        %v896 = vunpack.c.h.b16 %v829
        %v897 = vunpack.c.l.b16 %v830
        %v898 = vunpack.c.l.b16 %v831
        %v899 = vunpack.c.h.b16 %v831
        %v900 = vunpack.c.l.b16 %v832
        %v901 = vunpack.c.l.b16 %v833
        %v902 = vunpack.c.h.b16 %v833
        %v903 = vunpack.c.l.b16 %v834
        %v904 = vunpack.c.l.b16 %v835
        %v905 = vunpack.c.h.b16 %v835
        %v906 = vunpack.c.l.b16 %v836
        %v907 = vunpack.c.l.b16 %v837
        %v908 = vunpack.c.h.b16 %v837
        %v909 = vunpack.c.l.b16 %v838
        %v910 = vunpack.c.l.b16 %v839
        %v911 = vunpack.c.h.b16 %v839
        %v912 = vunpack.c.l.b16 %v840
        %v913 = vunpack.c.l.b16 %v841
        %v914 = vunpack.c.h.b16 %v841
        %v915 = vunpack.c.l.b16 %v842
        %v916 = vunpack.c.l.b16 %v843
        %v917 = vunpack.c.h.b16 %v843
        %v918 = vunpack.c.l.b16 %v844
        %v919 = vunpack.c.l.b16 %v845
        %v920 = vunpack.c.h.b16 %v845
        %v921 = vunpack.c.l.b16 %v846
        %v922 = vunpack.c.l.b16 %v847
        %v923 = vunpack.c.h.b16 %v847
        %v924 = vunpack.c.l.b16 %v848
        %v925 = vunpack.c.l.b16 %v849
        %v926 = vunpack.c.h.b16 %v849
        %v927 = vunpack.c.l.b16 %v850
        %v928 = vunpack.c.l.b16 %v851
        %v929 = vunpack.c.h.b16 %v851
        %v930 = vunpack.c.l.b16 %v852
        %v931 = vunpack.c.l.b16 %v853
        %v932 = vunpack.c.h.b16 %v853
        %v933 = vunpack.c.l.b16 %v854
        %v934 = vunpack.c.l.b16 %v855
        %v935 = vunpack.c.h.b16 %v855
        %v936 = vunpack.c.l.b16 %v856
        %v937 = vpack.c.b16 %v892, %v889
        %v938 = vpack.c.b16 %v893, %v890
        %v939 = vpack.c.b16 %v894, %v891
        %v940 = vpack.c.b16 %v898, %v895
        %v941 = vpack.c.b16 %v899, %v896
        %v942 = vpack.c.b16 %v900, %v897
        %v943 = vpack.c.b16 %v904, %v901
        %v944 = vpack.c.b16 %v905, %v902
        %v945 = vpack.c.b16 %v906, %v903
        %v946 = vpack.c.b16 %v910, %v907
        %v947 = vpack.c.b16 %v911, %v908
        %v948 = vpack.c.b16 %v912, %v909
        %v949 = vpack.c.b16 %v916, %v913
        %v950 = vpack.c.b16 %v917, %v914
        %v951 = vpack.c.b16 %v918, %v915
        %v952 = vpack.c.b16 %v922, %v919
        %v953 = vpack.c.b16 %v923, %v920
        %v954 = vpack.c.b16 %v924, %v921
        %v955 = vpack.c.b16 %v928, %v925
        %v956 = vpack.c.b16 %v929, %v926
        %v957 = vpack.c.b16 %v930, %v927
        %v958 = vpack.c.b16 %v934, %v931
        %v959 = vpack.c.b16 %v935, %v932
        %v960 = vpack.c.b16 %v936, %v933
        %985 = vmatprep.subr.bf16.mxu0 %v959
        %986 = vmatpush1.bf16.msra.mxu0 %v958
        %987 = vmatprep.subr.bf16.mxu0 %v956
        %988 = vmatpush1.bf16.msra.mxu0 %v955
        %989 = vmatprep.subr.bf16.mxu0 %v953
        %990 = vmatpush1.bf16.msra.mxu0 %v952
        %991 = vmatprep.subr.bf16.mxu0 %v950
        %992 = vmatpush1.bf16.msra.mxu0 %v949
        %993 = vmatprep.subr.bf16.mxu0 %v947
        %994 = vmatpush1.bf16.msra.mxu0 %v946
        %995 = vmatprep.subr.bf16.mxu0 %v944
        %996 = vmatpush1.bf16.msra.mxu0 %v943
        %997 = vmatprep.subr.bf16.mxu0 %v941
        %998 = vmatpush1.bf16.msra.mxu0 %v940
        %999 = vmatprep.subr.bf16.mxu0 %v938
        %1000 = vmatpush1.bf16.msra.mxu0 %v937
        %1001 = vmatprep.subr.bf16.mxu0 0
        %1002 = vmatpush2.bf16.msra.mxu0 0
        %1003 = vmatprep.subr.bf16.mxu0 0
        %1004 = vmatpush2.bf16.msra.mxu0 0
        %1005 = vmatprep.subr.bf16.mxu0 0
        %1006 = vmatpush2.bf16.msra.mxu0 0
        %1007 = vmatprep.subr.bf16.mxu0 0
        %1008 = vmatpush2.bf16.msra.mxu0 0
        %1009 = vmatprep.subr.bf16.mxu0 0
        %1010 = vmatpush2.bf16.msra.mxu0 0
        %1011 = vmatprep.subr.bf16.mxu0 0
        %1012 = vmatpush2.bf16.msra.mxu0 0
        %1013 = vmatprep.subr.bf16.mxu0 0
        %1014 = vmatpush2.bf16.msra.mxu0 0
        %1015 = vmatprep.subr.bf16.mxu0 0
        %1016 = vmatpush2.bf16.msra.mxu0 0
        %1017 = vmatprep.mubr.bf16.mxu0 0
        %1018 = vmatmul.mubr.bf16.gmra.mxu0 %v823
        %v1019 = vpop.f32.mrf.mxu0
        %v1020 = vadd.f32 0.0, %v1019
        %v1021 = vpop.f32.mrf.mxu0
        %v1022 = vadd.f32 0.0, %v1021
        %v1023 = vpop.f32.mrf.mxu0
        %v1024 = vadd.f32 0.0, %v1023
        %v1025 = vpop.f32.mrf.mxu0
        %v1026 = vadd.f32 0.0, %v1025
        %1027 = vmatprep.mubr.bf16.mxu0 0
        %1028 = vmatmul.mubr.bf16.gmra.mxu0 %v824
        %v1029 = vpop.f32.mrf.mxu0
        %v1030 = vadd.f32 0.0, %v1029
        %v1031 = vpop.f32.mrf.mxu0
        %v1032 = vadd.f32 0.0, %v1031
        %v1033 = vpop.f32.mrf.mxu0
        %v1034 = vadd.f32 0.0, %v1033
        %v1035 = vpop.f32.mrf.mxu0
        %v1036 = vadd.f32 0.0, %v1035
        %1037 = vdwg.mxu0
        %1038 = vmatprep.subr.bf16.mxu0 0
        %1039 = vmatpush1.bf16.msra.mxu0 %v960
        %1040 = vmatprep.subr.bf16.mxu0 0
        %1041 = vmatpush1.bf16.msra.mxu0 %v957
        %1042 = vmatprep.subr.bf16.mxu0 0
        %1043 = vmatpush1.bf16.msra.mxu0 %v954
        %1044 = vmatprep.subr.bf16.mxu0 0
        %1045 = vmatpush1.bf16.msra.mxu0 %v951
        %1046 = vmatprep.subr.bf16.mxu0 0
        %1047 = vmatpush1.bf16.msra.mxu0 %v948
        %1048 = vmatprep.subr.bf16.mxu0 0
        %1049 = vmatpush1.bf16.msra.mxu0 %v945
        %1050 = vmatprep.subr.bf16.mxu0 0
        %1051 = vmatpush1.bf16.msra.mxu0 %v942
        %1052 = vmatprep.subr.bf16.mxu0 0
        %1053 = vmatpush1.bf16.msra.mxu0 %v939
        %1054 = vmatprep.subr.bf16.mxu0 0
        %1055 = vmatpush2.bf16.msra.mxu0 0
        %1056 = vmatprep.subr.bf16.mxu0 0
        %1057 = vmatpush2.bf16.msra.mxu0 0
        %1058 = vmatprep.subr.bf16.mxu0 0
        %1059 = vmatpush2.bf16.msra.mxu0 0
        %1060 = vmatprep.subr.bf16.mxu0 0
        %1061 = vmatpush2.bf16.msra.mxu0 0
        %1062 = vmatprep.subr.bf16.mxu0 0
        %1063 = vmatpush2.bf16.msra.mxu0 0
        %1064 = vmatprep.subr.bf16.mxu0 0
        %1065 = vmatpush2.bf16.msra.mxu0 0
        %1066 = vmatprep.subr.bf16.mxu0 0
        %1067 = vmatpush2.bf16.msra.mxu0 0
        %1068 = vmatprep.subr.bf16.mxu0 0
        %1069 = vmatpush2.bf16.msra.mxu0 0
        %1070 = vmatprep.mubr.bf16.mxu0 0
        %1071 = vmatmul.mubr.bf16.gmra.mxu0 %v823
        %v1072 = vpop.f32.mrf.mxu0
        %v1073 = vadd.f32 0.0, %v1072
        %v1074 = vpop.f32.mrf.mxu0
        %v1075 = vpop.f32.mrf.mxu0
        %v1076 = vadd.f32 0.0, %v1075
        %v1077 = vpop.f32.mrf.mxu0
        %1078 = vmatprep.mubr.bf16.mxu0 0
        %1079 = vmatmul.mubr.bf16.gmra.mxu0 %v824
        %v1080 = vpop.f32.mrf.mxu0
        %v1081 = vadd.f32 0.0, %v1080
        %v1082 = vpop.f32.mrf.mxu0
        %v1083 = vpop.f32.mrf.mxu0
        %v1084 = vadd.f32 0.0, %v1083
        %v1085 = vpop.f32.mrf.mxu0
        %1086 = vdwg.mxu0
        %v1087 = vpack.c.bf16 %v1024, %v1020
        %v1088 = vpack.c.bf16 %v1026, %v1022
        %v1089 = vpack.c.bf16 %v1076, %v1073
        %v1090 = vpack.c.bf16 %v1034, %v1030
        %v1091 = vpack.c.bf16 %v1036, %v1032
        %v1092 = vpack.c.bf16 %v1084, %v1081
        %vm1093 = vcmask 261120
        %v1095 = vsel %vm1093, %v1087, 0
        %v1098 = vsel %vm1093, %v1090, 0
        %v1101 = vsel %vm1093, %v1088, 0
        %v1104 = vsel %vm1093, %v1091, 0
        %1106 = vmatprep.subr.bf16.mxu0 0
        %1107 = vmatpush1.bf16.xpose.msra.mxu0 0
        %1108 = vmatprep.subr.bf16.mxu0 0
        %1109 = vmatpush1.bf16.xpose.msra.mxu0 0
        %1110 = vmatprep.subr.bf16.mxu0 0
        %1111 = vmatpush1.bf16.xpose.msra.mxu0 0
        %1112 = vmatprep.subr.bf16.mxu0 0
        %1113 = vmatpush1.bf16.xpose.msra.mxu0 0
        %1114 = vmatprep.subr.bf16.mxu0 0
        %1115 = vmatpush1.bf16.xpose.msra.mxu0 0
        %1116 = vmatprep.subr.bf16.mxu0 0
        %1117 = vmatpush1.bf16.xpose.msra.mxu0 0
        %1118 = vmatprep.subr.bf16.mxu0 0
        %1119 = vmatpush1.bf16.xpose.msra.mxu0 %v1104
        %1120 = vmatprep.subr.bf16.mxu0 0
        %1121 = vmatpush1.bf16.xpose.msra.mxu0 %v1101
        %1122 = vmatprep.subr.bf16.mxu0 0
        %1123 = vmatpush2.bf16.xpose.msra.mxu0 0
        %1124 = vmatprep.subr.bf16.mxu0 0
        %1125 = vmatpush2.bf16.xpose.msra.mxu0 0
        %1126 = vmatprep.subr.bf16.mxu0 0
        %1127 = vmatpush2.bf16.xpose.msra.mxu0 0
        %1128 = vmatprep.subr.bf16.mxu0 0
        %1129 = vmatpush2.bf16.xpose.msra.mxu0 0
        %1130 = vmatprep.subr.bf16.mxu0 0
        %1131 = vmatpush2.bf16.xpose.msra.mxu0 0
        %1132 = vmatprep.subr.bf16.mxu0 0
        %1133 = vmatpush2.bf16.xpose.msra.mxu0 0
        %1134 = vmatprep.subr.bf16.mxu0 0
        %1135 = vmatpush2.bf16.xpose.msra.mxu0 0
        %1136 = vmatprep.subr.bf16.mxu0 0
        %1137 = vmatpush2.bf16.xpose.msra.mxu0 0
        %1138 = vmatprep.mubr.bf16.mxu0 0
        %1139 = vmatmul.mubr.bf16.gmra.mxu0 %v1095
        %v1140 = vpop.f32.mrf.mxu0
        %v1141 = vadd.f32 %v755, %v1140
        %v1142 = vpop.f32.mrf.mxu0
        %v1143 = vpop.f32.mrf.mxu0
        %v1144 = vadd.f32 %v755, %v1143
        %v1145 = vpop.f32.mrf.mxu0
        %1146 = vmatprep.mubr.bf16.mxu0 0
        %1147 = vmatmul.mubr.bf16.gmra.mxu0 %v1098
        %v1148 = vpop.f32.mrf.mxu0
        %v1149 = vadd.f32 %v755, %v1148
        %v1150 = vpop.f32.mrf.mxu0
        %v1151 = vpop.f32.mrf.mxu0
        %v1152 = vadd.f32 %v755, %v1151
        %v1153 = vpop.f32.mrf.mxu0
        %1154 = vdwg.mxu0
        %v1155 = vsel %vm1093, %v1141, -inf
        %1156 = vmax.xlane.f32.xlu0 %v1155
        %v1157 = vpop.xlane.xlu0 %1156
        %v1158 = vsel %vm1093, %v1144, -inf
        %1159 = vmax.xlane.f32.xlu0 %v1158
        %v1160 = vpop.xlane.xlu0 %1159
        %v1161 = vsel %vm1093, %v1149, -inf
        %1162 = vmax.xlane.f32.xlu0 %v1161
        %v1163 = vpop.xlane.xlu0 %1162
        %v1164 = vsel %vm1093, %v1152, -inf
        %1165 = vmax.xlane.f32.xlu0 %v1164
        %v1166 = vpop.xlane.xlu0 %1165
        %v1167 = vsub.f32 %v1141, %v1157
        %v1168 = vsub.f32 %v1144, %v1160
        %v1169 = vsub.f32 %v1149, %v1163
        %v1170 = vsub.f32 %v1152, %v1166
        %v1171 = vmul.f32 %v1167, 1.442695
        %v1172 = vpow.pop %v1171
        %v1173 = vmul.f32 %v1168, 1.442695
        %v1174 = vpow.pop %v1173
        %v1175 = vmul.f32 %v1169, 1.442695
        %v1176 = vpow.pop %v1175
        %v1177 = vmul.f32 %v1170, 1.442695
        %v1178 = vpow.pop %v1177
        %v1179 = vsel %vm1093, %v1172, 0.0
        %1180 = vadd.xlane.f32.xlu0 %v1179
        %v1181 = vpop.xlane.xlu0 %1180
        %v1182 = vsel %vm1093, %v1174, 0.0
        %1183 = vadd.xlane.f32.xlu0 %v1182
        %v1184 = vpop.xlane.xlu0 %1183
        %v1185 = vsel %vm1093, %v1176, 0.0
        %1186 = vadd.xlane.f32.xlu0 %v1185
        %v1187 = vpop.xlane.xlu0 %1186
        %v1188 = vsel %vm1093, %v1178, 0.0
        %1189 = vadd.xlane.f32.xlu0 %v1188
        %v1190 = vpop.xlane.xlu0 %1189
        %v1191 = vrcp.pop %v1181
        %v1192 = vrcp.pop %v1184
        %v1193 = vrcp.pop %v1187
        %v1194 = vrcp.pop %v1190
        %v1195 = vmul.f32 %v1172, %v1191
        %v1196 = vmul.f32 %v1174, %v1192
        %v1197 = vmul.f32 %v1176, %v1193
        %v1198 = vmul.f32 %v1178, %v1194
        %v1199 = vpack.c.bf16 %v1196, %v1195
        %v1200 = vpack.c.bf16 %v1198, %v1197
        %v1202 = vsel %vm1093, %v1199, 0
        %v1205 = vsel %vm1093, %v1200, 0
        %1207 = vmatprep.subr.bf16.mxu0 0
        %1208 = vmatpush1.bf16.msra.mxu0 0
        %1209 = vmatprep.subr.bf16.mxu0 0
        %1210 = vmatpush1.bf16.msra.mxu0 0
        %1211 = vmatprep.subr.bf16.mxu0 0
        %1212 = vmatpush1.bf16.msra.mxu0 0
        %1213 = vmatprep.subr.bf16.mxu0 0
        %1214 = vmatpush1.bf16.msra.mxu0 0
        %1215 = vmatprep.subr.bf16.mxu0 0
        %1216 = vmatpush1.bf16.msra.mxu0 0
        %1217 = vmatprep.subr.bf16.mxu0 0
        %1218 = vmatpush1.bf16.msra.mxu0 0
        %1219 = vmatprep.subr.bf16.mxu0 0
        %1220 = vmatpush1.bf16.msra.mxu0 %v1092
        %1221 = vmatprep.subr.bf16.mxu0 0
        %1222 = vmatpush1.bf16.msra.mxu0 %v1089
        %1223 = vmatprep.subr.bf16.mxu0 0
        %1224 = vmatpush2.bf16.msra.mxu0 0
        %1225 = vmatprep.subr.bf16.mxu0 0
        %1226 = vmatpush2.bf16.msra.mxu0 0
        %1227 = vmatprep.subr.bf16.mxu0 0
        %1228 = vmatpush2.bf16.msra.mxu0 0
        %1229 = vmatprep.subr.bf16.mxu0 0
        %1230 = vmatpush2.bf16.msra.mxu0 0
        %1231 = vmatprep.subr.bf16.mxu0 0
        %1232 = vmatpush2.bf16.msra.mxu0 0
        %1233 = vmatprep.subr.bf16.mxu0 0
        %1234 = vmatpush2.bf16.msra.mxu0 0
        %1235 = vmatprep.subr.bf16.mxu0 0
        %1236 = vmatpush2.bf16.msra.mxu0 0
        %1237 = vmatprep.subr.bf16.mxu0 0
        %1238 = vmatpush2.bf16.msra.mxu0 0
        %1239 = vmatprep.mubr.bf16.mxu0 0
        %1240 = vmatmul.mubr.bf16.gmra.mxu0 %v1202
        %v1241 = vpop.f32.mrf.mxu0
        %v1242 = vadd.f32 0.0, %v1241
        %v1243 = vpop.f32.mrf.mxu0
        %v1244 = vpop.f32.mrf.mxu0
        %v1245 = vadd.f32 0.0, %v1244
        %v1246 = vpop.f32.mrf.mxu0
        %1247 = vmatprep.mubr.bf16.mxu0 0
        %1248 = vmatmul.mubr.bf16.gmra.mxu0 %v1205
        %v1249 = vpop.f32.mrf.mxu0
        %v1250 = vadd.f32 0.0, %v1249
        %v1251 = vpop.f32.mrf.mxu0
        %v1252 = vpop.f32.mrf.mxu0
        %v1253 = vadd.f32 0.0, %v1252
        %v1254 = vpop.f32.mrf.mxu0
        %1255 = vdwg.mxu0
        %1258 = vrot.lane.b32.xlu0 %v1087, 96
        %v1259 = vpop.permute.xlu0 %1258
        %1260 = vrot.lane.b32.xlu0 %v1090, 96
        %v1261 = vpop.permute.xlu0 %1260
        %1264 = vrot.lane.b32.xlu0 %v1088, 96
        %v1265 = vpop.permute.xlu0 %1264
        %1266 = vrot.lane.b32.xlu0 %v1091, 96
        %v1267 = vpop.permute.xlu0 %1266
        %v1269 = vsel %vm1093, %v1259, 0
        %v1272 = vsel %vm1093, %v1261, 0
        %v1275 = vsel %vm1093, %v1265, 0
        %v1278 = vsel %vm1093, %v1267, 0
        %1280 = vmatprep.subr.bf16.mxu0 0
        %1281 = vmatpush1.bf16.xpose.msra.mxu0 0
        %1282 = vmatprep.subr.bf16.mxu0 0
        %1283 = vmatpush1.bf16.xpose.msra.mxu0 0
        %1284 = vmatprep.subr.bf16.mxu0 0
        %1285 = vmatpush1.bf16.xpose.msra.mxu0 0
        %1286 = vmatprep.subr.bf16.mxu0 0
        %1287 = vmatpush1.bf16.xpose.msra.mxu0 0
        %1288 = vmatprep.subr.bf16.mxu0 0
        %1289 = vmatpush1.bf16.xpose.msra.mxu0 0
        %1290 = vmatprep.subr.bf16.mxu0 0
        %1291 = vmatpush1.bf16.xpose.msra.mxu0 0
        %1292 = vmatprep.subr.bf16.mxu0 0
        %1293 = vmatpush1.bf16.xpose.msra.mxu0 %v1278
        %1294 = vmatprep.subr.bf16.mxu0 0
        %1295 = vmatpush1.bf16.xpose.msra.mxu0 %v1275
        %1296 = vmatprep.subr.bf16.mxu0 0
        %1297 = vmatpush2.bf16.xpose.msra.mxu0 0
        %1298 = vmatprep.subr.bf16.mxu0 0
        %1299 = vmatpush2.bf16.xpose.msra.mxu0 0
        %1300 = vmatprep.subr.bf16.mxu0 0
        %1301 = vmatpush2.bf16.xpose.msra.mxu0 0
        %1302 = vmatprep.subr.bf16.mxu0 0
        %1303 = vmatpush2.bf16.xpose.msra.mxu0 0
        %1304 = vmatprep.subr.bf16.mxu0 0
        %1305 = vmatpush2.bf16.xpose.msra.mxu0 0
        %1306 = vmatprep.subr.bf16.mxu0 0
        %1307 = vmatpush2.bf16.xpose.msra.mxu0 0
        %1308 = vmatprep.subr.bf16.mxu0 0
        %1309 = vmatpush2.bf16.xpose.msra.mxu0 0
        %1310 = vmatprep.subr.bf16.mxu0 0
        %1311 = vmatpush2.bf16.xpose.msra.mxu0 0
        %1312 = vmatprep.mubr.bf16.mxu0 0
        %1313 = vmatmul.mubr.bf16.gmra.mxu0 %v1269
        %v1314 = vpop.f32.mrf.mxu0
        %v1315 = vadd.f32 %v755, %v1314
        %v1316 = vpop.f32.mrf.mxu0
        %v1317 = vpop.f32.mrf.mxu0
        %v1318 = vadd.f32 %v755, %v1317
        %v1319 = vpop.f32.mrf.mxu0
        %1320 = vmatprep.mubr.bf16.mxu0 0
        %1321 = vmatmul.mubr.bf16.gmra.mxu0 %v1272
        %v1322 = vpop.f32.mrf.mxu0
        %v1323 = vadd.f32 %v755, %v1322
        %v1324 = vpop.f32.mrf.mxu0
        %v1325 = vpop.f32.mrf.mxu0
        %v1326 = vadd.f32 %v755, %v1325
        %v1327 = vpop.f32.mrf.mxu0
        %1328 = vdwg.mxu0
        %v1329 = vsel %vm1093, %v1315, -inf
        %1330 = vmax.xlane.f32.xlu0 %v1329
        %v1331 = vpop.xlane.xlu0 %1330
        %v1332 = vsel %vm1093, %v1318, -inf
        %1333 = vmax.xlane.f32.xlu0 %v1332
        %v1334 = vpop.xlane.xlu0 %1333
        %v1335 = vsel %vm1093, %v1323, -inf
        %1336 = vmax.xlane.f32.xlu0 %v1335
        %v1337 = vpop.xlane.xlu0 %1336
        %v1338 = vsel %vm1093, %v1326, -inf
        %1339 = vmax.xlane.f32.xlu0 %v1338
        %v1340 = vpop.xlane.xlu0 %1339
        %v1341 = vsub.f32 %v1315, %v1331
        %v1342 = vsub.f32 %v1318, %v1334
        %v1343 = vsub.f32 %v1323, %v1337
        %v1344 = vsub.f32 %v1326, %v1340
        %v1345 = vmul.f32 %v1341, 1.442695
        %v1346 = vpow.pop %v1345
        %v1347 = vmul.f32 %v1342, 1.442695
        %v1348 = vpow.pop %v1347
        %v1349 = vmul.f32 %v1343, 1.442695
        %v1350 = vpow.pop %v1349
        %v1351 = vmul.f32 %v1344, 1.442695
        %v1352 = vpow.pop %v1351
        %v1353 = vsel %vm1093, %v1346, 0.0
        %1354 = vadd.xlane.f32.xlu0 %v1353
        %v1355 = vpop.xlane.xlu0 %1354
        %v1356 = vsel %vm1093, %v1348, 0.0
        %1357 = vadd.xlane.f32.xlu0 %v1356
        %v1358 = vpop.xlane.xlu0 %1357
        %v1359 = vsel %vm1093, %v1350, 0.0
        %1360 = vadd.xlane.f32.xlu0 %v1359
        %v1361 = vpop.xlane.xlu0 %1360
        %v1362 = vsel %vm1093, %v1352, 0.0
        %1363 = vadd.xlane.f32.xlu0 %v1362
        %v1364 = vpop.xlane.xlu0 %1363
        %v1365 = vrcp.pop %v1355
        %v1366 = vrcp.pop %v1358
        %v1367 = vrcp.pop %v1361
        %v1368 = vrcp.pop %v1364
        %v1369 = vmul.f32 %v1346, %v1365
        %v1370 = vmul.f32 %v1348, %v1366
        %v1371 = vmul.f32 %v1350, %v1367
        %v1372 = vmul.f32 %v1352, %v1368
        %v1373 = vpack.c.bf16 %v1370, %v1369
        %v1374 = vpack.c.bf16 %v1372, %v1371
        %1377 = vrot.lane.b32.xlu0 %v1089, 96
        %v1378 = vpop.permute.xlu0 %1377
        %1379 = vrot.lane.b32.xlu0 %v1092, 96
        %v1380 = vpop.permute.xlu0 %1379
        %v1384 = vsel %vm1093, %v1373, 0
        %v1387 = vsel %vm1093, %v1374, 0
        %1389 = vmatprep.subr.bf16.mxu0 0
        %1390 = vmatpush1.bf16.msra.mxu0 0
        %1391 = vmatprep.subr.bf16.mxu0 0
        %1392 = vmatpush1.bf16.msra.mxu0 0
        %1393 = vmatprep.subr.bf16.mxu0 0
        %1394 = vmatpush1.bf16.msra.mxu0 0
        %1395 = vmatprep.subr.bf16.mxu0 0
        %1396 = vmatpush1.bf16.msra.mxu0 0
        %1397 = vmatprep.subr.bf16.mxu0 0
        %1398 = vmatpush1.bf16.msra.mxu0 0
        %1399 = vmatprep.subr.bf16.mxu0 0
        %1400 = vmatpush1.bf16.msra.mxu0 0
        %1401 = vmatprep.subr.bf16.mxu0 0
        %1402 = vmatpush1.bf16.msra.mxu0 %v1380
        %1403 = vmatprep.subr.bf16.mxu0 0
        %1404 = vmatpush1.bf16.msra.mxu0 %v1378
        %1405 = vmatprep.subr.bf16.mxu0 0
        %1406 = vmatpush2.bf16.msra.mxu0 0
        %1407 = vmatprep.subr.bf16.mxu0 0
        %1408 = vmatpush2.bf16.msra.mxu0 0
        %1409 = vmatprep.subr.bf16.mxu0 0
        %1410 = vmatpush2.bf16.msra.mxu0 0
        %1411 = vmatprep.subr.bf16.mxu0 0
        %1412 = vmatpush2.bf16.msra.mxu0 0
        %1413 = vmatprep.subr.bf16.mxu0 0
        %1414 = vmatpush2.bf16.msra.mxu0 0
        %1415 = vmatprep.subr.bf16.mxu0 0
        %1416 = vmatpush2.bf16.msra.mxu0 0
        %1417 = vmatprep.subr.bf16.mxu0 0
        %1418 = vmatpush2.bf16.msra.mxu0 0
        %1419 = vmatprep.subr.bf16.mxu0 0
        %1420 = vmatpush2.bf16.msra.mxu0 0
        %1421 = vmatprep.mubr.bf16.mxu0 0
        %1422 = vmatmul.mubr.bf16.gmra.mxu0 %v1384
        %v1423 = vpop.f32.mrf.mxu0
        %v1424 = vadd.f32 0.0, %v1423
        %v1425 = vpop.f32.mrf.mxu0
        %v1426 = vpop.f32.mrf.mxu0
        %v1427 = vadd.f32 0.0, %v1426
        %v1428 = vpop.f32.mrf.mxu0
        %1429 = vmatprep.mubr.bf16.mxu0 0
        %1430 = vmatmul.mubr.bf16.gmra.mxu0 %v1387
        %v1431 = vpop.f32.mrf.mxu0
        %v1432 = vadd.f32 0.0, %v1431
        %v1433 = vpop.f32.mrf.mxu0
        %v1434 = vpop.f32.mrf.mxu0
        %v1435 = vadd.f32 0.0, %v1434
        %v1436 = vpop.f32.mrf.mxu0
        %1437 = vdwg.mxu0
        %1438 = vrot.lane.b32.xlu0 %v1087, 64
        %v1439 = vpop.permute.xlu0 %1438
        %1440 = vrot.lane.b32.xlu0 %v1090, 64
        %v1441 = vpop.permute.xlu0 %1440
        %1442 = vrot.lane.b32.xlu0 %v1088, 64
        %v1443 = vpop.permute.xlu0 %1442
        %1444 = vrot.lane.b32.xlu0 %v1091, 64
        %v1445 = vpop.permute.xlu0 %1444
        %v1447 = vsel %vm1093, %v1439, 0
        %v1450 = vsel %vm1093, %v1441, 0
        %v1453 = vsel %vm1093, %v1443, 0
        %v1456 = vsel %vm1093, %v1445, 0
        %1458 = vmatprep.subr.bf16.mxu0 0
        %1459 = vmatpush1.bf16.xpose.msra.mxu0 0
        %1460 = vmatprep.subr.bf16.mxu0 0
        %1461 = vmatpush1.bf16.xpose.msra.mxu0 0
        %1462 = vmatprep.subr.bf16.mxu0 0
        %1463 = vmatpush1.bf16.xpose.msra.mxu0 0
        %1464 = vmatprep.subr.bf16.mxu0 0
        %1465 = vmatpush1.bf16.xpose.msra.mxu0 0
        %1466 = vmatprep.subr.bf16.mxu0 0
        %1467 = vmatpush1.bf16.xpose.msra.mxu0 0
        %1468 = vmatprep.subr.bf16.mxu0 0
        %1469 = vmatpush1.bf16.xpose.msra.mxu0 0
        %1470 = vmatprep.subr.bf16.mxu0 0
        %1471 = vmatpush1.bf16.xpose.msra.mxu0 %v1456
        %1472 = vmatprep.subr.bf16.mxu0 0
        %1473 = vmatpush1.bf16.xpose.msra.mxu0 %v1453
        %1474 = vmatprep.subr.bf16.mxu0 0
        %1475 = vmatpush2.bf16.xpose.msra.mxu0 0
        %1476 = vmatprep.subr.bf16.mxu0 0
        %1477 = vmatpush2.bf16.xpose.msra.mxu0 0
        %1478 = vmatprep.subr.bf16.mxu0 0
        %1479 = vmatpush2.bf16.xpose.msra.mxu0 0
        %1480 = vmatprep.subr.bf16.mxu0 0
        %1481 = vmatpush2.bf16.xpose.msra.mxu0 0
        %1482 = vmatprep.subr.bf16.mxu0 0
        %1483 = vmatpush2.bf16.xpose.msra.mxu0 0
        %1484 = vmatprep.subr.bf16.mxu0 0
        %1485 = vmatpush2.bf16.xpose.msra.mxu0 0
        %1486 = vmatprep.subr.bf16.mxu0 0
        %1487 = vmatpush2.bf16.xpose.msra.mxu0 0
        %1488 = vmatprep.subr.bf16.mxu0 0
        %1489 = vmatpush2.bf16.xpose.msra.mxu0 0
        %1490 = vmatprep.mubr.bf16.mxu0 0
        %1491 = vmatmul.mubr.bf16.gmra.mxu0 %v1447
        %v1492 = vpop.f32.mrf.mxu0
        %v1493 = vadd.f32 %v755, %v1492
        %v1494 = vpop.f32.mrf.mxu0
        %v1495 = vpop.f32.mrf.mxu0
        %v1496 = vadd.f32 %v755, %v1495
        %v1497 = vpop.f32.mrf.mxu0
        %1498 = vmatprep.mubr.bf16.mxu0 0
        %1499 = vmatmul.mubr.bf16.gmra.mxu0 %v1450
        %v1500 = vpop.f32.mrf.mxu0
        %v1501 = vadd.f32 %v755, %v1500
        %v1502 = vpop.f32.mrf.mxu0
        %v1503 = vpop.f32.mrf.mxu0
        %v1504 = vadd.f32 %v755, %v1503
        %v1505 = vpop.f32.mrf.mxu0
        %1506 = vdwg.mxu0
        %v1507 = vsel %vm1093, %v1493, -inf
        %1508 = vmax.xlane.f32.xlu0 %v1507
        %v1509 = vpop.xlane.xlu0 %1508
        %v1510 = vsel %vm1093, %v1496, -inf
        %1511 = vmax.xlane.f32.xlu0 %v1510
        %v1512 = vpop.xlane.xlu0 %1511
        %v1513 = vsel %vm1093, %v1501, -inf
        %1514 = vmax.xlane.f32.xlu0 %v1513
        %v1515 = vpop.xlane.xlu0 %1514
        %v1516 = vsel %vm1093, %v1504, -inf
        %1517 = vmax.xlane.f32.xlu0 %v1516
        %v1518 = vpop.xlane.xlu0 %1517
        %v1519 = vsub.f32 %v1493, %v1509
        %v1520 = vsub.f32 %v1496, %v1512
        %v1521 = vsub.f32 %v1501, %v1515
        %v1522 = vsub.f32 %v1504, %v1518
        %v1523 = vmul.f32 %v1519, 1.442695
        %v1524 = vpow.pop %v1523
        %v1525 = vmul.f32 %v1520, 1.442695
        %v1526 = vpow.pop %v1525
        %v1527 = vmul.f32 %v1521, 1.442695
        %v1528 = vpow.pop %v1527
        %v1529 = vmul.f32 %v1522, 1.442695
        %v1530 = vpow.pop %v1529
        %v1531 = vsel %vm1093, %v1524, 0.0
        %1532 = vadd.xlane.f32.xlu0 %v1531
        %v1533 = vpop.xlane.xlu0 %1532
        %v1534 = vsel %vm1093, %v1526, 0.0
        %1535 = vadd.xlane.f32.xlu0 %v1534
        %v1536 = vpop.xlane.xlu0 %1535
        %v1537 = vsel %vm1093, %v1528, 0.0
        %1538 = vadd.xlane.f32.xlu0 %v1537
        %v1539 = vpop.xlane.xlu0 %1538
        %v1540 = vsel %vm1093, %v1530, 0.0
        %1541 = vadd.xlane.f32.xlu0 %v1540
        %v1542 = vpop.xlane.xlu0 %1541
        %v1543 = vrcp.pop %v1533
        %v1544 = vrcp.pop %v1536
        %v1545 = vrcp.pop %v1539
        %v1546 = vrcp.pop %v1542
        %v1547 = vmul.f32 %v1524, %v1543
        %v1548 = vmul.f32 %v1526, %v1544
        %v1549 = vmul.f32 %v1528, %v1545
        %v1550 = vmul.f32 %v1530, %v1546
        %v1551 = vpack.c.bf16 %v1548, %v1547
        %v1552 = vpack.c.bf16 %v1550, %v1549
        %1553 = vrot.lane.b32.xlu0 %v1089, 64
        %v1554 = vpop.permute.xlu0 %1553
        %1555 = vrot.lane.b32.xlu0 %v1092, 64
        %v1556 = vpop.permute.xlu0 %1555
        %v1560 = vsel %vm1093, %v1551, 0
        %v1563 = vsel %vm1093, %v1552, 0
        %1565 = vmatprep.subr.bf16.mxu0 0
        %1566 = vmatpush1.bf16.msra.mxu0 0
        %1567 = vmatprep.subr.bf16.mxu0 0
        %1568 = vmatpush1.bf16.msra.mxu0 0
        %1569 = vmatprep.subr.bf16.mxu0 0
        %1570 = vmatpush1.bf16.msra.mxu0 0
        %1571 = vmatprep.subr.bf16.mxu0 0
        %1572 = vmatpush1.bf16.msra.mxu0 0
        %1573 = vmatprep.subr.bf16.mxu0 0
        %1574 = vmatpush1.bf16.msra.mxu0 0
        %1575 = vmatprep.subr.bf16.mxu0 0
        %1576 = vmatpush1.bf16.msra.mxu0 0
        %1577 = vmatprep.subr.bf16.mxu0 0
        %1578 = vmatpush1.bf16.msra.mxu0 %v1556
        %1579 = vmatprep.subr.bf16.mxu0 0
        %1580 = vmatpush1.bf16.msra.mxu0 %v1554
        %1581 = vmatprep.subr.bf16.mxu0 0
        %1582 = vmatpush2.bf16.msra.mxu0 0
        %1583 = vmatprep.subr.bf16.mxu0 0
        %1584 = vmatpush2.bf16.msra.mxu0 0
        %1585 = vmatprep.subr.bf16.mxu0 0
        %1586 = vmatpush2.bf16.msra.mxu0 0
        %1587 = vmatprep.subr.bf16.mxu0 0
        %1588 = vmatpush2.bf16.msra.mxu0 0
        %1589 = vmatprep.subr.bf16.mxu0 0
        %1590 = vmatpush2.bf16.msra.mxu0 0
        %1591 = vmatprep.subr.bf16.mxu0 0
        %1592 = vmatpush2.bf16.msra.mxu0 0
        %1593 = vmatprep.subr.bf16.mxu0 0
        %1594 = vmatpush2.bf16.msra.mxu0 0
        %1595 = vmatprep.subr.bf16.mxu0 0
        %1596 = vmatpush2.bf16.msra.mxu0 0
        %1597 = vmatprep.mubr.bf16.mxu0 0
        %1598 = vmatmul.mubr.bf16.gmra.mxu0 %v1560
        %v1599 = vpop.f32.mrf.mxu0
        %v1600 = vadd.f32 0.0, %v1599
        %v1601 = vpop.f32.mrf.mxu0
        %v1602 = vpop.f32.mrf.mxu0
        %v1603 = vadd.f32 0.0, %v1602
        %v1604 = vpop.f32.mrf.mxu0
        %1605 = vmatprep.mubr.bf16.mxu0 0
        %1606 = vmatmul.mubr.bf16.gmra.mxu0 %v1563
        %v1607 = vpop.f32.mrf.mxu0
        %v1608 = vadd.f32 0.0, %v1607
        %v1609 = vpop.f32.mrf.mxu0
        %v1610 = vpop.f32.mrf.mxu0
        %v1611 = vadd.f32 0.0, %v1610
        %v1612 = vpop.f32.mrf.mxu0
        %1613 = vdwg.mxu0
        %1614 = vrot.lane.b32.xlu0 %v1087, 32
        %v1615 = vpop.permute.xlu0 %1614
        %1616 = vrot.lane.b32.xlu0 %v1090, 32
        %v1617 = vpop.permute.xlu0 %1616
        %1618 = vrot.lane.b32.xlu0 %v1088, 32
        %v1619 = vpop.permute.xlu0 %1618
        %1620 = vrot.lane.b32.xlu0 %v1091, 32
        %v1621 = vpop.permute.xlu0 %1620
        %v1623 = vsel %vm1093, %v1615, 0
        %v1626 = vsel %vm1093, %v1617, 0
        %v1629 = vsel %vm1093, %v1619, 0
        %v1632 = vsel %vm1093, %v1621, 0
        %1634 = vmatprep.subr.bf16.mxu0 0
        %1635 = vmatpush1.bf16.xpose.msra.mxu0 0
        %1636 = vmatprep.subr.bf16.mxu0 0
        %1637 = vmatpush1.bf16.xpose.msra.mxu0 0
        %1638 = vmatprep.subr.bf16.mxu0 0
        %1639 = vmatpush1.bf16.xpose.msra.mxu0 0
        %1640 = vmatprep.subr.bf16.mxu0 0
        %1641 = vmatpush1.bf16.xpose.msra.mxu0 0
        %1642 = vmatprep.subr.bf16.mxu0 0
        %1643 = vmatpush1.bf16.xpose.msra.mxu0 0
        %1644 = vmatprep.subr.bf16.mxu0 0
        %1645 = vmatpush1.bf16.xpose.msra.mxu0 0
        %1646 = vmatprep.subr.bf16.mxu0 0
        %1647 = vmatpush1.bf16.xpose.msra.mxu0 %v1632
        %1648 = vmatprep.subr.bf16.mxu0 0
        %1649 = vmatpush1.bf16.xpose.msra.mxu0 %v1629
        %1650 = vmatprep.subr.bf16.mxu0 0
        %1651 = vmatpush2.bf16.xpose.msra.mxu0 0
        %1652 = vmatprep.subr.bf16.mxu0 0
        %1653 = vmatpush2.bf16.xpose.msra.mxu0 0
        %1654 = vmatprep.subr.bf16.mxu0 0
        %1655 = vmatpush2.bf16.xpose.msra.mxu0 0
        %1656 = vmatprep.subr.bf16.mxu0 0
        %1657 = vmatpush2.bf16.xpose.msra.mxu0 0
        %1658 = vmatprep.subr.bf16.mxu0 0
        %1659 = vmatpush2.bf16.xpose.msra.mxu0 0
        %1660 = vmatprep.subr.bf16.mxu0 0
        %1661 = vmatpush2.bf16.xpose.msra.mxu0 0
        %1662 = vmatprep.subr.bf16.mxu0 0
        %1663 = vmatpush2.bf16.xpose.msra.mxu0 0
        %1664 = vmatprep.subr.bf16.mxu0 0
        %1665 = vmatpush2.bf16.xpose.msra.mxu0 0
        %1666 = vmatprep.mubr.bf16.mxu0 0
        %1667 = vmatmul.mubr.bf16.gmra.mxu0 %v1623
        %v1668 = vpop.f32.mrf.mxu0
        %v1669 = vadd.f32 %v755, %v1668
        %v1670 = vpop.f32.mrf.mxu0
        %v1671 = vpop.f32.mrf.mxu0
        %v1672 = vadd.f32 %v755, %v1671
        %v1673 = vpop.f32.mrf.mxu0
        %1674 = vmatprep.mubr.bf16.mxu0 0
        %1675 = vmatmul.mubr.bf16.gmra.mxu0 %v1626
        %v1676 = vpop.f32.mrf.mxu0
        %v1677 = vadd.f32 %v755, %v1676
        %v1678 = vpop.f32.mrf.mxu0
        %v1679 = vpop.f32.mrf.mxu0
        %v1680 = vadd.f32 %v755, %v1679
        %v1681 = vpop.f32.mrf.mxu0
        %1682 = vdwg.mxu0
        %v1683 = vsel %vm1093, %v1669, -inf
        %1684 = vmax.xlane.f32.xlu0 %v1683
        %v1685 = vpop.xlane.xlu0 %1684
        %v1686 = vsel %vm1093, %v1672, -inf
        %1687 = vmax.xlane.f32.xlu0 %v1686
        %v1688 = vpop.xlane.xlu0 %1687
        %v1689 = vsel %vm1093, %v1677, -inf
        %1690 = vmax.xlane.f32.xlu0 %v1689
        %v1691 = vpop.xlane.xlu0 %1690
        %v1692 = vsel %vm1093, %v1680, -inf
        %1693 = vmax.xlane.f32.xlu0 %v1692
        %v1694 = vpop.xlane.xlu0 %1693
        %v1695 = vsub.f32 %v1669, %v1685
        %v1696 = vsub.f32 %v1672, %v1688
        %v1697 = vsub.f32 %v1677, %v1691
        %v1698 = vsub.f32 %v1680, %v1694
        %v1699 = vmul.f32 %v1695, 1.442695
        %v1700 = vpow.pop %v1699
        %v1701 = vmul.f32 %v1696, 1.442695
        %v1702 = vpow.pop %v1701
        %v1703 = vmul.f32 %v1697, 1.442695
        %v1704 = vpow.pop %v1703
        %v1705 = vmul.f32 %v1698, 1.442695
        %v1706 = vpow.pop %v1705
        %v1707 = vsel %vm1093, %v1700, 0.0
        %1708 = vadd.xlane.f32.xlu0 %v1707
        %v1709 = vpop.xlane.xlu0 %1708
        %v1710 = vsel %vm1093, %v1702, 0.0
        %1711 = vadd.xlane.f32.xlu0 %v1710
        %v1712 = vpop.xlane.xlu0 %1711
        %v1713 = vsel %vm1093, %v1704, 0.0
        %1714 = vadd.xlane.f32.xlu0 %v1713
        %v1715 = vpop.xlane.xlu0 %1714
        %v1716 = vsel %vm1093, %v1706, 0.0
        %1717 = vadd.xlane.f32.xlu0 %v1716
        %v1718 = vpop.xlane.xlu0 %1717
        %v1719 = vrcp.pop %v1709
        %v1720 = vrcp.pop %v1712
        %v1721 = vrcp.pop %v1715
        %v1722 = vrcp.pop %v1718
        %v1723 = vmul.f32 %v1700, %v1719
        %v1724 = vmul.f32 %v1702, %v1720
        %v1725 = vmul.f32 %v1704, %v1721
        %v1726 = vmul.f32 %v1706, %v1722
        %v1727 = vpack.c.bf16 %v1724, %v1723
        %v1728 = vpack.c.bf16 %v1726, %v1725
        %1729 = vrot.lane.b32.xlu0 %v1089, 32
        %v1730 = vpop.permute.xlu0 %1729
        %1731 = vrot.lane.b32.xlu0 %v1092, 32
        %v1732 = vpop.permute.xlu0 %1731
        %v1736 = vsel %vm1093, %v1727, 0
        %v1739 = vsel %vm1093, %v1728, 0
        %1741 = vmatprep.subr.bf16.mxu0 0
        %1742 = vmatpush1.bf16.msra.mxu0 0
        %1743 = vmatprep.subr.bf16.mxu0 0
        %1744 = vmatpush1.bf16.msra.mxu0 0
        %1745 = vmatprep.subr.bf16.mxu0 0
        %1746 = vmatpush1.bf16.msra.mxu0 0
        %1747 = vmatprep.subr.bf16.mxu0 0
        %1748 = vmatpush1.bf16.msra.mxu0 0
        %1749 = vmatprep.subr.bf16.mxu0 0
        %1750 = vmatpush1.bf16.msra.mxu0 0
        %1751 = vmatprep.subr.bf16.mxu0 0
        %1752 = vmatpush1.bf16.msra.mxu0 0
        %1753 = vmatprep.subr.bf16.mxu0 0
        %1754 = vmatpush1.bf16.msra.mxu0 %v1732
        %1755 = vmatprep.subr.bf16.mxu0 0
        %1756 = vmatpush1.bf16.msra.mxu0 %v1730
        %1757 = vmatprep.subr.bf16.mxu0 0
        %1758 = vmatpush2.bf16.msra.mxu0 0
        %1759 = vmatprep.subr.bf16.mxu0 0
        %1760 = vmatpush2.bf16.msra.mxu0 0
        %1761 = vmatprep.subr.bf16.mxu0 0
        %1762 = vmatpush2.bf16.msra.mxu0 0
        %1763 = vmatprep.subr.bf16.mxu0 0
        %1764 = vmatpush2.bf16.msra.mxu0 0
        %1765 = vmatprep.subr.bf16.mxu0 0
        %1766 = vmatpush2.bf16.msra.mxu0 0
        %1767 = vmatprep.subr.bf16.mxu0 0
        %1768 = vmatpush2.bf16.msra.mxu0 0
        %1769 = vmatprep.subr.bf16.mxu0 0
        %1770 = vmatpush2.bf16.msra.mxu0 0
        %1771 = vmatprep.subr.bf16.mxu0 0
        %1772 = vmatpush2.bf16.msra.mxu0 0
        %1773 = vmatprep.mubr.bf16.mxu0 0
        %1774 = vmatmul.mubr.bf16.gmra.mxu0 %v1736
        %v1775 = vpop.f32.mrf.mxu0
        %v1776 = vadd.f32 0.0, %v1775
        %v1777 = vpop.f32.mrf.mxu0
        %v1778 = vpop.f32.mrf.mxu0
        %v1779 = vadd.f32 0.0, %v1778
        %v1780 = vpop.f32.mrf.mxu0
        %1781 = vmatprep.mubr.bf16.mxu0 0
        %1782 = vmatmul.mubr.bf16.gmra.mxu0 %v1739
        %v1783 = vpop.f32.mrf.mxu0
        %v1784 = vadd.f32 0.0, %v1783
        %v1785 = vpop.f32.mrf.mxu0
        %v1786 = vpop.f32.mrf.mxu0
        %v1787 = vadd.f32 0.0, %v1786
        %v1788 = vpop.f32.mrf.mxu0
        %1789 = vdwg.mxu0
        %1794 = vrot.lane.b32.xlu0 %v1424, 32
        %v1795 = vpop.permute.xlu0 %1794
        %1796 = vrot.lane.b32.xlu0 %v1427, 32
        %v1797 = vpop.permute.xlu0 %1796
        %1798 = vrot.lane.b32.xlu0 %v1432, 32
        %v1799 = vpop.permute.xlu0 %1798
        %1800 = vrot.lane.b32.xlu0 %v1435, 32
        %v1801 = vpop.permute.xlu0 %1800
        %1810 = vrot.lane.b32.xlu0 %v1600, 64
        %v1811 = vpop.permute.xlu0 %1810
        %1812 = vrot.lane.b32.xlu0 %v1603, 64
        %v1813 = vpop.permute.xlu0 %1812
        %1814 = vrot.lane.b32.xlu0 %v1608, 64
        %v1815 = vpop.permute.xlu0 %1814
        %1816 = vrot.lane.b32.xlu0 %v1611, 64
        %v1817 = vpop.permute.xlu0 %1816
        %1826 = vrot.lane.b32.xlu0 %v1776, 96
        %v1827 = vpop.permute.xlu0 %1826
        %1828 = vrot.lane.b32.xlu0 %v1779, 96
        %v1829 = vpop.permute.xlu0 %1828
        %1830 = vrot.lane.b32.xlu0 %v1784, 96
        %v1831 = vpop.permute.xlu0 %1830
        %1832 = vrot.lane.b32.xlu0 %v1787, 96
        %v1833 = vpop.permute.xlu0 %1832
        %v1838 = vsel %vm1093, %v1242, %v1795
        %v1839 = vsel %vm1093, %v1245, %v1797
        %v1840 = vsel %vm1093, %v1250, %v1799
        %v1841 = vsel %vm1093, %v1253, %v1801
        %v1842 = vsel %vm696, %v1838, %v1811
        %v1843 = vsel %vm696, %v1839, %v1813
        %v1844 = vsel %vm696, %v1840, %v1815
        %v1845 = vsel %vm696, %v1841, %v1817
        %vm1846 = vcmask 785408
        %v1847 = vsel %vm1846, %v1842, %v1827
        %v1848 = vsel %vm1846, %v1843, %v1829
        %v1849 = vsel %vm1846, %v1844, %v1831
        %v1850 = vsel %vm1846, %v1845, %v1833
        %v1851 = vpack.c.bf16 %v1848, %v1847
        %v1852 = vpack.c.bf16 %v1850, %v1849
        %v1853 = vld [vmem:[%s6] sm:$0xf]
        %v1854 = vld [vmem:[%s6 + $0x4] sm:$0xf]
        %v1855 = vld [vmem:[%s6 + $0x8] sm:$0xf]
        %v1856 = vld [vmem:[%s6 + $0xc] sm:$0xf]
        %v1857 = vld [vmem:[%s6 + $0x10] sm:$0xf]
        %v1858 = vld [vmem:[%s6 + $0x14] sm:$0xf]
        %v1859 = vld [vmem:[%s6 + $0x18] sm:$0xf]
        %v1860 = vld [vmem:[%s6 + $0x1c] sm:$0xf]
        %v1861 = vld [vmem:[%s6 + $0x20] sm:$0xf]
        %v1862 = vld [vmem:[%s6 + $0x24] sm:$0xf]
        %v1863 = vld [vmem:[%s6 + $0x28] sm:$0xf]
        %v1864 = vld [vmem:[%s6 + $0x2c] sm:$0xf]
        %v1865 = vld [vmem:[%s6 + $0x30] sm:$0xf]
        %v1866 = vld [vmem:[%s6 + $0x34] sm:$0xf]
        %v1867 = vld [vmem:[%s6 + $0x38] sm:$0xf]
        %v1868 = vld [vmem:[%s6 + $0x3c] sm:$0xf]
        %v1869 = vld [vmem:[%s7] sm:$0x1]
        %v1871 = vlaneseq
        %v1872 = vshrl.u32 %v1871, 7
        %v1873 = vsub.s32 0, %v1872
        %v1874 = vrot.slane %v1869, %v1873
        %v1892 = vunpack.c.l.b16 %v1853
        %v1893 = vunpack.c.l.b16 %v1854
        %v1894 = vunpack.c.l.b16 %v1855
        %v1895 = vunpack.c.l.b16 %v1856
        %v1896 = vunpack.c.l.b16 %v1857
        %v1897 = vunpack.c.l.b16 %v1858
        %v1898 = vunpack.c.l.b16 %v1859
        %v1899 = vunpack.c.l.b16 %v1860
        %v1900 = vunpack.c.l.b16 %v1861
        %v1901 = vunpack.c.l.b16 %v1862
        %v1902 = vunpack.c.l.b16 %v1863
        %v1903 = vunpack.c.l.b16 %v1864
        %v1904 = vunpack.c.l.b16 %v1865
        %v1905 = vunpack.c.l.b16 %v1866
        %v1906 = vunpack.c.l.b16 %v1867
        %v1907 = vunpack.c.l.b16 %v1868
        %v1908 = vpack.c.b16 %v1893, %v1892
        %v1909 = vpack.c.b16 %v1895, %v1894
        %v1910 = vpack.c.b16 %v1897, %v1896
        %v1911 = vpack.c.b16 %v1899, %v1898
        %v1912 = vpack.c.b16 %v1901, %v1900
        %v1913 = vpack.c.b16 %v1903, %v1902
        %v1914 = vpack.c.b16 %v1905, %v1904
        %v1915 = vpack.c.b16 %v1907, %v1906
        %1924 = vmatprep.subr.bf16.mxu0 0
        %1925 = vmatpush1.bf16.msra.mxu0 %v1915
        %1926 = vmatprep.subr.bf16.mxu0 0
        %1927 = vmatpush1.bf16.msra.mxu0 %v1914
        %1928 = vmatprep.subr.bf16.mxu0 0
        %1929 = vmatpush1.bf16.msra.mxu0 %v1913
        %1930 = vmatprep.subr.bf16.mxu0 0
        %1931 = vmatpush1.bf16.msra.mxu0 %v1912
        %1932 = vmatprep.subr.bf16.mxu0 0
        %1933 = vmatpush1.bf16.msra.mxu0 %v1911
        %1934 = vmatprep.subr.bf16.mxu0 0
        %1935 = vmatpush1.bf16.msra.mxu0 %v1910
        %1936 = vmatprep.subr.bf16.mxu0 0
        %1937 = vmatpush1.bf16.msra.mxu0 %v1909
        %1938 = vmatprep.subr.bf16.mxu0 0
        %1939 = vmatpush1.bf16.msra.mxu0 %v1908
        %1940 = vmatprep.subr.bf16.mxu0 0
        %1941 = vmatpush2.bf16.msra.mxu0 0
        %1942 = vmatprep.subr.bf16.mxu0 0
        %1943 = vmatpush2.bf16.msra.mxu0 0
        %1944 = vmatprep.subr.bf16.mxu0 0
        %1945 = vmatpush2.bf16.msra.mxu0 0
        %1946 = vmatprep.subr.bf16.mxu0 0
        %1947 = vmatpush2.bf16.msra.mxu0 0
        %1948 = vmatprep.subr.bf16.mxu0 0
        %1949 = vmatpush2.bf16.msra.mxu0 0
        %1950 = vmatprep.subr.bf16.mxu0 0
        %1951 = vmatpush2.bf16.msra.mxu0 0
        %1952 = vmatprep.subr.bf16.mxu0 0
        %1953 = vmatpush2.bf16.msra.mxu0 0
        %1954 = vmatprep.subr.bf16.mxu0 0
        %1955 = vmatpush2.bf16.msra.mxu0 0
        %1956 = vmatprep.mubr.bf16.mxu0 0
        %1957 = vmatmul.mubr.bf16.gmra.mxu0 %v1851
        %v1958 = vpop.f32.mrf.mxu0
        %v1959 = vadd.f32 %v1874, %v1958
        %v1960 = vpop.f32.mrf.mxu0
        %v1961 = vpop.f32.mrf.mxu0
        %v1962 = vadd.f32 %v1874, %v1961
        %v1963 = vpop.f32.mrf.mxu0
        %1964 = vmatprep.mubr.bf16.mxu0 0
        %1965 = vmatmul.mubr.bf16.gmra.mxu0 %v1852
        %v1966 = vpop.f32.mrf.mxu0
        %v1967 = vadd.f32 %v1874, %v1966
        %v1968 = vpop.f32.mrf.mxu0
        %v1969 = vpop.f32.mrf.mxu0
        %v1970 = vadd.f32 %v1874, %v1969
        %v1971 = vpop.f32.mrf.mxu0
        %1972 = vdwg.mxu0
        %v1973 = vadd.f32 %v1959, %v738
        %v1974 = vadd.f32 %v1962, %v741
        %v1975 = vadd.f32 %v1967, %v746
        %v1976 = vadd.f32 %v1970, %v749
        %v1977 = vld [vmem:[%s8] sm:$0x1]
        %v1978 = vld [vmem:[%s9] sm:$0x1]
        %1979 = vadd.xlane.f32.xlu0 %v1973
        %v1980 = vpop.xlane.xlu0 %1979
        %1981 = vadd.xlane.f32.xlu0 %v1974
        %v1982 = vpop.xlane.xlu0 %1981
        %1983 = vadd.xlane.f32.xlu0 %v1975
        %v1984 = vpop.xlane.xlu0 %1983
        %1985 = vadd.xlane.f32.xlu0 %v1976
        %v1986 = vpop.xlane.xlu0 %1985
        %v1987 = vmul.f32 %v1980, %v766
        %v1988 = vmul.f32 %v1982, %v766
        %v1989 = vmul.f32 %v1984, %v766
        %v1990 = vmul.f32 %v1986, %v766
        %v1991 = vsub.f32 %v1973, %v1987
        %v1992 = vsub.f32 %v1974, %v1988
        %v1993 = vsub.f32 %v1975, %v1989
        %v1994 = vsub.f32 %v1976, %v1990
        %v1995 = vmul.f32 %v1991, %v1991
        %v1996 = vmul.f32 %v1992, %v1992
        %v1997 = vmul.f32 %v1993, %v1993
        %v1998 = vmul.f32 %v1994, %v1994
        %1999 = vadd.xlane.f32.xlu0 %v1995
        %v2000 = vpop.xlane.xlu0 %1999
        %2001 = vadd.xlane.f32.xlu0 %v1996
        %v2002 = vpop.xlane.xlu0 %2001
        %2003 = vadd.xlane.f32.xlu0 %v1997
        %v2004 = vpop.xlane.xlu0 %2003
        %2005 = vadd.xlane.f32.xlu0 %v1998
        %v2006 = vpop.xlane.xlu0 %2005
        %v2007 = vmul.f32 %v2000, %v766
        %v2008 = vmul.f32 %v2002, %v766
        %v2009 = vmul.f32 %v2004, %v766
        %v2010 = vmul.f32 %v2006, %v766
        %v2011 = vadd.f32 %v2007, 1e-05
        %v2012 = vadd.f32 %v2008, 1e-05
        %v2013 = vadd.f32 %v2009, 1e-05
        %v2014 = vadd.f32 %v2010, 1e-05
        %v2015 = vrsqrt.pop %v2011
        %v2016 = vrsqrt.pop %v2012
        %v2017 = vrsqrt.pop %v2013
        %v2018 = vrsqrt.pop %v2014
        %v2019 = vmul.f32 %v1991, %v2015
        %v2020 = vmul.f32 %v1992, %v2016
        %v2021 = vmul.f32 %v1993, %v2017
        %v2022 = vmul.f32 %v1994, %v2018
        %v2024 = vlaneseq
        %v2025 = vshrl.u32 %v2024, 7
        %v2026 = vsub.s32 0, %v2025
        %v2027 = vrot.slane %v1977, %v2026
        %v2029 = vmul.f32 %v2019, %v2027
        %v2030 = vmul.f32 %v2020, %v2027
        %v2031 = vmul.f32 %v2021, %v2027
        %v2032 = vmul.f32 %v2022, %v2027
        %v2034 = vlaneseq
        %v2035 = vshrl.u32 %v2034, 7
        %v2036 = vsub.s32 0, %v2035
        %v2037 = vrot.slane %v1978, %v2036
        %v2039 = vadd.f32 %v2029, %v2037
        %v2040 = vadd.f32 %v2030, %v2037
        %v2041 = vadd.f32 %v2031, %v2037
        %v2042 = vadd.f32 %v2032, %v2037
        %v2043 = vpack.c.bf16 %v2040, %v2039
        %v2044 = vpack.c.bf16 %v2042, %v2041
        %v2045 = vld [vmem:[%s10] sm:$0xff]
        %v2046 = vld [vmem:[%s10 + $0x8] sm:$0xff]
        %v2047 = vld [vmem:[%s10 + $0x10] sm:$0xff]
        %v2048 = vld [vmem:[%s10 + $0x18] sm:$0xff]
        %v2049 = vld [vmem:[%s10 + $0x20] sm:$0xff]
        %v2050 = vld [vmem:[%s10 + $0x28] sm:$0xff]
        %v2051 = vld [vmem:[%s10 + $0x30] sm:$0xff]
        %v2052 = vld [vmem:[%s10 + $0x38] sm:$0xff]
        %v2053 = vld [vmem:[%s10 + $0x40] sm:$0xff]
        %v2054 = vld [vmem:[%s10 + $0x48] sm:$0xff]
        %v2055 = vld [vmem:[%s10 + $0x50] sm:$0xff]
        %v2056 = vld [vmem:[%s10 + $0x58] sm:$0xff]
        %v2057 = vld [vmem:[%s10 + $0x60] sm:$0xff]
        %v2058 = vld [vmem:[%s10 + $0x68] sm:$0xff]
        %v2059 = vld [vmem:[%s10 + $0x70] sm:$0xff]
        %v2060 = vld [vmem:[%s10 + $0x78] sm:$0xff]
        %v2061 = vld [vmem:[%s11] sm:$0x3]
        %v2063 = vlaneseq
        %v2064 = vshrl.u32 %v2063, 7
        %v2065 = vsub.s32 0, %v2064
        %v2066 = vrot.slane %v2061, %v2065
        %v2067 = vlaneseq
        %v2068 = vshrl.u32 %v2067, 7
        %v2069 = vsub.s32 1, %v2068
        %v2070 = vrot.slane %v2061, %v2069
        %v2089 = vunpack.c.l.b16 %v2045
        %v2090 = vunpack.c.h.b16 %v2045
        %v2091 = vunpack.c.l.b16 %v2046
        %v2092 = vunpack.c.h.b16 %v2046
        %v2093 = vunpack.c.l.b16 %v2047
        %v2094 = vunpack.c.h.b16 %v2047
        %v2095 = vunpack.c.l.b16 %v2048
        %v2096 = vunpack.c.h.b16 %v2048
        %v2097 = vunpack.c.l.b16 %v2049
        %v2098 = vunpack.c.h.b16 %v2049
        %v2099 = vunpack.c.l.b16 %v2050
        %v2100 = vunpack.c.h.b16 %v2050
        %v2101 = vunpack.c.l.b16 %v2051
        %v2102 = vunpack.c.h.b16 %v2051
        %v2103 = vunpack.c.l.b16 %v2052
        %v2104 = vunpack.c.h.b16 %v2052
        %v2105 = vunpack.c.l.b16 %v2053
        %v2106 = vunpack.c.h.b16 %v2053
        %v2107 = vunpack.c.l.b16 %v2054
        %v2108 = vunpack.c.h.b16 %v2054
        %v2109 = vunpack.c.l.b16 %v2055
        %v2110 = vunpack.c.h.b16 %v2055
        %v2111 = vunpack.c.l.b16 %v2056
        %v2112 = vunpack.c.h.b16 %v2056
        %v2113 = vunpack.c.l.b16 %v2057
        %v2114 = vunpack.c.h.b16 %v2057
        %v2115 = vunpack.c.l.b16 %v2058
        %v2116 = vunpack.c.h.b16 %v2058
        %v2117 = vunpack.c.l.b16 %v2059
        %v2118 = vunpack.c.h.b16 %v2059
        %v2119 = vunpack.c.l.b16 %v2060
        %v2120 = vunpack.c.h.b16 %v2060
        %v2121 = vpack.c.b16 %v2091, %v2089
        %v2122 = vpack.c.b16 %v2092, %v2090
        %v2123 = vpack.c.b16 %v2095, %v2093
        %v2124 = vpack.c.b16 %v2096, %v2094
        %v2125 = vpack.c.b16 %v2099, %v2097
        %v2126 = vpack.c.b16 %v2100, %v2098
        %v2127 = vpack.c.b16 %v2103, %v2101
        %v2128 = vpack.c.b16 %v2104, %v2102
        %v2129 = vpack.c.b16 %v2107, %v2105
        %v2130 = vpack.c.b16 %v2108, %v2106
        %v2131 = vpack.c.b16 %v2111, %v2109
        %v2132 = vpack.c.b16 %v2112, %v2110
        %v2133 = vpack.c.b16 %v2115, %v2113
        %v2134 = vpack.c.b16 %v2116, %v2114
        %v2135 = vpack.c.b16 %v2119, %v2117
        %v2136 = vpack.c.b16 %v2120, %v2118
        %2153 = vmatprep.subr.bf16.mxu0 %v2136
        %2154 = vmatpush1.bf16.msra.mxu0 %v2135
        %2155 = vmatprep.subr.bf16.mxu0 %v2134
        %2156 = vmatpush1.bf16.msra.mxu0 %v2133
        %2157 = vmatprep.subr.bf16.mxu0 %v2132
        %2158 = vmatpush1.bf16.msra.mxu0 %v2131
        %2159 = vmatprep.subr.bf16.mxu0 %v2130
        %2160 = vmatpush1.bf16.msra.mxu0 %v2129
        %2161 = vmatprep.subr.bf16.mxu0 %v2128
        %2162 = vmatpush1.bf16.msra.mxu0 %v2127
        %2163 = vmatprep.subr.bf16.mxu0 %v2126
        %2164 = vmatpush1.bf16.msra.mxu0 %v2125
        %2165 = vmatprep.subr.bf16.mxu0 %v2124
        %2166 = vmatpush1.bf16.msra.mxu0 %v2123
        %2167 = vmatprep.subr.bf16.mxu0 %v2122
        %2168 = vmatpush1.bf16.msra.mxu0 %v2121
        %2169 = vmatprep.subr.bf16.mxu0 0
        %2170 = vmatpush2.bf16.msra.mxu0 0
        %2171 = vmatprep.subr.bf16.mxu0 0
        %2172 = vmatpush2.bf16.msra.mxu0 0
        %2173 = vmatprep.subr.bf16.mxu0 0
        %2174 = vmatpush2.bf16.msra.mxu0 0
        %2175 = vmatprep.subr.bf16.mxu0 0
        %2176 = vmatpush2.bf16.msra.mxu0 0
        %2177 = vmatprep.subr.bf16.mxu0 0
        %2178 = vmatpush2.bf16.msra.mxu0 0
        %2179 = vmatprep.subr.bf16.mxu0 0
        %2180 = vmatpush2.bf16.msra.mxu0 0
        %2181 = vmatprep.subr.bf16.mxu0 0
        %2182 = vmatpush2.bf16.msra.mxu0 0
        %2183 = vmatprep.subr.bf16.mxu0 0
        %2184 = vmatpush2.bf16.msra.mxu0 0
        %2185 = vmatprep.mubr.bf16.mxu0 0
        %2186 = vmatmul.mubr.bf16.gmra.mxu0 %v2043
        %v2187 = vpop.f32.mrf.mxu0
        %v2188 = vadd.f32 %v2066, %v2187
        %v2189 = vpop.f32.mrf.mxu0
        %v2190 = vadd.f32 %v2070, %v2189
        %v2191 = vpop.f32.mrf.mxu0
        %v2192 = vadd.f32 %v2066, %v2191
        %v2193 = vpop.f32.mrf.mxu0
        %v2194 = vadd.f32 %v2070, %v2193
        %2195 = vmatprep.mubr.bf16.mxu0 0
        %2196 = vmatmul.mubr.bf16.gmra.mxu0 %v2044
        %v2197 = vpop.f32.mrf.mxu0
        %v2198 = vadd.f32 %v2066, %v2197
        %v2199 = vpop.f32.mrf.mxu0
        %v2200 = vadd.f32 %v2070, %v2199
        %v2201 = vpop.f32.mrf.mxu0
        %v2202 = vadd.f32 %v2066, %v2201
        %v2203 = vpop.f32.mrf.mxu0
        %v2204 = vadd.f32 %v2070, %v2203
        %2205 = vdwg.mxu0
        %v2206 = vmul.f32 %v2188, 0.5
        %v2207 = vmul.f32 %v2190, 0.5
        %v2208 = vmul.f32 %v2192, 0.5
        %v2209 = vmul.f32 %v2194, 0.5
        %v2210 = vmul.f32 %v2198, 0.5
        %v2211 = vmul.f32 %v2200, 0.5
        %v2212 = vmul.f32 %v2202, 0.5
        %v2213 = vmul.f32 %v2204, 0.5
        %v2214 = vmul.f32 %v2188, 0.70710677
        %v2215 = vmul.f32 %v2190, 0.70710677
        %v2216 = vmul.f32 %v2192, 0.70710677
        %v2217 = vmul.f32 %v2194, 0.70710677
        %v2218 = vmul.f32 %v2198, 0.70710677
        %v2219 = vmul.f32 %v2200, 0.70710677
        %v2220 = vmul.f32 %v2202, 0.70710677
        %v2221 = vmul.f32 %v2204, 0.70710677
        %v2222 = verf.f32.pop %v2214
        %v2223 = verf.f32.pop %v2215
        %v2224 = verf.f32.pop %v2216
        %v2225 = verf.f32.pop %v2217
        %v2226 = verf.f32.pop %v2218
        %v2227 = verf.f32.pop %v2219
        %v2228 = verf.f32.pop %v2220
        %v2229 = verf.f32.pop %v2221
        %v2230 = vadd.f32 %v2222, 1.0
        %v2231 = vadd.f32 %v2223, 1.0
        %v2232 = vadd.f32 %v2224, 1.0
        %v2233 = vadd.f32 %v2225, 1.0
        %v2234 = vadd.f32 %v2226, 1.0
        %v2235 = vadd.f32 %v2227, 1.0
        %v2236 = vadd.f32 %v2228, 1.0
        %v2237 = vadd.f32 %v2229, 1.0
        %v2238 = vmul.f32 %v2206, %v2230
        %v2239 = vmul.f32 %v2207, %v2231
        %v2240 = vmul.f32 %v2208, %v2232
        %v2241 = vmul.f32 %v2209, %v2233
        %v2242 = vmul.f32 %v2210, %v2234
        %v2243 = vmul.f32 %v2211, %v2235
        %v2244 = vmul.f32 %v2212, %v2236
        %v2245 = vmul.f32 %v2213, %v2237
        %v2246 = vpack.c.bf16 %v2240, %v2238
        %v2247 = vpack.c.bf16 %v2241, %v2239
        %v2248 = vpack.c.bf16 %v2244, %v2242
        %v2249 = vpack.c.bf16 %v2245, %v2243
        %v2250 = vld [vmem:[%s12] sm:$0xf]
        %v2251 = vld [vmem:[%s12 + $0x4] sm:$0xf]
        %v2252 = vld [vmem:[%s12 + $0x8] sm:$0xf]
        %v2253 = vld [vmem:[%s12 + $0xc] sm:$0xf]
        %v2254 = vld [vmem:[%s12 + $0x10] sm:$0xf]
        %v2255 = vld [vmem:[%s12 + $0x14] sm:$0xf]
        %v2256 = vld [vmem:[%s12 + $0x18] sm:$0xf]
        %v2257 = vld [vmem:[%s12 + $0x1c] sm:$0xf]
        %v2258 = vld [vmem:[%s12 + $0x20] sm:$0xf]
        %v2259 = vld [vmem:[%s12 + $0x24] sm:$0xf]
        %v2260 = vld [vmem:[%s12 + $0x28] sm:$0xf]
        %v2261 = vld [vmem:[%s12 + $0x2c] sm:$0xf]
        %v2262 = vld [vmem:[%s12 + $0x30] sm:$0xf]
        %v2263 = vld [vmem:[%s12 + $0x34] sm:$0xf]
        %v2264 = vld [vmem:[%s12 + $0x38] sm:$0xf]
        %v2265 = vld [vmem:[%s12 + $0x3c] sm:$0xf]
        %v2266 = vld [vmem:[%s12 + $0x40] sm:$0xf]
        %v2267 = vld [vmem:[%s12 + $0x44] sm:$0xf]
        %v2268 = vld [vmem:[%s12 + $0x48] sm:$0xf]
        %v2269 = vld [vmem:[%s12 + $0x4c] sm:$0xf]
        %v2270 = vld [vmem:[%s12 + $0x50] sm:$0xf]
        %v2271 = vld [vmem:[%s12 + $0x54] sm:$0xf]
        %v2272 = vld [vmem:[%s12 + $0x58] sm:$0xf]
        %v2273 = vld [vmem:[%s12 + $0x5c] sm:$0xf]
        %v2274 = vld [vmem:[%s12 + $0x60] sm:$0xf]
        %v2275 = vld [vmem:[%s12 + $0x64] sm:$0xf]
        %v2276 = vld [vmem:[%s12 + $0x68] sm:$0xf]
        %v2277 = vld [vmem:[%s12 + $0x6c] sm:$0xf]
        %v2278 = vld [vmem:[%s12 + $0x70] sm:$0xf]
        %v2279 = vld [vmem:[%s12 + $0x74] sm:$0xf]
        %v2280 = vld [vmem:[%s12 + $0x78] sm:$0xf]
        %v2281 = vld [vmem:[%s12 + $0x7c] sm:$0xf]
        %v2282 = vld [vmem:[%s13] sm:$0x1]
        %v2284 = vlaneseq
        %v2285 = vshrl.u32 %v2284, 7
        %v2286 = vsub.s32 0, %v2285
        %v2287 = vrot.slane %v2282, %v2286
        %v2321 = vunpack.c.l.b16 %v2250
        %v2322 = vunpack.c.l.b16 %v2251
        %v2323 = vunpack.c.l.b16 %v2252
        %v2324 = vunpack.c.l.b16 %v2253
        %v2325 = vunpack.c.l.b16 %v2254
        %v2326 = vunpack.c.l.b16 %v2255
        %v2327 = vunpack.c.l.b16 %v2256
        %v2328 = vunpack.c.l.b16 %v2257
        %v2329 = vunpack.c.l.b16 %v2258
        %v2330 = vunpack.c.l.b16 %v2259
        %v2331 = vunpack.c.l.b16 %v2260
        %v2332 = vunpack.c.l.b16 %v2261
        %v2333 = vunpack.c.l.b16 %v2262
        %v2334 = vunpack.c.l.b16 %v2263
        %v2335 = vunpack.c.l.b16 %v2264
        %v2336 = vunpack.c.l.b16 %v2265
        %v2337 = vunpack.c.l.b16 %v2266
        %v2338 = vunpack.c.l.b16 %v2267
        %v2339 = vunpack.c.l.b16 %v2268
        %v2340 = vunpack.c.l.b16 %v2269
        %v2341 = vunpack.c.l.b16 %v2270
        %v2342 = vunpack.c.l.b16 %v2271
        %v2343 = vunpack.c.l.b16 %v2272
        %v2344 = vunpack.c.l.b16 %v2273
        %v2345 = vunpack.c.l.b16 %v2274
        %v2346 = vunpack.c.l.b16 %v2275
        %v2347 = vunpack.c.l.b16 %v2276
        %v2348 = vunpack.c.l.b16 %v2277
        %v2349 = vunpack.c.l.b16 %v2278
        %v2350 = vunpack.c.l.b16 %v2279
        %v2351 = vunpack.c.l.b16 %v2280
        %v2352 = vunpack.c.l.b16 %v2281
        %v2353 = vpack.c.b16 %v2322, %v2321
        %v2354 = vpack.c.b16 %v2324, %v2323
        %v2355 = vpack.c.b16 %v2326, %v2325
        %v2356 = vpack.c.b16 %v2328, %v2327
        %v2357 = vpack.c.b16 %v2330, %v2329
        %v2358 = vpack.c.b16 %v2332, %v2331
        %v2359 = vpack.c.b16 %v2334, %v2333
        %v2360 = vpack.c.b16 %v2336, %v2335
        %v2361 = vpack.c.b16 %v2338, %v2337
        %v2362 = vpack.c.b16 %v2340, %v2339
        %v2363 = vpack.c.b16 %v2342, %v2341
        %v2364 = vpack.c.b16 %v2344, %v2343
        %v2365 = vpack.c.b16 %v2346, %v2345
        %v2366 = vpack.c.b16 %v2348, %v2347
        %v2367 = vpack.c.b16 %v2350, %v2349
        %v2368 = vpack.c.b16 %v2352, %v2351
        %2385 = vmatprep.subr.bf16.mxu0 0
        %2386 = vmatpush1.bf16.msra.mxu0 %v2360
        %2387 = vmatprep.subr.bf16.mxu0 0
        %2388 = vmatpush1.bf16.msra.mxu0 %v2359
        %2389 = vmatprep.subr.bf16.mxu0 0
        %2390 = vmatpush1.bf16.msra.mxu0 %v2358
        %2391 = vmatprep.subr.bf16.mxu0 0
        %2392 = vmatpush1.bf16.msra.mxu0 %v2357
        %2393 = vmatprep.subr.bf16.mxu0 0
        %2394 = vmatpush1.bf16.msra.mxu0 %v2356
        %2395 = vmatprep.subr.bf16.mxu0 0
        %2396 = vmatpush1.bf16.msra.mxu0 %v2355
        %2397 = vmatprep.subr.bf16.mxu0 0
        %2398 = vmatpush1.bf16.msra.mxu0 %v2354
        %2399 = vmatprep.subr.bf16.mxu0 0
        %2400 = vmatpush1.bf16.msra.mxu0 %v2353
        %2401 = vmatprep.subr.bf16.mxu0 0
        %2402 = vmatpush2.bf16.msra.mxu0 %v2368
        %2403 = vmatprep.subr.bf16.mxu0 0
        %2404 = vmatpush2.bf16.msra.mxu0 %v2367
        %2405 = vmatprep.subr.bf16.mxu0 0
        %2406 = vmatpush2.bf16.msra.mxu0 %v2366
        %2407 = vmatprep.subr.bf16.mxu0 0
        %2408 = vmatpush2.bf16.msra.mxu0 %v2365
        %2409 = vmatprep.subr.bf16.mxu0 0
        %2410 = vmatpush2.bf16.msra.mxu0 %v2364
        %2411 = vmatprep.subr.bf16.mxu0 0
        %2412 = vmatpush2.bf16.msra.mxu0 %v2363
        %2413 = vmatprep.subr.bf16.mxu0 0
        %2414 = vmatpush2.bf16.msra.mxu0 %v2362
        %2415 = vmatprep.subr.bf16.mxu0 0
        %2416 = vmatpush2.bf16.msra.mxu0 %v2361
        %2417 = vmatprep.mubr.bf16.mxu0 %v2247
        %2418 = vmatmul.mubr.bf16.gmra.mxu0 %v2246
        %v2419 = vpop.f32.mrf.mxu0
        %v2420 = vadd.f32 %v2287, %v2419
        %v2421 = vpop.f32.mrf.mxu0
        %v2422 = vpop.f32.mrf.mxu0
        %v2423 = vadd.f32 %v2287, %v2422
        %v2424 = vpop.f32.mrf.mxu0
        %2425 = vmatprep.mubr.bf16.mxu0 %v2249
        %2426 = vmatmul.mubr.bf16.gmra.mxu0 %v2248
        %v2427 = vpop.f32.mrf.mxu0
        %v2428 = vadd.f32 %v2287, %v2427
        %v2429 = vpop.f32.mrf.mxu0
        %v2430 = vpop.f32.mrf.mxu0
        %v2431 = vadd.f32 %v2287, %v2430
        %v2432 = vpop.f32.mrf.mxu0
        %2433 = vdwg.mxu0
        %v2434 = vadd.f32 %v2420, %v1973
        %v2435 = vadd.f32 %v2423, %v1974
        %v2436 = vadd.f32 %v2428, %v1975
        %v2437 = vadd.f32 %v2431, %v1976
        %s2438 = scalar_lea.vmem %s3, 1
        %v2439 = vld [vmem:[%s2438] sm:$0x1]
        %s2440 = scalar_lea.vmem %s4, 1
        %v2441 = vld [vmem:[%s2440] sm:$0x1]
        %2442 = vadd.xlane.f32.xlu0 %v2434
        %v2443 = vpop.xlane.xlu0 %2442
        %2444 = vadd.xlane.f32.xlu0 %v2435
        %v2445 = vpop.xlane.xlu0 %2444
        %2446 = vadd.xlane.f32.xlu0 %v2436
        %v2447 = vpop.xlane.xlu0 %2446
        %2448 = vadd.xlane.f32.xlu0 %v2437
        %v2449 = vpop.xlane.xlu0 %2448
        %v2450 = vmul.f32 %v2443, %v766
        %v2451 = vmul.f32 %v2445, %v766
        %v2452 = vmul.f32 %v2447, %v766
        %v2453 = vmul.f32 %v2449, %v766
        %v2454 = vsub.f32 %v2434, %v2450
        %v2455 = vsub.f32 %v2435, %v2451
        %v2456 = vsub.f32 %v2436, %v2452
        %v2457 = vsub.f32 %v2437, %v2453
        %v2458 = vmul.f32 %v2454, %v2454
        %v2459 = vmul.f32 %v2455, %v2455
        %v2460 = vmul.f32 %v2456, %v2456
        %v2461 = vmul.f32 %v2457, %v2457
        %2462 = vadd.xlane.f32.xlu0 %v2458
        %v2463 = vpop.xlane.xlu0 %2462
        %2464 = vadd.xlane.f32.xlu0 %v2459
        %v2465 = vpop.xlane.xlu0 %2464
        %2466 = vadd.xlane.f32.xlu0 %v2460
        %v2467 = vpop.xlane.xlu0 %2466
        %2468 = vadd.xlane.f32.xlu0 %v2461
        %v2469 = vpop.xlane.xlu0 %2468
        %v2470 = vmul.f32 %v2463, %v766
        %v2471 = vmul.f32 %v2465, %v766
        %v2472 = vmul.f32 %v2467, %v766
        %v2473 = vmul.f32 %v2469, %v766
        %v2474 = vadd.f32 %v2470, 1e-05
        %v2475 = vadd.f32 %v2471, 1e-05
        %v2476 = vadd.f32 %v2472, 1e-05
        %v2477 = vadd.f32 %v2473, 1e-05
        %v2478 = vrsqrt.pop %v2474
        %v2479 = vrsqrt.pop %v2475
        %v2480 = vrsqrt.pop %v2476
        %v2481 = vrsqrt.pop %v2477
        %v2482 = vmul.f32 %v2454, %v2478
        %v2483 = vmul.f32 %v2455, %v2479
        %v2484 = vmul.f32 %v2456, %v2480
        %v2485 = vmul.f32 %v2457, %v2481
        %v2487 = vlaneseq
        %v2488 = vshrl.u32 %v2487, 7
        %v2489 = vsub.s32 0, %v2488
        %v2490 = vrot.slane %v2439, %v2489
        %v2492 = vmul.f32 %v2482, %v2490
        %v2493 = vmul.f32 %v2483, %v2490
        %v2494 = vmul.f32 %v2484, %v2490
        %v2495 = vmul.f32 %v2485, %v2490
        %v2497 = vlaneseq
        %v2498 = vshrl.u32 %v2497, 7
        %v2499 = vsub.s32 0, %v2498
        %v2500 = vrot.slane %v2441, %v2499
        %v2502 = vadd.f32 %v2492, %v2500
        %v2503 = vadd.f32 %v2493, %v2500
        %v2504 = vadd.f32 %v2494, %v2500
        %v2505 = vadd.f32 %v2495, %v2500
        %v2506 = vpack.c.bf16 %v2503, %v2502
        %v2507 = vpack.c.bf16 %v2505, %v2504
        %s2508 = scalar_lea.vmem %s5, 192
        %v2509 = vld [vmem:[%s2508] sm:$0xff]
        %v2510 = vld [vmem:[%s2508 + $0x8] sm:$0xf]
        %v2511 = vld [vmem:[%s2508 + $0xc] sm:$0xff]
        %v2512 = vld [vmem:[%s2508 + $0x14] sm:$0xf]
        %v2513 = vld [vmem:[%s2508 + $0x18] sm:$0xff]
        %v2514 = vld [vmem:[%s2508 + $0x20] sm:$0xf]
        %v2515 = vld [vmem:[%s2508 + $0x24] sm:$0xff]
        %v2516 = vld [vmem:[%s2508 + $0x2c] sm:$0xf]
        %v2517 = vld [vmem:[%s2508 + $0x30] sm:$0xff]
        %v2518 = vld [vmem:[%s2508 + $0x38] sm:$0xf]
        %v2519 = vld [vmem:[%s2508 + $0x3c] sm:$0xff]
        %v2520 = vld [vmem:[%s2508 + $0x44] sm:$0xf]
        %v2521 = vld [vmem:[%s2508 + $0x48] sm:$0xff]
        %v2522 = vld [vmem:[%s2508 + $0x50] sm:$0xf]
        %v2523 = vld [vmem:[%s2508 + $0x54] sm:$0xff]
        %v2524 = vld [vmem:[%s2508 + $0x5c] sm:$0xf]
        %v2525 = vld [vmem:[%s2508 + $0x60] sm:$0xff]
        %v2526 = vld [vmem:[%s2508 + $0x68] sm:$0xf]
        %v2527 = vld [vmem:[%s2508 + $0x6c] sm:$0xff]
        %v2528 = vld [vmem:[%s2508 + $0x74] sm:$0xf]
        %v2529 = vld [vmem:[%s2508 + $0x78] sm:$0xff]
        %v2530 = vld [vmem:[%s2508 + $0x80] sm:$0xf]
        %v2531 = vld [vmem:[%s2508 + $0x84] sm:$0xff]
        %v2532 = vld [vmem:[%s2508 + $0x8c] sm:$0xf]
        %v2533 = vld [vmem:[%s2508 + $0x90] sm:$0xff]
        %v2534 = vld [vmem:[%s2508 + $0x98] sm:$0xf]
        %v2535 = vld [vmem:[%s2508 + $0x9c] sm:$0xff]
        %v2536 = vld [vmem:[%s2508 + $0xa4] sm:$0xf]
        %v2537 = vld [vmem:[%s2508 + $0xa8] sm:$0xff]
        %v2538 = vld [vmem:[%s2508 + $0xb0] sm:$0xf]
        %v2539 = vld [vmem:[%s2508 + $0xb4] sm:$0xff]
        %v2540 = vld [vmem:[%s2508 + $0xbc] sm:$0xf]
        %v2573 = vunpack.c.l.b16 %v2509
        %v2574 = vunpack.c.h.b16 %v2509
        %v2575 = vunpack.c.l.b16 %v2510
        %v2576 = vunpack.c.l.b16 %v2511
        %v2577 = vunpack.c.h.b16 %v2511
        %v2578 = vunpack.c.l.b16 %v2512
        %v2579 = vunpack.c.l.b16 %v2513
        %v2580 = vunpack.c.h.b16 %v2513
        %v2581 = vunpack.c.l.b16 %v2514
        %v2582 = vunpack.c.l.b16 %v2515
        %v2583 = vunpack.c.h.b16 %v2515
        %v2584 = vunpack.c.l.b16 %v2516
        %v2585 = vunpack.c.l.b16 %v2517
        %v2586 = vunpack.c.h.b16 %v2517
        %v2587 = vunpack.c.l.b16 %v2518
        %v2588 = vunpack.c.l.b16 %v2519
        %v2589 = vunpack.c.h.b16 %v2519
        %v2590 = vunpack.c.l.b16 %v2520
        %v2591 = vunpack.c.l.b16 %v2521
        %v2592 = vunpack.c.h.b16 %v2521
        %v2593 = vunpack.c.l.b16 %v2522
        %v2594 = vunpack.c.l.b16 %v2523
        %v2595 = vunpack.c.h.b16 %v2523
        %v2596 = vunpack.c.l.b16 %v2524
        %v2597 = vunpack.c.l.b16 %v2525
        %v2598 = vunpack.c.h.b16 %v2525
        %v2599 = vunpack.c.l.b16 %v2526
        %v2600 = vunpack.c.l.b16 %v2527
        %v2601 = vunpack.c.h.b16 %v2527
        %v2602 = vunpack.c.l.b16 %v2528
        %v2603 = vunpack.c.l.b16 %v2529
        %v2604 = vunpack.c.h.b16 %v2529
        %v2605 = vunpack.c.l.b16 %v2530
        %v2606 = vunpack.c.l.b16 %v2531
        %v2607 = vunpack.c.h.b16 %v2531
        %v2608 = vunpack.c.l.b16 %v2532
        %v2609 = vunpack.c.l.b16 %v2533
        %v2610 = vunpack.c.h.b16 %v2533
        %v2611 = vunpack.c.l.b16 %v2534
        %v2612 = vunpack.c.l.b16 %v2535
        %v2613 = vunpack.c.h.b16 %v2535
        %v2614 = vunpack.c.l.b16 %v2536
        %v2615 = vunpack.c.l.b16 %v2537
        %v2616 = vunpack.c.h.b16 %v2537
        %v2617 = vunpack.c.l.b16 %v2538
        %v2618 = vunpack.c.l.b16 %v2539
        %v2619 = vunpack.c.h.b16 %v2539
        %v2620 = vunpack.c.l.b16 %v2540
        %v2621 = vpack.c.b16 %v2576, %v2573
        %v2622 = vpack.c.b16 %v2577, %v2574
        %v2623 = vpack.c.b16 %v2578, %v2575
        %v2624 = vpack.c.b16 %v2582, %v2579
        %v2625 = vpack.c.b16 %v2583, %v2580
        %v2626 = vpack.c.b16 %v2584, %v2581
        %v2627 = vpack.c.b16 %v2588, %v2585
        %v2628 = vpack.c.b16 %v2589, %v2586
        %v2629 = vpack.c.b16 %v2590, %v2587
        %v2630 = vpack.c.b16 %v2594, %v2591
        %v2631 = vpack.c.b16 %v2595, %v2592
        %v2632 = vpack.c.b16 %v2596, %v2593
        %v2633 = vpack.c.b16 %v2600, %v2597
        %v2634 = vpack.c.b16 %v2601, %v2598
        %v2635 = vpack.c.b16 %v2602, %v2599
        %v2636 = vpack.c.b16 %v2606, %v2603
        %v2637 = vpack.c.b16 %v2607, %v2604
        %v2638 = vpack.c.b16 %v2608, %v2605
        %v2639 = vpack.c.b16 %v2612, %v2609
        %v2640 = vpack.c.b16 %v2613, %v2610
        %v2641 = vpack.c.b16 %v2614, %v2611
        %v2642 = vpack.c.b16 %v2618, %v2615
        %v2643 = vpack.c.b16 %v2619, %v2616
        %v2644 = vpack.c.b16 %v2620, %v2617
        %2669 = vmatprep.subr.bf16.mxu0 %v2643
        %2670 = vmatpush1.bf16.msra.mxu0 %v2642
        %2671 = vmatprep.subr.bf16.mxu0 %v2640
        %2672 = vmatpush1.bf16.msra.mxu0 %v2639
        %2673 = vmatprep.subr.bf16.mxu0 %v2637
        %2674 = vmatpush1.bf16.msra.mxu0 %v2636
        %2675 = vmatprep.subr.bf16.mxu0 %v2634
        %2676 = vmatpush1.bf16.msra.mxu0 %v2633
        %2677 = vmatprep.subr.bf16.mxu0 %v2631
        %2678 = vmatpush1.bf16.msra.mxu0 %v2630
        %2679 = vmatprep.subr.bf16.mxu0 %v2628
        %2680 = vmatpush1.bf16.msra.mxu0 %v2627
        %2681 = vmatprep.subr.bf16.mxu0 %v2625
        %2682 = vmatpush1.bf16.msra.mxu0 %v2624
        %2683 = vmatprep.subr.bf16.mxu0 %v2622
        %2684 = vmatpush1.bf16.msra.mxu0 %v2621
        %2685 = vmatprep.subr.bf16.mxu0 0
        %2686 = vmatpush2.bf16.msra.mxu0 0
        %2687 = vmatprep.subr.bf16.mxu0 0
        %2688 = vmatpush2.bf16.msra.mxu0 0
        %2689 = vmatprep.subr.bf16.mxu0 0
        %2690 = vmatpush2.bf16.msra.mxu0 0
        %2691 = vmatprep.subr.bf16.mxu0 0
        %2692 = vmatpush2.bf16.msra.mxu0 0
        %2693 = vmatprep.subr.bf16.mxu0 0
        %2694 = vmatpush2.bf16.msra.mxu0 0
        %2695 = vmatprep.subr.bf16.mxu0 0
        %2696 = vmatpush2.bf16.msra.mxu0 0
        %2697 = vmatprep.subr.bf16.mxu0 0
        %2698 = vmatpush2.bf16.msra.mxu0 0
        %2699 = vmatprep.subr.bf16.mxu0 0
        %2700 = vmatpush2.bf16.msra.mxu0 0
        %2701 = vmatprep.mubr.bf16.mxu0 0
        %2702 = vmatmul.mubr.bf16.gmra.mxu0 %v2506
        %v2703 = vpop.f32.mrf.mxu0
        %v2704 = vadd.f32 0.0, %v2703
        %v2705 = vpop.f32.mrf.mxu0
        %v2706 = vadd.f32 0.0, %v2705
        %v2707 = vpop.f32.mrf.mxu0
        %v2708 = vadd.f32 0.0, %v2707
        %v2709 = vpop.f32.mrf.mxu0
        %v2710 = vadd.f32 0.0, %v2709
        %2711 = vmatprep.mubr.bf16.mxu0 0
        %2712 = vmatmul.mubr.bf16.gmra.mxu0 %v2507
        %v2713 = vpop.f32.mrf.mxu0
        %v2714 = vadd.f32 0.0, %v2713
        %v2715 = vpop.f32.mrf.mxu0
        %v2716 = vadd.f32 0.0, %v2715
        %v2717 = vpop.f32.mrf.mxu0
        %v2718 = vadd.f32 0.0, %v2717
        %v2719 = vpop.f32.mrf.mxu0
        %v2720 = vadd.f32 0.0, %v2719
        %2721 = vdwg.mxu0
        %2722 = vmatprep.subr.bf16.mxu0 0
        %2723 = vmatpush1.bf16.msra.mxu0 %v2644
        %2724 = vmatprep.subr.bf16.mxu0 0
        %2725 = vmatpush1.bf16.msra.mxu0 %v2641
        %2726 = vmatprep.subr.bf16.mxu0 0
        %2727 = vmatpush1.bf16.msra.mxu0 %v2638
        %2728 = vmatprep.subr.bf16.mxu0 0
        %2729 = vmatpush1.bf16.msra.mxu0 %v2635
        %2730 = vmatprep.subr.bf16.mxu0 0
        %2731 = vmatpush1.bf16.msra.mxu0 %v2632
        %2732 = vmatprep.subr.bf16.mxu0 0
        %2733 = vmatpush1.bf16.msra.mxu0 %v2629
        %2734 = vmatprep.subr.bf16.mxu0 0
        %2735 = vmatpush1.bf16.msra.mxu0 %v2626
        %2736 = vmatprep.subr.bf16.mxu0 0
        %2737 = vmatpush1.bf16.msra.mxu0 %v2623
        %2738 = vmatprep.subr.bf16.mxu0 0
        %2739 = vmatpush2.bf16.msra.mxu0 0
        %2740 = vmatprep.subr.bf16.mxu0 0
        %2741 = vmatpush2.bf16.msra.mxu0 0
        %2742 = vmatprep.subr.bf16.mxu0 0
        %2743 = vmatpush2.bf16.msra.mxu0 0
        %2744 = vmatprep.subr.bf16.mxu0 0
        %2745 = vmatpush2.bf16.msra.mxu0 0
        %2746 = vmatprep.subr.bf16.mxu0 0
        %2747 = vmatpush2.bf16.msra.mxu0 0
        %2748 = vmatprep.subr.bf16.mxu0 0
        %2749 = vmatpush2.bf16.msra.mxu0 0
        %2750 = vmatprep.subr.bf16.mxu0 0
        %2751 = vmatpush2.bf16.msra.mxu0 0
        %2752 = vmatprep.subr.bf16.mxu0 0
        %2753 = vmatpush2.bf16.msra.mxu0 0
        %2754 = vmatprep.mubr.bf16.mxu0 0
        %2755 = vmatmul.mubr.bf16.gmra.mxu0 %v2506
        %v2756 = vpop.f32.mrf.mxu0
        %v2757 = vadd.f32 0.0, %v2756
        %v2758 = vpop.f32.mrf.mxu0
        %v2759 = vpop.f32.mrf.mxu0
        %v2760 = vadd.f32 0.0, %v2759
        %v2761 = vpop.f32.mrf.mxu0
        %2762 = vmatprep.mubr.bf16.mxu0 0
        %2763 = vmatmul.mubr.bf16.gmra.mxu0 %v2507
        %v2764 = vpop.f32.mrf.mxu0
        %v2765 = vadd.f32 0.0, %v2764
        %v2766 = vpop.f32.mrf.mxu0
        %v2767 = vpop.f32.mrf.mxu0
        %v2768 = vadd.f32 0.0, %v2767
        %v2769 = vpop.f32.mrf.mxu0
        %2770 = vdwg.mxu0
        %v2771 = vpack.c.bf16 %v2708, %v2704
        %v2772 = vpack.c.bf16 %v2710, %v2706
        %v2773 = vpack.c.bf16 %v2760, %v2757
        %v2774 = vpack.c.bf16 %v2718, %v2714
        %v2775 = vpack.c.bf16 %v2720, %v2716
        %v2776 = vpack.c.bf16 %v2768, %v2765
        %v2778 = vsel %vm1093, %v2771, 0
        %v2781 = vsel %vm1093, %v2774, 0
        %v2784 = vsel %vm1093, %v2772, 0
        %v2787 = vsel %vm1093, %v2775, 0
        %2789 = vmatprep.subr.bf16.mxu0 0
        %2790 = vmatpush1.bf16.xpose.msra.mxu0 0
        %2791 = vmatprep.subr.bf16.mxu0 0
        %2792 = vmatpush1.bf16.xpose.msra.mxu0 0
        %2793 = vmatprep.subr.bf16.mxu0 0
        %2794 = vmatpush1.bf16.xpose.msra.mxu0 0
        %2795 = vmatprep.subr.bf16.mxu0 0
        %2796 = vmatpush1.bf16.xpose.msra.mxu0 0
        %2797 = vmatprep.subr.bf16.mxu0 0
        %2798 = vmatpush1.bf16.xpose.msra.mxu0 0
        %2799 = vmatprep.subr.bf16.mxu0 0
        %2800 = vmatpush1.bf16.xpose.msra.mxu0 0
        %2801 = vmatprep.subr.bf16.mxu0 0
        %2802 = vmatpush1.bf16.xpose.msra.mxu0 %v2787
        %2803 = vmatprep.subr.bf16.mxu0 0
        %2804 = vmatpush1.bf16.xpose.msra.mxu0 %v2784
        %2805 = vmatprep.subr.bf16.mxu0 0
        %2806 = vmatpush2.bf16.xpose.msra.mxu0 0
        %2807 = vmatprep.subr.bf16.mxu0 0
        %2808 = vmatpush2.bf16.xpose.msra.mxu0 0
        %2809 = vmatprep.subr.bf16.mxu0 0
        %2810 = vmatpush2.bf16.xpose.msra.mxu0 0
        %2811 = vmatprep.subr.bf16.mxu0 0
        %2812 = vmatpush2.bf16.xpose.msra.mxu0 0
        %2813 = vmatprep.subr.bf16.mxu0 0
        %2814 = vmatpush2.bf16.xpose.msra.mxu0 0
        %2815 = vmatprep.subr.bf16.mxu0 0
        %2816 = vmatpush2.bf16.xpose.msra.mxu0 0
        %2817 = vmatprep.subr.bf16.mxu0 0
        %2818 = vmatpush2.bf16.xpose.msra.mxu0 0
        %2819 = vmatprep.subr.bf16.mxu0 0
        %2820 = vmatpush2.bf16.xpose.msra.mxu0 0
        %2821 = vmatprep.mubr.bf16.mxu0 0
        %2822 = vmatmul.mubr.bf16.gmra.mxu0 %v2778
        %v2823 = vpop.f32.mrf.mxu0
        %v2824 = vadd.f32 %v755, %v2823
        %v2825 = vpop.f32.mrf.mxu0
        %v2826 = vpop.f32.mrf.mxu0
        %v2827 = vadd.f32 %v755, %v2826
        %v2828 = vpop.f32.mrf.mxu0
        %2829 = vmatprep.mubr.bf16.mxu0 0
        %2830 = vmatmul.mubr.bf16.gmra.mxu0 %v2781
        %v2831 = vpop.f32.mrf.mxu0
        %v2832 = vadd.f32 %v755, %v2831
        %v2833 = vpop.f32.mrf.mxu0
        %v2834 = vpop.f32.mrf.mxu0
        %v2835 = vadd.f32 %v755, %v2834
        %v2836 = vpop.f32.mrf.mxu0
        %2837 = vdwg.mxu0
        %v2838 = vsel %vm1093, %v2824, -inf
        %2839 = vmax.xlane.f32.xlu0 %v2838
        %v2840 = vpop.xlane.xlu0 %2839
        %v2841 = vsel %vm1093, %v2827, -inf
        %2842 = vmax.xlane.f32.xlu0 %v2841
        %v2843 = vpop.xlane.xlu0 %2842
        %v2844 = vsel %vm1093, %v2832, -inf
        %2845 = vmax.xlane.f32.xlu0 %v2844
        %v2846 = vpop.xlane.xlu0 %2845
        %v2847 = vsel %vm1093, %v2835, -inf
        %2848 = vmax.xlane.f32.xlu0 %v2847
        %v2849 = vpop.xlane.xlu0 %2848
        %v2850 = vsub.f32 %v2824, %v2840
        %v2851 = vsub.f32 %v2827, %v2843
        %v2852 = vsub.f32 %v2832, %v2846
        %v2853 = vsub.f32 %v2835, %v2849
        %v2854 = vmul.f32 %v2850, 1.442695
        %v2855 = vpow.pop %v2854
        %v2856 = vmul.f32 %v2851, 1.442695
        %v2857 = vpow.pop %v2856
        %v2858 = vmul.f32 %v2852, 1.442695
        %v2859 = vpow.pop %v2858
        %v2860 = vmul.f32 %v2853, 1.442695
        %v2861 = vpow.pop %v2860
        %v2862 = vsel %vm1093, %v2855, 0.0
        %2863 = vadd.xlane.f32.xlu0 %v2862
        %v2864 = vpop.xlane.xlu0 %2863
        %v2865 = vsel %vm1093, %v2857, 0.0
        %2866 = vadd.xlane.f32.xlu0 %v2865
        %v2867 = vpop.xlane.xlu0 %2866
        %v2868 = vsel %vm1093, %v2859, 0.0
        %2869 = vadd.xlane.f32.xlu0 %v2868
        %v2870 = vpop.xlane.xlu0 %2869
        %v2871 = vsel %vm1093, %v2861, 0.0
        %2872 = vadd.xlane.f32.xlu0 %v2871
        %v2873 = vpop.xlane.xlu0 %2872
        %v2874 = vrcp.pop %v2864
        %v2875 = vrcp.pop %v2867
        %v2876 = vrcp.pop %v2870
        %v2877 = vrcp.pop %v2873
        %v2878 = vmul.f32 %v2855, %v2874
        %v2879 = vmul.f32 %v2857, %v2875
        %v2880 = vmul.f32 %v2859, %v2876
        %v2881 = vmul.f32 %v2861, %v2877
        %v2882 = vpack.c.bf16 %v2879, %v2878
        %v2883 = vpack.c.bf16 %v2881, %v2880
        %v2885 = vsel %vm1093, %v2882, 0
        %v2888 = vsel %vm1093, %v2883, 0
        %2890 = vmatprep.subr.bf16.mxu0 0
        %2891 = vmatpush1.bf16.msra.mxu0 0
        %2892 = vmatprep.subr.bf16.mxu0 0
        %2893 = vmatpush1.bf16.msra.mxu0 0
        %2894 = vmatprep.subr.bf16.mxu0 0
        %2895 = vmatpush1.bf16.msra.mxu0 0
        %2896 = vmatprep.subr.bf16.mxu0 0
        %2897 = vmatpush1.bf16.msra.mxu0 0
        %2898 = vmatprep.subr.bf16.mxu0 0
        %2899 = vmatpush1.bf16.msra.mxu0 0
        %2900 = vmatprep.subr.bf16.mxu0 0
        %2901 = vmatpush1.bf16.msra.mxu0 0
        %2902 = vmatprep.subr.bf16.mxu0 0
        %2903 = vmatpush1.bf16.msra.mxu0 %v2776
        %2904 = vmatprep.subr.bf16.mxu0 0
        %2905 = vmatpush1.bf16.msra.mxu0 %v2773
        %2906 = vmatprep.subr.bf16.mxu0 0
        %2907 = vmatpush2.bf16.msra.mxu0 0
        %2908 = vmatprep.subr.bf16.mxu0 0
        %2909 = vmatpush2.bf16.msra.mxu0 0
        %2910 = vmatprep.subr.bf16.mxu0 0
        %2911 = vmatpush2.bf16.msra.mxu0 0
        %2912 = vmatprep.subr.bf16.mxu0 0
        %2913 = vmatpush2.bf16.msra.mxu0 0
        %2914 = vmatprep.subr.bf16.mxu0 0
        %2915 = vmatpush2.bf16.msra.mxu0 0
        %2916 = vmatprep.subr.bf16.mxu0 0
        %2917 = vmatpush2.bf16.msra.mxu0 0
        %2918 = vmatprep.subr.bf16.mxu0 0
        %2919 = vmatpush2.bf16.msra.mxu0 0
        %2920 = vmatprep.subr.bf16.mxu0 0
        %2921 = vmatpush2.bf16.msra.mxu0 0
        %2922 = vmatprep.mubr.bf16.mxu0 0
        %2923 = vmatmul.mubr.bf16.gmra.mxu0 %v2885
        %v2924 = vpop.f32.mrf.mxu0
        %v2925 = vadd.f32 0.0, %v2924
        %v2926 = vpop.f32.mrf.mxu0
        %v2927 = vpop.f32.mrf.mxu0
        %v2928 = vadd.f32 0.0, %v2927
        %v2929 = vpop.f32.mrf.mxu0
        %2930 = vmatprep.mubr.bf16.mxu0 0
        %2931 = vmatmul.mubr.bf16.gmra.mxu0 %v2888
        %v2932 = vpop.f32.mrf.mxu0
        %v2933 = vadd.f32 0.0, %v2932
        %v2934 = vpop.f32.mrf.mxu0
        %v2935 = vpop.f32.mrf.mxu0
        %v2936 = vadd.f32 0.0, %v2935
        %v2937 = vpop.f32.mrf.mxu0
        %2938 = vdwg.mxu0
        %2941 = vrot.lane.b32.xlu0 %v2771, 96
        %v2942 = vpop.permute.xlu0 %2941
        %2943 = vrot.lane.b32.xlu0 %v2774, 96
        %v2944 = vpop.permute.xlu0 %2943
        %2947 = vrot.lane.b32.xlu0 %v2772, 96
        %v2948 = vpop.permute.xlu0 %2947
        %2949 = vrot.lane.b32.xlu0 %v2775, 96
        %v2950 = vpop.permute.xlu0 %2949
        %v2952 = vsel %vm1093, %v2942, 0
        %v2955 = vsel %vm1093, %v2944, 0
        %v2958 = vsel %vm1093, %v2948, 0
        %v2961 = vsel %vm1093, %v2950, 0
        %2963 = vmatprep.subr.bf16.mxu0 0
        %2964 = vmatpush1.bf16.xpose.msra.mxu0 0
        %2965 = vmatprep.subr.bf16.mxu0 0
        %2966 = vmatpush1.bf16.xpose.msra.mxu0 0
        %2967 = vmatprep.subr.bf16.mxu0 0
        %2968 = vmatpush1.bf16.xpose.msra.mxu0 0
        %2969 = vmatprep.subr.bf16.mxu0 0
        %2970 = vmatpush1.bf16.xpose.msra.mxu0 0
        %2971 = vmatprep.subr.bf16.mxu0 0
        %2972 = vmatpush1.bf16.xpose.msra.mxu0 0
        %2973 = vmatprep.subr.bf16.mxu0 0
        %2974 = vmatpush1.bf16.xpose.msra.mxu0 0
        %2975 = vmatprep.subr.bf16.mxu0 0
        %2976 = vmatpush1.bf16.xpose.msra.mxu0 %v2961
        %2977 = vmatprep.subr.bf16.mxu0 0
        %2978 = vmatpush1.bf16.xpose.msra.mxu0 %v2958
        %2979 = vmatprep.subr.bf16.mxu0 0
        %2980 = vmatpush2.bf16.xpose.msra.mxu0 0
        %2981 = vmatprep.subr.bf16.mxu0 0
        %2982 = vmatpush2.bf16.xpose.msra.mxu0 0
        %2983 = vmatprep.subr.bf16.mxu0 0
        %2984 = vmatpush2.bf16.xpose.msra.mxu0 0
        %2985 = vmatprep.subr.bf16.mxu0 0
        %2986 = vmatpush2.bf16.xpose.msra.mxu0 0
        %2987 = vmatprep.subr.bf16.mxu0 0
        %2988 = vmatpush2.bf16.xpose.msra.mxu0 0
        %2989 = vmatprep.subr.bf16.mxu0 0
        %2990 = vmatpush2.bf16.xpose.msra.mxu0 0
        %2991 = vmatprep.subr.bf16.mxu0 0
        %2992 = vmatpush2.bf16.xpose.msra.mxu0 0
        %2993 = vmatprep.subr.bf16.mxu0 0
        %2994 = vmatpush2.bf16.xpose.msra.mxu0 0
        %2995 = vmatprep.mubr.bf16.mxu0 0
        %2996 = vmatmul.mubr.bf16.gmra.mxu0 %v2952
        %v2997 = vpop.f32.mrf.mxu0
        %v2998 = vadd.f32 %v755, %v2997
        %v2999 = vpop.f32.mrf.mxu0
        %v3000 = vpop.f32.mrf.mxu0
        %v3001 = vadd.f32 %v755, %v3000
        %v3002 = vpop.f32.mrf.mxu0
        %3003 = vmatprep.mubr.bf16.mxu0 0
        %3004 = vmatmul.mubr.bf16.gmra.mxu0 %v2955
        %v3005 = vpop.f32.mrf.mxu0
        %v3006 = vadd.f32 %v755, %v3005
        %v3007 = vpop.f32.mrf.mxu0
        %v3008 = vpop.f32.mrf.mxu0
        %v3009 = vadd.f32 %v755, %v3008
        %v3010 = vpop.f32.mrf.mxu0
        %3011 = vdwg.mxu0
        %v3012 = vsel %vm1093, %v2998, -inf
        %3013 = vmax.xlane.f32.xlu0 %v3012
        %v3014 = vpop.xlane.xlu0 %3013
        %v3015 = vsel %vm1093, %v3001, -inf
        %3016 = vmax.xlane.f32.xlu0 %v3015
        %v3017 = vpop.xlane.xlu0 %3016
        %v3018 = vsel %vm1093, %v3006, -inf
        %3019 = vmax.xlane.f32.xlu0 %v3018
        %v3020 = vpop.xlane.xlu0 %3019
        %v3021 = vsel %vm1093, %v3009, -inf
        %3022 = vmax.xlane.f32.xlu0 %v3021
        %v3023 = vpop.xlane.xlu0 %3022
        %v3024 = vsub.f32 %v2998, %v3014
        %v3025 = vsub.f32 %v3001, %v3017
        %v3026 = vsub.f32 %v3006, %v3020
        %v3027 = vsub.f32 %v3009, %v3023
        %v3028 = vmul.f32 %v3024, 1.442695
        %v3029 = vpow.pop %v3028
        %v3030 = vmul.f32 %v3025, 1.442695
        %v3031 = vpow.pop %v3030
        %v3032 = vmul.f32 %v3026, 1.442695
        %v3033 = vpow.pop %v3032
        %v3034 = vmul.f32 %v3027, 1.442695
        %v3035 = vpow.pop %v3034
        %v3036 = vsel %vm1093, %v3029, 0.0
        %3037 = vadd.xlane.f32.xlu0 %v3036
        %v3038 = vpop.xlane.xlu0 %3037
        %v3039 = vsel %vm1093, %v3031, 0.0
        %3040 = vadd.xlane.f32.xlu0 %v3039
        %v3041 = vpop.xlane.xlu0 %3040
        %v3042 = vsel %vm1093, %v3033, 0.0
        %3043 = vadd.xlane.f32.xlu0 %v3042
        %v3044 = vpop.xlane.xlu0 %3043
        %v3045 = vsel %vm1093, %v3035, 0.0
        %3046 = vadd.xlane.f32.xlu0 %v3045
        %v3047 = vpop.xlane.xlu0 %3046
        %v3048 = vrcp.pop %v3038
        %v3049 = vrcp.pop %v3041
        %v3050 = vrcp.pop %v3044
        %v3051 = vrcp.pop %v3047
        %v3052 = vmul.f32 %v3029, %v3048
        %v3053 = vmul.f32 %v3031, %v3049
        %v3054 = vmul.f32 %v3033, %v3050
        %v3055 = vmul.f32 %v3035, %v3051
        %v3056 = vpack.c.bf16 %v3053, %v3052
        %v3057 = vpack.c.bf16 %v3055, %v3054
        %3060 = vrot.lane.b32.xlu0 %v2773, 96
        %v3061 = vpop.permute.xlu0 %3060
        %3062 = vrot.lane.b32.xlu0 %v2776, 96
        %v3063 = vpop.permute.xlu0 %3062
        %v3067 = vsel %vm1093, %v3056, 0
        %v3070 = vsel %vm1093, %v3057, 0
        %3072 = vmatprep.subr.bf16.mxu0 0
        %3073 = vmatpush1.bf16.msra.mxu0 0
        %3074 = vmatprep.subr.bf16.mxu0 0
        %3075 = vmatpush1.bf16.msra.mxu0 0
        %3076 = vmatprep.subr.bf16.mxu0 0
        %3077 = vmatpush1.bf16.msra.mxu0 0
        %3078 = vmatprep.subr.bf16.mxu0 0
        %3079 = vmatpush1.bf16.msra.mxu0 0
        %3080 = vmatprep.subr.bf16.mxu0 0
        %3081 = vmatpush1.bf16.msra.mxu0 0
        %3082 = vmatprep.subr.bf16.mxu0 0
        %3083 = vmatpush1.bf16.msra.mxu0 0
        %3084 = vmatprep.subr.bf16.mxu0 0
        %3085 = vmatpush1.bf16.msra.mxu0 %v3063
        %3086 = vmatprep.subr.bf16.mxu0 0
        %3087 = vmatpush1.bf16.msra.mxu0 %v3061
        %3088 = vmatprep.subr.bf16.mxu0 0
        %3089 = vmatpush2.bf16.msra.mxu0 0
        %3090 = vmatprep.subr.bf16.mxu0 0
        %3091 = vmatpush2.bf16.msra.mxu0 0
        %3092 = vmatprep.subr.bf16.mxu0 0
        %3093 = vmatpush2.bf16.msra.mxu0 0
        %3094 = vmatprep.subr.bf16.mxu0 0
        %3095 = vmatpush2.bf16.msra.mxu0 0
        %3096 = vmatprep.subr.bf16.mxu0 0
        %3097 = vmatpush2.bf16.msra.mxu0 0
        %3098 = vmatprep.subr.bf16.mxu0 0
        %3099 = vmatpush2.bf16.msra.mxu0 0
        %3100 = vmatprep.subr.bf16.mxu0 0
        %3101 = vmatpush2.bf16.msra.mxu0 0
        %3102 = vmatprep.subr.bf16.mxu0 0
        %3103 = vmatpush2.bf16.msra.mxu0 0
        %3104 = vmatprep.mubr.bf16.mxu0 0
        %3105 = vmatmul.mubr.bf16.gmra.mxu0 %v3067
        %v3106 = vpop.f32.mrf.mxu0
        %v3107 = vadd.f32 0.0, %v3106
        %v3108 = vpop.f32.mrf.mxu0
        %v3109 = vpop.f32.mrf.mxu0
        %v3110 = vadd.f32 0.0, %v3109
        %v3111 = vpop.f32.mrf.mxu0
        %3112 = vmatprep.mubr.bf16.mxu0 0
        %3113 = vmatmul.mubr.bf16.gmra.mxu0 %v3070
        %v3114 = vpop.f32.mrf.mxu0
        %v3115 = vadd.f32 0.0, %v3114
        %v3116 = vpop.f32.mrf.mxu0
        %v3117 = vpop.f32.mrf.mxu0
        %v3118 = vadd.f32 0.0, %v3117
        %v3119 = vpop.f32.mrf.mxu0
        %3120 = vdwg.mxu0
        %3121 = vrot.lane.b32.xlu0 %v2771, 64
        %v3122 = vpop.permute.xlu0 %3121
        %3123 = vrot.lane.b32.xlu0 %v2774, 64
        %v3124 = vpop.permute.xlu0 %3123
        %3125 = vrot.lane.b32.xlu0 %v2772, 64
        %v3126 = vpop.permute.xlu0 %3125
        %3127 = vrot.lane.b32.xlu0 %v2775, 64
        %v3128 = vpop.permute.xlu0 %3127
        %v3130 = vsel %vm1093, %v3122, 0
        %v3133 = vsel %vm1093, %v3124, 0
        %v3136 = vsel %vm1093, %v3126, 0
        %v3139 = vsel %vm1093, %v3128, 0
        %3141 = vmatprep.subr.bf16.mxu0 0
        %3142 = vmatpush1.bf16.xpose.msra.mxu0 0
        %3143 = vmatprep.subr.bf16.mxu0 0
        %3144 = vmatpush1.bf16.xpose.msra.mxu0 0
        %3145 = vmatprep.subr.bf16.mxu0 0
        %3146 = vmatpush1.bf16.xpose.msra.mxu0 0
        %3147 = vmatprep.subr.bf16.mxu0 0
        %3148 = vmatpush1.bf16.xpose.msra.mxu0 0
        %3149 = vmatprep.subr.bf16.mxu0 0
        %3150 = vmatpush1.bf16.xpose.msra.mxu0 0
        %3151 = vmatprep.subr.bf16.mxu0 0
        %3152 = vmatpush1.bf16.xpose.msra.mxu0 0
        %3153 = vmatprep.subr.bf16.mxu0 0
        %3154 = vmatpush1.bf16.xpose.msra.mxu0 %v3139
        %3155 = vmatprep.subr.bf16.mxu0 0
        %3156 = vmatpush1.bf16.xpose.msra.mxu0 %v3136
        %3157 = vmatprep.subr.bf16.mxu0 0
        %3158 = vmatpush2.bf16.xpose.msra.mxu0 0
        %3159 = vmatprep.subr.bf16.mxu0 0
        %3160 = vmatpush2.bf16.xpose.msra.mxu0 0
        %3161 = vmatprep.subr.bf16.mxu0 0
        %3162 = vmatpush2.bf16.xpose.msra.mxu0 0
        %3163 = vmatprep.subr.bf16.mxu0 0
        %3164 = vmatpush2.bf16.xpose.msra.mxu0 0
        %3165 = vmatprep.subr.bf16.mxu0 0
        %3166 = vmatpush2.bf16.xpose.msra.mxu0 0
        %3167 = vmatprep.subr.bf16.mxu0 0
        %3168 = vmatpush2.bf16.xpose.msra.mxu0 0
        %3169 = vmatprep.subr.bf16.mxu0 0
        %3170 = vmatpush2.bf16.xpose.msra.mxu0 0
        %3171 = vmatprep.subr.bf16.mxu0 0
        %3172 = vmatpush2.bf16.xpose.msra.mxu0 0
        %3173 = vmatprep.mubr.bf16.mxu0 0
        %3174 = vmatmul.mubr.bf16.gmra.mxu0 %v3130
        %v3175 = vpop.f32.mrf.mxu0
        %v3176 = vadd.f32 %v755, %v3175
        %v3177 = vpop.f32.mrf.mxu0
        %v3178 = vpop.f32.mrf.mxu0
        %v3179 = vadd.f32 %v755, %v3178
        %v3180 = vpop.f32.mrf.mxu0
        %3181 = vmatprep.mubr.bf16.mxu0 0
        %3182 = vmatmul.mubr.bf16.gmra.mxu0 %v3133
        %v3183 = vpop.f32.mrf.mxu0
        %v3184 = vadd.f32 %v755, %v3183
        %v3185 = vpop.f32.mrf.mxu0
        %v3186 = vpop.f32.mrf.mxu0
        %v3187 = vadd.f32 %v755, %v3186
        %v3188 = vpop.f32.mrf.mxu0
        %3189 = vdwg.mxu0
        %v3190 = vsel %vm1093, %v3176, -inf
        %3191 = vmax.xlane.f32.xlu0 %v3190
        %v3192 = vpop.xlane.xlu0 %3191
        %v3193 = vsel %vm1093, %v3179, -inf
        %3194 = vmax.xlane.f32.xlu0 %v3193
        %v3195 = vpop.xlane.xlu0 %3194
        %v3196 = vsel %vm1093, %v3184, -inf
        %3197 = vmax.xlane.f32.xlu0 %v3196
        %v3198 = vpop.xlane.xlu0 %3197
        %v3199 = vsel %vm1093, %v3187, -inf
        %3200 = vmax.xlane.f32.xlu0 %v3199
        %v3201 = vpop.xlane.xlu0 %3200
        %v3202 = vsub.f32 %v3176, %v3192
        %v3203 = vsub.f32 %v3179, %v3195
        %v3204 = vsub.f32 %v3184, %v3198
        %v3205 = vsub.f32 %v3187, %v3201
        %v3206 = vmul.f32 %v3202, 1.442695
        %v3207 = vpow.pop %v3206
        %v3208 = vmul.f32 %v3203, 1.442695
        %v3209 = vpow.pop %v3208
        %v3210 = vmul.f32 %v3204, 1.442695
        %v3211 = vpow.pop %v3210
        %v3212 = vmul.f32 %v3205, 1.442695
        %v3213 = vpow.pop %v3212
        %v3214 = vsel %vm1093, %v3207, 0.0
        %3215 = vadd.xlane.f32.xlu0 %v3214
        %v3216 = vpop.xlane.xlu0 %3215
        %v3217 = vsel %vm1093, %v3209, 0.0
        %3218 = vadd.xlane.f32.xlu0 %v3217
        %v3219 = vpop.xlane.xlu0 %3218
        %v3220 = vsel %vm1093, %v3211, 0.0
        %3221 = vadd.xlane.f32.xlu0 %v3220
        %v3222 = vpop.xlane.xlu0 %3221
        %v3223 = vsel %vm1093, %v3213, 0.0
        %3224 = vadd.xlane.f32.xlu0 %v3223
        %v3225 = vpop.xlane.xlu0 %3224
        %v3226 = vrcp.pop %v3216
        %v3227 = vrcp.pop %v3219
        %v3228 = vrcp.pop %v3222
        %v3229 = vrcp.pop %v3225
        %v3230 = vmul.f32 %v3207, %v3226
        %v3231 = vmul.f32 %v3209, %v3227
        %v3232 = vmul.f32 %v3211, %v3228
        %v3233 = vmul.f32 %v3213, %v3229
        %v3234 = vpack.c.bf16 %v3231, %v3230
        %v3235 = vpack.c.bf16 %v3233, %v3232
        %3236 = vrot.lane.b32.xlu0 %v2773, 64
        %v3237 = vpop.permute.xlu0 %3236
        %3238 = vrot.lane.b32.xlu0 %v2776, 64
        %v3239 = vpop.permute.xlu0 %3238
        %v3243 = vsel %vm1093, %v3234, 0
        %v3246 = vsel %vm1093, %v3235, 0
        %3248 = vmatprep.subr.bf16.mxu0 0
        %3249 = vmatpush1.bf16.msra.mxu0 0
        %3250 = vmatprep.subr.bf16.mxu0 0
        %3251 = vmatpush1.bf16.msra.mxu0 0
        %3252 = vmatprep.subr.bf16.mxu0 0
        %3253 = vmatpush1.bf16.msra.mxu0 0
        %3254 = vmatprep.subr.bf16.mxu0 0
        %3255 = vmatpush1.bf16.msra.mxu0 0
        %3256 = vmatprep.subr.bf16.mxu0 0
        %3257 = vmatpush1.bf16.msra.mxu0 0
        %3258 = vmatprep.subr.bf16.mxu0 0
        %3259 = vmatpush1.bf16.msra.mxu0 0
        %3260 = vmatprep.subr.bf16.mxu0 0
        %3261 = vmatpush1.bf16.msra.mxu0 %v3239
        %3262 = vmatprep.subr.bf16.mxu0 0
        %3263 = vmatpush1.bf16.msra.mxu0 %v3237
        %3264 = vmatprep.subr.bf16.mxu0 0
        %3265 = vmatpush2.bf16.msra.mxu0 0
        %3266 = vmatprep.subr.bf16.mxu0 0
        %3267 = vmatpush2.bf16.msra.mxu0 0
        %3268 = vmatprep.subr.bf16.mxu0 0
        %3269 = vmatpush2.bf16.msra.mxu0 0
        %3270 = vmatprep.subr.bf16.mxu0 0
        %3271 = vmatpush2.bf16.msra.mxu0 0
        %3272 = vmatprep.subr.bf16.mxu0 0
        %3273 = vmatpush2.bf16.msra.mxu0 0
        %3274 = vmatprep.subr.bf16.mxu0 0
        %3275 = vmatpush2.bf16.msra.mxu0 0
        %3276 = vmatprep.subr.bf16.mxu0 0
        %3277 = vmatpush2.bf16.msra.mxu0 0
        %3278 = vmatprep.subr.bf16.mxu0 0
        %3279 = vmatpush2.bf16.msra.mxu0 0
        %3280 = vmatprep.mubr.bf16.mxu0 0
        %3281 = vmatmul.mubr.bf16.gmra.mxu0 %v3243
        %v3282 = vpop.f32.mrf.mxu0
        %v3283 = vadd.f32 0.0, %v3282
        %v3284 = vpop.f32.mrf.mxu0
        %v3285 = vpop.f32.mrf.mxu0
        %v3286 = vadd.f32 0.0, %v3285
        %v3287 = vpop.f32.mrf.mxu0
        %3288 = vmatprep.mubr.bf16.mxu0 0
        %3289 = vmatmul.mubr.bf16.gmra.mxu0 %v3246
        %v3290 = vpop.f32.mrf.mxu0
        %v3291 = vadd.f32 0.0, %v3290
        %v3292 = vpop.f32.mrf.mxu0
        %v3293 = vpop.f32.mrf.mxu0
        %v3294 = vadd.f32 0.0, %v3293
        %v3295 = vpop.f32.mrf.mxu0
        %3296 = vdwg.mxu0
        %3297 = vrot.lane.b32.xlu0 %v2771, 32
        %v3298 = vpop.permute.xlu0 %3297
        %3299 = vrot.lane.b32.xlu0 %v2774, 32
        %v3300 = vpop.permute.xlu0 %3299
        %3301 = vrot.lane.b32.xlu0 %v2772, 32
        %v3302 = vpop.permute.xlu0 %3301
        %3303 = vrot.lane.b32.xlu0 %v2775, 32
        %v3304 = vpop.permute.xlu0 %3303
        %v3306 = vsel %vm1093, %v3298, 0
        %v3309 = vsel %vm1093, %v3300, 0
        %v3312 = vsel %vm1093, %v3302, 0
        %v3315 = vsel %vm1093, %v3304, 0
        %3317 = vmatprep.subr.bf16.mxu0 0
        %3318 = vmatpush1.bf16.xpose.msra.mxu0 0
        %3319 = vmatprep.subr.bf16.mxu0 0
        %3320 = vmatpush1.bf16.xpose.msra.mxu0 0
        %3321 = vmatprep.subr.bf16.mxu0 0
        %3322 = vmatpush1.bf16.xpose.msra.mxu0 0
        %3323 = vmatprep.subr.bf16.mxu0 0
        %3324 = vmatpush1.bf16.xpose.msra.mxu0 0
        %3325 = vmatprep.subr.bf16.mxu0 0
        %3326 = vmatpush1.bf16.xpose.msra.mxu0 0
        %3327 = vmatprep.subr.bf16.mxu0 0
        %3328 = vmatpush1.bf16.xpose.msra.mxu0 0
        %3329 = vmatprep.subr.bf16.mxu0 0
        %3330 = vmatpush1.bf16.xpose.msra.mxu0 %v3315
        %3331 = vmatprep.subr.bf16.mxu0 0
        %3332 = vmatpush1.bf16.xpose.msra.mxu0 %v3312
        %3333 = vmatprep.subr.bf16.mxu0 0
        %3334 = vmatpush2.bf16.xpose.msra.mxu0 0
        %3335 = vmatprep.subr.bf16.mxu0 0
        %3336 = vmatpush2.bf16.xpose.msra.mxu0 0
        %3337 = vmatprep.subr.bf16.mxu0 0
        %3338 = vmatpush2.bf16.xpose.msra.mxu0 0
        %3339 = vmatprep.subr.bf16.mxu0 0
        %3340 = vmatpush2.bf16.xpose.msra.mxu0 0
        %3341 = vmatprep.subr.bf16.mxu0 0
        %3342 = vmatpush2.bf16.xpose.msra.mxu0 0
        %3343 = vmatprep.subr.bf16.mxu0 0
        %3344 = vmatpush2.bf16.xpose.msra.mxu0 0
        %3345 = vmatprep.subr.bf16.mxu0 0
        %3346 = vmatpush2.bf16.xpose.msra.mxu0 0
        %3347 = vmatprep.subr.bf16.mxu0 0
        %3348 = vmatpush2.bf16.xpose.msra.mxu0 0
        %3349 = vmatprep.mubr.bf16.mxu0 0
        %3350 = vmatmul.mubr.bf16.gmra.mxu0 %v3306
        %v3351 = vpop.f32.mrf.mxu0
        %v3352 = vadd.f32 %v755, %v3351
        %v3353 = vpop.f32.mrf.mxu0
        %v3354 = vpop.f32.mrf.mxu0
        %v3355 = vadd.f32 %v755, %v3354
        %v3356 = vpop.f32.mrf.mxu0
        %3357 = vmatprep.mubr.bf16.mxu0 0
        %3358 = vmatmul.mubr.bf16.gmra.mxu0 %v3309
        %v3359 = vpop.f32.mrf.mxu0
        %v3360 = vadd.f32 %v755, %v3359
        %v3361 = vpop.f32.mrf.mxu0
        %v3362 = vpop.f32.mrf.mxu0
        %v3363 = vadd.f32 %v755, %v3362
        %v3364 = vpop.f32.mrf.mxu0
        %3365 = vdwg.mxu0
        %v3366 = vsel %vm1093, %v3352, -inf
        %3367 = vmax.xlane.f32.xlu0 %v3366
        %v3368 = vpop.xlane.xlu0 %3367
        %v3369 = vsel %vm1093, %v3355, -inf
        %3370 = vmax.xlane.f32.xlu0 %v3369
        %v3371 = vpop.xlane.xlu0 %3370
        %v3372 = vsel %vm1093, %v3360, -inf
        %3373 = vmax.xlane.f32.xlu0 %v3372
        %v3374 = vpop.xlane.xlu0 %3373
        %v3375 = vsel %vm1093, %v3363, -inf
        %3376 = vmax.xlane.f32.xlu0 %v3375
        %v3377 = vpop.xlane.xlu0 %3376
        %v3378 = vsub.f32 %v3352, %v3368
        %v3379 = vsub.f32 %v3355, %v3371
        %v3380 = vsub.f32 %v3360, %v3374
        %v3381 = vsub.f32 %v3363, %v3377
        %v3382 = vmul.f32 %v3378, 1.442695
        %v3383 = vpow.pop %v3382
        %v3384 = vmul.f32 %v3379, 1.442695
        %v3385 = vpow.pop %v3384
        %v3386 = vmul.f32 %v3380, 1.442695
        %v3387 = vpow.pop %v3386
        %v3388 = vmul.f32 %v3381, 1.442695
        %v3389 = vpow.pop %v3388
        %v3390 = vsel %vm1093, %v3383, 0.0
        %3391 = vadd.xlane.f32.xlu0 %v3390
        %v3392 = vpop.xlane.xlu0 %3391
        %v3393 = vsel %vm1093, %v3385, 0.0
        %3394 = vadd.xlane.f32.xlu0 %v3393
        %v3395 = vpop.xlane.xlu0 %3394
        %v3396 = vsel %vm1093, %v3387, 0.0
        %3397 = vadd.xlane.f32.xlu0 %v3396
        %v3398 = vpop.xlane.xlu0 %3397
        %v3399 = vsel %vm1093, %v3389, 0.0
        %3400 = vadd.xlane.f32.xlu0 %v3399
        %v3401 = vpop.xlane.xlu0 %3400
        %v3402 = vrcp.pop %v3392
        %v3403 = vrcp.pop %v3395
        %v3404 = vrcp.pop %v3398
        %v3405 = vrcp.pop %v3401
        %v3406 = vmul.f32 %v3383, %v3402
        %v3407 = vmul.f32 %v3385, %v3403
        %v3408 = vmul.f32 %v3387, %v3404
        %v3409 = vmul.f32 %v3389, %v3405
        %v3410 = vpack.c.bf16 %v3407, %v3406
        %v3411 = vpack.c.bf16 %v3409, %v3408
        %3412 = vrot.lane.b32.xlu0 %v2773, 32
        %v3413 = vpop.permute.xlu0 %3412
        %3414 = vrot.lane.b32.xlu0 %v2776, 32
        %v3415 = vpop.permute.xlu0 %3414
        %v3419 = vsel %vm1093, %v3410, 0
        %v3422 = vsel %vm1093, %v3411, 0
        %3424 = vmatprep.subr.bf16.mxu0 0
        %3425 = vmatpush1.bf16.msra.mxu0 0
        %3426 = vmatprep.subr.bf16.mxu0 0
        %3427 = vmatpush1.bf16.msra.mxu0 0
        %3428 = vmatprep.subr.bf16.mxu0 0
        %3429 = vmatpush1.bf16.msra.mxu0 0
        %3430 = vmatprep.subr.bf16.mxu0 0
        %3431 = vmatpush1.bf16.msra.mxu0 0
        %3432 = vmatprep.subr.bf16.mxu0 0
        %3433 = vmatpush1.bf16.msra.mxu0 0
        %3434 = vmatprep.subr.bf16.mxu0 0
        %3435 = vmatpush1.bf16.msra.mxu0 0
        %3436 = vmatprep.subr.bf16.mxu0 0
        %3437 = vmatpush1.bf16.msra.mxu0 %v3415
        %3438 = vmatprep.subr.bf16.mxu0 0
        %3439 = vmatpush1.bf16.msra.mxu0 %v3413
        %3440 = vmatprep.subr.bf16.mxu0 0
        %3441 = vmatpush2.bf16.msra.mxu0 0
        %3442 = vmatprep.subr.bf16.mxu0 0
        %3443 = vmatpush2.bf16.msra.mxu0 0
        %3444 = vmatprep.subr.bf16.mxu0 0
        %3445 = vmatpush2.bf16.msra.mxu0 0
        %3446 = vmatprep.subr.bf16.mxu0 0
        %3447 = vmatpush2.bf16.msra.mxu0 0
        %3448 = vmatprep.subr.bf16.mxu0 0
        %3449 = vmatpush2.bf16.msra.mxu0 0
        %3450 = vmatprep.subr.bf16.mxu0 0
        %3451 = vmatpush2.bf16.msra.mxu0 0
        %3452 = vmatprep.subr.bf16.mxu0 0
        %3453 = vmatpush2.bf16.msra.mxu0 0
        %3454 = vmatprep.subr.bf16.mxu0 0
        %3455 = vmatpush2.bf16.msra.mxu0 0
        %3456 = vmatprep.mubr.bf16.mxu0 0
        %3457 = vmatmul.mubr.bf16.gmra.mxu0 %v3419
        %v3458 = vpop.f32.mrf.mxu0
        %v3459 = vadd.f32 0.0, %v3458
        %v3460 = vpop.f32.mrf.mxu0
        %v3461 = vpop.f32.mrf.mxu0
        %v3462 = vadd.f32 0.0, %v3461
        %v3463 = vpop.f32.mrf.mxu0
        %3464 = vmatprep.mubr.bf16.mxu0 0
        %3465 = vmatmul.mubr.bf16.gmra.mxu0 %v3422
        %v3466 = vpop.f32.mrf.mxu0
        %v3467 = vadd.f32 0.0, %v3466
        %v3468 = vpop.f32.mrf.mxu0
        %v3469 = vpop.f32.mrf.mxu0
        %v3470 = vadd.f32 0.0, %v3469
        %v3471 = vpop.f32.mrf.mxu0
        %3472 = vdwg.mxu0
        %3477 = vrot.lane.b32.xlu0 %v3107, 32
        %v3478 = vpop.permute.xlu0 %3477
        %3479 = vrot.lane.b32.xlu0 %v3110, 32
        %v3480 = vpop.permute.xlu0 %3479
        %3481 = vrot.lane.b32.xlu0 %v3115, 32
        %v3482 = vpop.permute.xlu0 %3481
        %3483 = vrot.lane.b32.xlu0 %v3118, 32
        %v3484 = vpop.permute.xlu0 %3483
        %3493 = vrot.lane.b32.xlu0 %v3283, 64
        %v3494 = vpop.permute.xlu0 %3493
        %3495 = vrot.lane.b32.xlu0 %v3286, 64
        %v3496 = vpop.permute.xlu0 %3495
        %3497 = vrot.lane.b32.xlu0 %v3291, 64
        %v3498 = vpop.permute.xlu0 %3497
        %3499 = vrot.lane.b32.xlu0 %v3294, 64
        %v3500 = vpop.permute.xlu0 %3499
        %3509 = vrot.lane.b32.xlu0 %v3459, 96
        %v3510 = vpop.permute.xlu0 %3509
        %3511 = vrot.lane.b32.xlu0 %v3462, 96
        %v3512 = vpop.permute.xlu0 %3511
        %3513 = vrot.lane.b32.xlu0 %v3467, 96
        %v3514 = vpop.permute.xlu0 %3513
        %3515 = vrot.lane.b32.xlu0 %v3470, 96
        %v3516 = vpop.permute.xlu0 %3515
        %v3521 = vsel %vm1093, %v2925, %v3478
        %v3522 = vsel %vm1093, %v2928, %v3480
        %v3523 = vsel %vm1093, %v2933, %v3482
        %v3524 = vsel %vm1093, %v2936, %v3484
        %v3525 = vsel %vm696, %v3521, %v3494
        %v3526 = vsel %vm696, %v3522, %v3496
        %v3527 = vsel %vm696, %v3523, %v3498
        %v3528 = vsel %vm696, %v3524, %v3500
        %v3529 = vsel %vm1846, %v3525, %v3510
        %v3530 = vsel %vm1846, %v3526, %v3512
        %v3531 = vsel %vm1846, %v3527, %v3514
        %v3532 = vsel %vm1846, %v3528, %v3516
        %v3533 = vpack.c.bf16 %v3530, %v3529
        %v3534 = vpack.c.bf16 %v3532, %v3531
        %s3535 = scalar_lea.vmem %s6, 64
        %v3536 = vld [vmem:[%s3535] sm:$0xf]
        %v3537 = vld [vmem:[%s3535 + $0x4] sm:$0xf]
        %v3538 = vld [vmem:[%s3535 + $0x8] sm:$0xf]
        %v3539 = vld [vmem:[%s3535 + $0xc] sm:$0xf]
        %v3540 = vld [vmem:[%s3535 + $0x10] sm:$0xf]
        %v3541 = vld [vmem:[%s3535 + $0x14] sm:$0xf]
        %v3542 = vld [vmem:[%s3535 + $0x18] sm:$0xf]
        %v3543 = vld [vmem:[%s3535 + $0x1c] sm:$0xf]
        %v3544 = vld [vmem:[%s3535 + $0x20] sm:$0xf]
        %v3545 = vld [vmem:[%s3535 + $0x24] sm:$0xf]
        %v3546 = vld [vmem:[%s3535 + $0x28] sm:$0xf]
        %v3547 = vld [vmem:[%s3535 + $0x2c] sm:$0xf]
        %v3548 = vld [vmem:[%s3535 + $0x30] sm:$0xf]
        %v3549 = vld [vmem:[%s3535 + $0x34] sm:$0xf]
        %v3550 = vld [vmem:[%s3535 + $0x38] sm:$0xf]
        %v3551 = vld [vmem:[%s3535 + $0x3c] sm:$0xf]
        %s3552 = scalar_lea.vmem %s7, 1
        %v3553 = vld [vmem:[%s3552] sm:$0x1]
        %v3555 = vlaneseq
        %v3556 = vshrl.u32 %v3555, 7
        %v3557 = vsub.s32 0, %v3556
        %v3558 = vrot.slane %v3553, %v3557
        %v3576 = vunpack.c.l.b16 %v3536
        %v3577 = vunpack.c.l.b16 %v3537
        %v3578 = vunpack.c.l.b16 %v3538
        %v3579 = vunpack.c.l.b16 %v3539
        %v3580 = vunpack.c.l.b16 %v3540
        %v3581 = vunpack.c.l.b16 %v3541
        %v3582 = vunpack.c.l.b16 %v3542
        %v3583 = vunpack.c.l.b16 %v3543
        %v3584 = vunpack.c.l.b16 %v3544
        %v3585 = vunpack.c.l.b16 %v3545
        %v3586 = vunpack.c.l.b16 %v3546
        %v3587 = vunpack.c.l.b16 %v3547
        %v3588 = vunpack.c.l.b16 %v3548
        %v3589 = vunpack.c.l.b16 %v3549
        %v3590 = vunpack.c.l.b16 %v3550
        %v3591 = vunpack.c.l.b16 %v3551
        %v3592 = vpack.c.b16 %v3577, %v3576
        %v3593 = vpack.c.b16 %v3579, %v3578
        %v3594 = vpack.c.b16 %v3581, %v3580
        %v3595 = vpack.c.b16 %v3583, %v3582
        %v3596 = vpack.c.b16 %v3585, %v3584
        %v3597 = vpack.c.b16 %v3587, %v3586
        %v3598 = vpack.c.b16 %v3589, %v3588
        %v3599 = vpack.c.b16 %v3591, %v3590
        %3608 = vmatprep.subr.bf16.mxu0 0
        %3609 = vmatpush1.bf16.msra.mxu0 %v3599
        %3610 = vmatprep.subr.bf16.mxu0 0
        %3611 = vmatpush1.bf16.msra.mxu0 %v3598
        %3612 = vmatprep.subr.bf16.mxu0 0
        %3613 = vmatpush1.bf16.msra.mxu0 %v3597
        %3614 = vmatprep.subr.bf16.mxu0 0
        %3615 = vmatpush1.bf16.msra.mxu0 %v3596
        %3616 = vmatprep.subr.bf16.mxu0 0
        %3617 = vmatpush1.bf16.msra.mxu0 %v3595
        %3618 = vmatprep.subr.bf16.mxu0 0
        %3619 = vmatpush1.bf16.msra.mxu0 %v3594
        %3620 = vmatprep.subr.bf16.mxu0 0
        %3621 = vmatpush1.bf16.msra.mxu0 %v3593
        %3622 = vmatprep.subr.bf16.mxu0 0
        %3623 = vmatpush1.bf16.msra.mxu0 %v3592
        %3624 = vmatprep.subr.bf16.mxu0 0
        %3625 = vmatpush2.bf16.msra.mxu0 0
        %3626 = vmatprep.subr.bf16.mxu0 0
        %3627 = vmatpush2.bf16.msra.mxu0 0
        %3628 = vmatprep.subr.bf16.mxu0 0
        %3629 = vmatpush2.bf16.msra.mxu0 0
        %3630 = vmatprep.subr.bf16.mxu0 0
        %3631 = vmatpush2.bf16.msra.mxu0 0
        %3632 = vmatprep.subr.bf16.mxu0 0
        %3633 = vmatpush2.bf16.msra.mxu0 0
        %3634 = vmatprep.subr.bf16.mxu0 0
        %3635 = vmatpush2.bf16.msra.mxu0 0
        %3636 = vmatprep.subr.bf16.mxu0 0
        %3637 = vmatpush2.bf16.msra.mxu0 0
        %3638 = vmatprep.subr.bf16.mxu0 0
        %3639 = vmatpush2.bf16.msra.mxu0 0
        %3640 = vmatprep.mubr.bf16.mxu0 0
        %3641 = vmatmul.mubr.bf16.gmra.mxu0 %v3533
        %v3642 = vpop.f32.mrf.mxu0
        %v3643 = vadd.f32 %v3558, %v3642
        %v3644 = vpop.f32.mrf.mxu0
        %v3645 = vpop.f32.mrf.mxu0
        %v3646 = vadd.f32 %v3558, %v3645
        %v3647 = vpop.f32.mrf.mxu0
        %3648 = vmatprep.mubr.bf16.mxu0 0
        %3649 = vmatmul.mubr.bf16.gmra.mxu0 %v3534
        %v3650 = vpop.f32.mrf.mxu0
        %v3651 = vadd.f32 %v3558, %v3650
        %v3652 = vpop.f32.mrf.mxu0
        %v3653 = vpop.f32.mrf.mxu0
        %v3654 = vadd.f32 %v3558, %v3653
        %v3655 = vpop.f32.mrf.mxu0
        %3656 = vdwg.mxu0
        %v3657 = vadd.f32 %v3643, %v2434
        %v3658 = vadd.f32 %v3646, %v2435
        %v3659 = vadd.f32 %v3651, %v2436
        %v3660 = vadd.f32 %v3654, %v2437
        %s3661 = scalar_lea.vmem %s8, 1
        %v3662 = vld [vmem:[%s3661] sm:$0x1]
        %s3663 = scalar_lea.vmem %s9, 1
        %v3664 = vld [vmem:[%s3663] sm:$0x1]
        %3665 = vadd.xlane.f32.xlu0 %v3657
        %v3666 = vpop.xlane.xlu0 %3665
        %3667 = vadd.xlane.f32.xlu0 %v3658
        %v3668 = vpop.xlane.xlu0 %3667
        %3669 = vadd.xlane.f32.xlu0 %v3659
        %v3670 = vpop.xlane.xlu0 %3669
        %3671 = vadd.xlane.f32.xlu0 %v3660
        %v3672 = vpop.xlane.xlu0 %3671
        %v3673 = vmul.f32 %v3666, %v766
        %v3674 = vmul.f32 %v3668, %v766
        %v3675 = vmul.f32 %v3670, %v766
        %v3676 = vmul.f32 %v3672, %v766
        %v3677 = vsub.f32 %v3657, %v3673
        %v3678 = vsub.f32 %v3658, %v3674
        %v3679 = vsub.f32 %v3659, %v3675
        %v3680 = vsub.f32 %v3660, %v3676
        %v3681 = vmul.f32 %v3677, %v3677
        %v3682 = vmul.f32 %v3678, %v3678
        %v3683 = vmul.f32 %v3679, %v3679
        %v3684 = vmul.f32 %v3680, %v3680
        %3685 = vadd.xlane.f32.xlu0 %v3681
        %v3686 = vpop.xlane.xlu0 %3685
        %3687 = vadd.xlane.f32.xlu0 %v3682
        %v3688 = vpop.xlane.xlu0 %3687
        %3689 = vadd.xlane.f32.xlu0 %v3683
        %v3690 = vpop.xlane.xlu0 %3689
        %3691 = vadd.xlane.f32.xlu0 %v3684
        %v3692 = vpop.xlane.xlu0 %3691
        %v3693 = vmul.f32 %v3686, %v766
        %v3694 = vmul.f32 %v3688, %v766
        %v3695 = vmul.f32 %v3690, %v766
        %v3696 = vmul.f32 %v3692, %v766
        %v3697 = vadd.f32 %v3693, 1e-05
        %v3698 = vadd.f32 %v3694, 1e-05
        %v3699 = vadd.f32 %v3695, 1e-05
        %v3700 = vadd.f32 %v3696, 1e-05
        %v3701 = vrsqrt.pop %v3697
        %v3702 = vrsqrt.pop %v3698
        %v3703 = vrsqrt.pop %v3699
        %v3704 = vrsqrt.pop %v3700
        %v3705 = vmul.f32 %v3677, %v3701
        %v3706 = vmul.f32 %v3678, %v3702
        %v3707 = vmul.f32 %v3679, %v3703
        %v3708 = vmul.f32 %v3680, %v3704
        %v3710 = vlaneseq
        %v3711 = vshrl.u32 %v3710, 7
        %v3712 = vsub.s32 0, %v3711
        %v3713 = vrot.slane %v3662, %v3712
        %v3715 = vmul.f32 %v3705, %v3713
        %v3716 = vmul.f32 %v3706, %v3713
        %v3717 = vmul.f32 %v3707, %v3713
        %v3718 = vmul.f32 %v3708, %v3713
        %v3720 = vlaneseq
        %v3721 = vshrl.u32 %v3720, 7
        %v3722 = vsub.s32 0, %v3721
        %v3723 = vrot.slane %v3664, %v3722
        %v3725 = vadd.f32 %v3715, %v3723
        %v3726 = vadd.f32 %v3716, %v3723
        %v3727 = vadd.f32 %v3717, %v3723
        %v3728 = vadd.f32 %v3718, %v3723
        %v3729 = vpack.c.bf16 %v3726, %v3725
        %v3730 = vpack.c.bf16 %v3728, %v3727
        %s3731 = scalar_lea.vmem %s10, 128
        %v3732 = vld [vmem:[%s3731] sm:$0xff]
        %v3733 = vld [vmem:[%s3731 + $0x8] sm:$0xff]
        %v3734 = vld [vmem:[%s3731 + $0x10] sm:$0xff]
        %v3735 = vld [vmem:[%s3731 + $0x18] sm:$0xff]
        %v3736 = vld [vmem:[%s3731 + $0x20] sm:$0xff]
        %v3737 = vld [vmem:[%s3731 + $0x28] sm:$0xff]
        %v3738 = vld [vmem:[%s3731 + $0x30] sm:$0xff]
        %v3739 = vld [vmem:[%s3731 + $0x38] sm:$0xff]
        %v3740 = vld [vmem:[%s3731 + $0x40] sm:$0xff]
        %v3741 = vld [vmem:[%s3731 + $0x48] sm:$0xff]
        %v3742 = vld [vmem:[%s3731 + $0x50] sm:$0xff]
        %v3743 = vld [vmem:[%s3731 + $0x58] sm:$0xff]
        %v3744 = vld [vmem:[%s3731 + $0x60] sm:$0xff]
        %v3745 = vld [vmem:[%s3731 + $0x68] sm:$0xff]
        %v3746 = vld [vmem:[%s3731 + $0x70] sm:$0xff]
        %v3747 = vld [vmem:[%s3731 + $0x78] sm:$0xff]
        %s3748 = scalar_lea.vmem %s11, 2
        %v3749 = vld [vmem:[%s3748] sm:$0x3]
        %v3751 = vlaneseq
        %v3752 = vshrl.u32 %v3751, 7
        %v3753 = vsub.s32 0, %v3752
        %v3754 = vrot.slane %v3749, %v3753
        %v3755 = vlaneseq
        %v3756 = vshrl.u32 %v3755, 7
        %v3757 = vsub.s32 1, %v3756
        %v3758 = vrot.slane %v3749, %v3757
        %v3777 = vunpack.c.l.b16 %v3732
        %v3778 = vunpack.c.h.b16 %v3732
        %v3779 = vunpack.c.l.b16 %v3733
        %v3780 = vunpack.c.h.b16 %v3733
        %v3781 = vunpack.c.l.b16 %v3734
        %v3782 = vunpack.c.h.b16 %v3734
        %v3783 = vunpack.c.l.b16 %v3735
        %v3784 = vunpack.c.h.b16 %v3735
        %v3785 = vunpack.c.l.b16 %v3736
        %v3786 = vunpack.c.h.b16 %v3736
        %v3787 = vunpack.c.l.b16 %v3737
        %v3788 = vunpack.c.h.b16 %v3737
        %v3789 = vunpack.c.l.b16 %v3738
        %v3790 = vunpack.c.h.b16 %v3738
        %v3791 = vunpack.c.l.b16 %v3739
        %v3792 = vunpack.c.h.b16 %v3739
        %v3793 = vunpack.c.l.b16 %v3740
        %v3794 = vunpack.c.h.b16 %v3740
        %v3795 = vunpack.c.l.b16 %v3741
        %v3796 = vunpack.c.h.b16 %v3741
        %v3797 = vunpack.c.l.b16 %v3742
        %v3798 = vunpack.c.h.b16 %v3742
        %v3799 = vunpack.c.l.b16 %v3743
        %v3800 = vunpack.c.h.b16 %v3743
        %v3801 = vunpack.c.l.b16 %v3744
        %v3802 = vunpack.c.h.b16 %v3744
        %v3803 = vunpack.c.l.b16 %v3745
        %v3804 = vunpack.c.h.b16 %v3745
        %v3805 = vunpack.c.l.b16 %v3746
        %v3806 = vunpack.c.h.b16 %v3746
        %v3807 = vunpack.c.l.b16 %v3747
        %v3808 = vunpack.c.h.b16 %v3747
        %v3809 = vpack.c.b16 %v3779, %v3777
        %v3810 = vpack.c.b16 %v3780, %v3778
        %v3811 = vpack.c.b16 %v3783, %v3781
        %v3812 = vpack.c.b16 %v3784, %v3782
        %v3813 = vpack.c.b16 %v3787, %v3785
        %v3814 = vpack.c.b16 %v3788, %v3786
        %v3815 = vpack.c.b16 %v3791, %v3789
        %v3816 = vpack.c.b16 %v3792, %v3790
        %v3817 = vpack.c.b16 %v3795, %v3793
        %v3818 = vpack.c.b16 %v3796, %v3794
        %v3819 = vpack.c.b16 %v3799, %v3797
        %v3820 = vpack.c.b16 %v3800, %v3798
        %v3821 = vpack.c.b16 %v3803, %v3801
        %v3822 = vpack.c.b16 %v3804, %v3802
        %v3823 = vpack.c.b16 %v3807, %v3805
        %v3824 = vpack.c.b16 %v3808, %v3806
        %3841 = vmatprep.subr.bf16.mxu0 %v3824
        %3842 = vmatpush1.bf16.msra.mxu0 %v3823
        %3843 = vmatprep.subr.bf16.mxu0 %v3822
        %3844 = vmatpush1.bf16.msra.mxu0 %v3821
        %3845 = vmatprep.subr.bf16.mxu0 %v3820
        %3846 = vmatpush1.bf16.msra.mxu0 %v3819
        %3847 = vmatprep.subr.bf16.mxu0 %v3818
        %3848 = vmatpush1.bf16.msra.mxu0 %v3817
        %3849 = vmatprep.subr.bf16.mxu0 %v3816
        %3850 = vmatpush1.bf16.msra.mxu0 %v3815
        %3851 = vmatprep.subr.bf16.mxu0 %v3814
        %3852 = vmatpush1.bf16.msra.mxu0 %v3813
        %3853 = vmatprep.subr.bf16.mxu0 %v3812
        %3854 = vmatpush1.bf16.msra.mxu0 %v3811
        %3855 = vmatprep.subr.bf16.mxu0 %v3810
        %3856 = vmatpush1.bf16.msra.mxu0 %v3809
        %3857 = vmatprep.subr.bf16.mxu0 0
        %3858 = vmatpush2.bf16.msra.mxu0 0
        %3859 = vmatprep.subr.bf16.mxu0 0
        %3860 = vmatpush2.bf16.msra.mxu0 0
        %3861 = vmatprep.subr.bf16.mxu0 0
        %3862 = vmatpush2.bf16.msra.mxu0 0
        %3863 = vmatprep.subr.bf16.mxu0 0
        %3864 = vmatpush2.bf16.msra.mxu0 0
        %3865 = vmatprep.subr.bf16.mxu0 0
        %3866 = vmatpush2.bf16.msra.mxu0 0
        %3867 = vmatprep.subr.bf16.mxu0 0
        %3868 = vmatpush2.bf16.msra.mxu0 0
        %3869 = vmatprep.subr.bf16.mxu0 0
        %3870 = vmatpush2.bf16.msra.mxu0 0
        %3871 = vmatprep.subr.bf16.mxu0 0
        %3872 = vmatpush2.bf16.msra.mxu0 0
        %3873 = vmatprep.mubr.bf16.mxu0 0
        %3874 = vmatmul.mubr.bf16.gmra.mxu0 %v3729
        %v3875 = vpop.f32.mrf.mxu0
        %v3876 = vadd.f32 %v3754, %v3875
        %v3877 = vpop.f32.mrf.mxu0
        %v3878 = vadd.f32 %v3758, %v3877
        %v3879 = vpop.f32.mrf.mxu0
        %v3880 = vadd.f32 %v3754, %v3879
        %v3881 = vpop.f32.mrf.mxu0
        %v3882 = vadd.f32 %v3758, %v3881
        %3883 = vmatprep.mubr.bf16.mxu0 0
        %3884 = vmatmul.mubr.bf16.gmra.mxu0 %v3730
        %v3885 = vpop.f32.mrf.mxu0
        %v3886 = vadd.f32 %v3754, %v3885
        %v3887 = vpop.f32.mrf.mxu0
        %v3888 = vadd.f32 %v3758, %v3887
        %v3889 = vpop.f32.mrf.mxu0
        %v3890 = vadd.f32 %v3754, %v3889
        %v3891 = vpop.f32.mrf.mxu0
        %v3892 = vadd.f32 %v3758, %v3891
        %3893 = vdwg.mxu0
        %v3894 = vmul.f32 %v3876, 0.5
        %v3895 = vmul.f32 %v3878, 0.5
        %v3896 = vmul.f32 %v3880, 0.5
        %v3897 = vmul.f32 %v3882, 0.5
        %v3898 = vmul.f32 %v3886, 0.5
        %v3899 = vmul.f32 %v3888, 0.5
        %v3900 = vmul.f32 %v3890, 0.5
        %v3901 = vmul.f32 %v3892, 0.5
        %v3902 = vmul.f32 %v3876, 0.70710677
        %v3903 = vmul.f32 %v3878, 0.70710677
        %v3904 = vmul.f32 %v3880, 0.70710677
        %v3905 = vmul.f32 %v3882, 0.70710677
        %v3906 = vmul.f32 %v3886, 0.70710677
        %v3907 = vmul.f32 %v3888, 0.70710677
        %v3908 = vmul.f32 %v3890, 0.70710677
        %v3909 = vmul.f32 %v3892, 0.70710677
        %v3910 = verf.f32.pop %v3902
        %v3911 = verf.f32.pop %v3903
        %v3912 = verf.f32.pop %v3904
        %v3913 = verf.f32.pop %v3905
        %v3914 = verf.f32.pop %v3906
        %v3915 = verf.f32.pop %v3907
        %v3916 = verf.f32.pop %v3908
        %v3917 = verf.f32.pop %v3909
        %v3918 = vadd.f32 %v3910, 1.0
        %v3919 = vadd.f32 %v3911, 1.0
        %v3920 = vadd.f32 %v3912, 1.0
        %v3921 = vadd.f32 %v3913, 1.0
        %v3922 = vadd.f32 %v3914, 1.0
        %v3923 = vadd.f32 %v3915, 1.0
        %v3924 = vadd.f32 %v3916, 1.0
        %v3925 = vadd.f32 %v3917, 1.0
        %v3926 = vmul.f32 %v3894, %v3918
        %v3927 = vmul.f32 %v3895, %v3919
        %v3928 = vmul.f32 %v3896, %v3920
        %v3929 = vmul.f32 %v3897, %v3921
        %v3930 = vmul.f32 %v3898, %v3922
        %v3931 = vmul.f32 %v3899, %v3923
        %v3932 = vmul.f32 %v3900, %v3924
        %v3933 = vmul.f32 %v3901, %v3925
        %v3934 = vpack.c.bf16 %v3928, %v3926
        %v3935 = vpack.c.bf16 %v3929, %v3927
        %v3936 = vpack.c.bf16 %v3932, %v3930
        %v3937 = vpack.c.bf16 %v3933, %v3931
        %s3938 = scalar_lea.vmem %s12, 128
        %v3939 = vld [vmem:[%s3938] sm:$0xf]
        %v3940 = vld [vmem:[%s3938 + $0x4] sm:$0xf]
        %v3941 = vld [vmem:[%s3938 + $0x8] sm:$0xf]
        %v3942 = vld [vmem:[%s3938 + $0xc] sm:$0xf]
        %v3943 = vld [vmem:[%s3938 + $0x10] sm:$0xf]
        %v3944 = vld [vmem:[%s3938 + $0x14] sm:$0xf]
        %v3945 = vld [vmem:[%s3938 + $0x18] sm:$0xf]
        %v3946 = vld [vmem:[%s3938 + $0x1c] sm:$0xf]
        %v3947 = vld [vmem:[%s3938 + $0x20] sm:$0xf]
        %v3948 = vld [vmem:[%s3938 + $0x24] sm:$0xf]
        %v3949 = vld [vmem:[%s3938 + $0x28] sm:$0xf]
        %v3950 = vld [vmem:[%s3938 + $0x2c] sm:$0xf]
        %v3951 = vld [vmem:[%s3938 + $0x30] sm:$0xf]
        %v3952 = vld [vmem:[%s3938 + $0x34] sm:$0xf]
        %v3953 = vld [vmem:[%s3938 + $0x38] sm:$0xf]
        %v3954 = vld [vmem:[%s3938 + $0x3c] sm:$0xf]
        %v3955 = vld [vmem:[%s3938 + $0x40] sm:$0xf]
        %v3956 = vld [vmem:[%s3938 + $0x44] sm:$0xf]
        %v3957 = vld [vmem:[%s3938 + $0x48] sm:$0xf]
        %v3958 = vld [vmem:[%s3938 + $0x4c] sm:$0xf]
        %v3959 = vld [vmem:[%s3938 + $0x50] sm:$0xf]
        %v3960 = vld [vmem:[%s3938 + $0x54] sm:$0xf]
        %v3961 = vld [vmem:[%s3938 + $0x58] sm:$0xf]
        %v3962 = vld [vmem:[%s3938 + $0x5c] sm:$0xf]
        %v3963 = vld [vmem:[%s3938 + $0x60] sm:$0xf]
        %v3964 = vld [vmem:[%s3938 + $0x64] sm:$0xf]
        %v3965 = vld [vmem:[%s3938 + $0x68] sm:$0xf]
        %v3966 = vld [vmem:[%s3938 + $0x6c] sm:$0xf]
        %v3967 = vld [vmem:[%s3938 + $0x70] sm:$0xf]
        %v3968 = vld [vmem:[%s3938 + $0x74] sm:$0xf]
        %v3969 = vld [vmem:[%s3938 + $0x78] sm:$0xf]
        %v3970 = vld [vmem:[%s3938 + $0x7c] sm:$0xf]
        %s3971 = scalar_lea.vmem %s13, 1
        %v3972 = vld [vmem:[%s3971] sm:$0x1]
        %v3974 = vlaneseq
        %v3975 = vshrl.u32 %v3974, 7
        %v3976 = vsub.s32 0, %v3975
        %v3977 = vrot.slane %v3972, %v3976
        %v4011 = vunpack.c.l.b16 %v3939
        %v4012 = vunpack.c.l.b16 %v3940
        %v4013 = vunpack.c.l.b16 %v3941
        %v4014 = vunpack.c.l.b16 %v3942
        %v4015 = vunpack.c.l.b16 %v3943
        %v4016 = vunpack.c.l.b16 %v3944
        %v4017 = vunpack.c.l.b16 %v3945
        %v4018 = vunpack.c.l.b16 %v3946
        %v4019 = vunpack.c.l.b16 %v3947
        %v4020 = vunpack.c.l.b16 %v3948
        %v4021 = vunpack.c.l.b16 %v3949
        %v4022 = vunpack.c.l.b16 %v3950
        %v4023 = vunpack.c.l.b16 %v3951
        %v4024 = vunpack.c.l.b16 %v3952
        %v4025 = vunpack.c.l.b16 %v3953
        %v4026 = vunpack.c.l.b16 %v3954
        %v4027 = vunpack.c.l.b16 %v3955
        %v4028 = vunpack.c.l.b16 %v3956
        %v4029 = vunpack.c.l.b16 %v3957
        %v4030 = vunpack.c.l.b16 %v3958
        %v4031 = vunpack.c.l.b16 %v3959
        %v4032 = vunpack.c.l.b16 %v3960
        %v4033 = vunpack.c.l.b16 %v3961
        %v4034 = vunpack.c.l.b16 %v3962
        %v4035 = vunpack.c.l.b16 %v3963
        %v4036 = vunpack.c.l.b16 %v3964
        %v4037 = vunpack.c.l.b16 %v3965
        %v4038 = vunpack.c.l.b16 %v3966
        %v4039 = vunpack.c.l.b16 %v3967
        %v4040 = vunpack.c.l.b16 %v3968
        %v4041 = vunpack.c.l.b16 %v3969
        %v4042 = vunpack.c.l.b16 %v3970
        %v4043 = vpack.c.b16 %v4012, %v4011
        %v4044 = vpack.c.b16 %v4014, %v4013
        %v4045 = vpack.c.b16 %v4016, %v4015
        %v4046 = vpack.c.b16 %v4018, %v4017
        %v4047 = vpack.c.b16 %v4020, %v4019
        %v4048 = vpack.c.b16 %v4022, %v4021
        %v4049 = vpack.c.b16 %v4024, %v4023
        %v4050 = vpack.c.b16 %v4026, %v4025
        %v4051 = vpack.c.b16 %v4028, %v4027
        %v4052 = vpack.c.b16 %v4030, %v4029
        %v4053 = vpack.c.b16 %v4032, %v4031
        %v4054 = vpack.c.b16 %v4034, %v4033
        %v4055 = vpack.c.b16 %v4036, %v4035
        %v4056 = vpack.c.b16 %v4038, %v4037
        %v4057 = vpack.c.b16 %v4040, %v4039
        %v4058 = vpack.c.b16 %v4042, %v4041
        %4075 = vmatprep.subr.bf16.mxu0 0
        %4076 = vmatpush1.bf16.msra.mxu0 %v4050
        %4077 = vmatprep.subr.bf16.mxu0 0
        %4078 = vmatpush1.bf16.msra.mxu0 %v4049
        %4079 = vmatprep.subr.bf16.mxu0 0
        %4080 = vmatpush1.bf16.msra.mxu0 %v4048
        %4081 = vmatprep.subr.bf16.mxu0 0
        %4082 = vmatpush1.bf16.msra.mxu0 %v4047
        %4083 = vmatprep.subr.bf16.mxu0 0
        %4084 = vmatpush1.bf16.msra.mxu0 %v4046
        %4085 = vmatprep.subr.bf16.mxu0 0
        %4086 = vmatpush1.bf16.msra.mxu0 %v4045
        %4087 = vmatprep.subr.bf16.mxu0 0
        %4088 = vmatpush1.bf16.msra.mxu0 %v4044
        %4089 = vmatprep.subr.bf16.mxu0 0
        %4090 = vmatpush1.bf16.msra.mxu0 %v4043
        %4091 = vmatprep.subr.bf16.mxu0 0
        %4092 = vmatpush2.bf16.msra.mxu0 %v4058
        %4093 = vmatprep.subr.bf16.mxu0 0
        %4094 = vmatpush2.bf16.msra.mxu0 %v4057
        %4095 = vmatprep.subr.bf16.mxu0 0
        %4096 = vmatpush2.bf16.msra.mxu0 %v4056
        %4097 = vmatprep.subr.bf16.mxu0 0
        %4098 = vmatpush2.bf16.msra.mxu0 %v4055
        %4099 = vmatprep.subr.bf16.mxu0 0
        %4100 = vmatpush2.bf16.msra.mxu0 %v4054
        %4101 = vmatprep.subr.bf16.mxu0 0
        %4102 = vmatpush2.bf16.msra.mxu0 %v4053
        %4103 = vmatprep.subr.bf16.mxu0 0
        %4104 = vmatpush2.bf16.msra.mxu0 %v4052
        %4105 = vmatprep.subr.bf16.mxu0 0
        %4106 = vmatpush2.bf16.msra.mxu0 %v4051
        %4107 = vmatprep.mubr.bf16.mxu0 %v3935
        %4108 = vmatmul.mubr.bf16.gmra.mxu0 %v3934
        %v4109 = vpop.f32.mrf.mxu0
        %v4110 = vadd.f32 %v3977, %v4109
        %v4111 = vpop.f32.mrf.mxu0
        %v4112 = vpop.f32.mrf.mxu0
        %v4113 = vpop.f32.mrf.mxu0
        %4114 = vmatprep.mubr.bf16.mxu0 %v3937
        %4115 = vmatmul.mubr.bf16.gmra.mxu0 %v3936
        %v4116 = vpop.f32.mrf.mxu0
        %v4117 = vpop.f32.mrf.mxu0
        %v4118 = vpop.f32.mrf.mxu0
        %v4119 = vpop.f32.mrf.mxu0
        %4120 = vdwg.mxu0
        %v4121 = vadd.f32 %v4110, %v3657
        %v4122 = vld [vmem:[%s14] sm:$0x1]
        %v4123 = vld [vmem:[%s15] sm:$0x1]
        %vm4124 = vcmask 1040384
        %v4125 = vsel %vm4124, %v4121, 0.0
        %4126 = vadd.xlane.f32.xlu0 %v4125
        %v4127 = vpop.xlane.xlu0 %4126
        %v4128 = vmul.f32 %v4127, %v766
        %v4129 = vsub.f32 %v4121, %v4128
        %v4130 = vmul.f32 %v4129, %v4129
        %v4131 = vsel %vm4124, %v4130, 0.0
        %4132 = vadd.xlane.f32.xlu0 %v4131
        %v4133 = vpop.xlane.xlu0 %4132
        %v4134 = vmul.f32 %v4133, %v766
        %v4135 = vadd.f32 %v4134, 1e-05
        %v4136 = vrsqrt.pop %v4135
        %v4137 = vmul.f32 %v4129, %v4136
        %v4138 = vmul.f32 %v4137, %v4122
        %v4139 = vadd.f32 %v4138, %v4123
        %v4140 = vpack.c.bf16 %v4139, %v4139
        %v4141 = vld [vmem:[%s16] sm:$0xf]
        %v4142 = vld [vmem:[%s16 + $0x4] sm:$0xf]
        %v4143 = vld [vmem:[%s16 + $0x8] sm:$0xf]
        %v4144 = vld [vmem:[%s16 + $0xc] sm:$0xf]
        %v4145 = vld [vmem:[%s16 + $0x10] sm:$0xf]
        %v4146 = vld [vmem:[%s16 + $0x14] sm:$0xf]
        %v4147 = vld [vmem:[%s16 + $0x18] sm:$0xf]
        %v4148 = vld [vmem:[%s16 + $0x1c] sm:$0xf]
        %v4149 = vld [vmem:[%s16 + $0x20] sm:$0xf]
        %v4150 = vld [vmem:[%s16 + $0x24] sm:$0xf]
        %v4151 = vld [vmem:[%s16 + $0x28] sm:$0xf]
        %v4152 = vld [vmem:[%s16 + $0x2c] sm:$0xf]
        %v4153 = vld [vmem:[%s16 + $0x30] sm:$0xf]
        %v4154 = vld [vmem:[%s16 + $0x34] sm:$0xf]
        %v4155 = vld [vmem:[%s16 + $0x38] sm:$0xf]
        %v4156 = vld [vmem:[%s16 + $0x3c] sm:$0xf]
        %v4157 = vld [vmem:[%s17] sm:$0x1]
        %v4174 = vunpack.c.l.b16 %v4141
        %v4175 = vunpack.c.l.b16 %v4142
        %v4176 = vunpack.c.l.b16 %v4143
        %v4177 = vunpack.c.l.b16 %v4144
        %v4178 = vunpack.c.l.b16 %v4145
        %v4179 = vunpack.c.l.b16 %v4146
        %v4180 = vunpack.c.l.b16 %v4147
        %v4181 = vunpack.c.l.b16 %v4148
        %v4182 = vunpack.c.l.b16 %v4149
        %v4183 = vunpack.c.l.b16 %v4150
        %v4184 = vunpack.c.l.b16 %v4151
        %v4185 = vunpack.c.l.b16 %v4152
        %v4186 = vunpack.c.l.b16 %v4153
        %v4187 = vunpack.c.l.b16 %v4154
        %v4188 = vunpack.c.l.b16 %v4155
        %v4189 = vunpack.c.l.b16 %v4156
        %v4190 = vpack.c.b16 %v4175, %v4174
        %v4191 = vpack.c.b16 %v4177, %v4176
        %v4192 = vpack.c.b16 %v4179, %v4178
        %v4193 = vpack.c.b16 %v4181, %v4180
        %v4194 = vpack.c.b16 %v4183, %v4182
        %v4195 = vpack.c.b16 %v4185, %v4184
        %v4196 = vpack.c.b16 %v4187, %v4186
        %v4197 = vpack.c.b16 %v4189, %v4188
        %4206 = vmatprep.subr.bf16.mxu0 0
        %4207 = vmatpush1.bf16.msra.mxu0 %v4197
        %4208 = vmatprep.subr.bf16.mxu0 0
        %4209 = vmatpush1.bf16.msra.mxu0 %v4196
        %4210 = vmatprep.subr.bf16.mxu0 0
        %4211 = vmatpush1.bf16.msra.mxu0 %v4195
        %4212 = vmatprep.subr.bf16.mxu0 0
        %4213 = vmatpush1.bf16.msra.mxu0 %v4194
        %4214 = vmatprep.subr.bf16.mxu0 0
        %4215 = vmatpush1.bf16.msra.mxu0 %v4193
        %4216 = vmatprep.subr.bf16.mxu0 0
        %4217 = vmatpush1.bf16.msra.mxu0 %v4192
        %4218 = vmatprep.subr.bf16.mxu0 0
        %4219 = vmatpush1.bf16.msra.mxu0 %v4191
        %4220 = vmatprep.subr.bf16.mxu0 0
        %4221 = vmatpush1.bf16.msra.mxu0 %v4190
        %4222 = vmatprep.subr.bf16.mxu0 0
        %4223 = vmatpush2.bf16.msra.mxu0 0
        %4224 = vmatprep.subr.bf16.mxu0 0
        %4225 = vmatpush2.bf16.msra.mxu0 0
        %4226 = vmatprep.subr.bf16.mxu0 0
        %4227 = vmatpush2.bf16.msra.mxu0 0
        %4228 = vmatprep.subr.bf16.mxu0 0
        %4229 = vmatpush2.bf16.msra.mxu0 0
        %4230 = vmatprep.subr.bf16.mxu0 0
        %4231 = vmatpush2.bf16.msra.mxu0 0
        %4232 = vmatprep.subr.bf16.mxu0 0
        %4233 = vmatpush2.bf16.msra.mxu0 0
        %4234 = vmatprep.subr.bf16.mxu0 0
        %4235 = vmatpush2.bf16.msra.mxu0 0
        %4236 = vmatprep.subr.bf16.mxu0 0
        %4237 = vmatpush2.bf16.msra.mxu0 0
        %4238 = vmatprep.mubr.bf16.mxu0 0
        %4239 = vmatmul.mubr.bf16.gmra.mxu0 %v4140
        %v4240 = vpop.f32.mrf.mxu0
        %v4241 = vadd.f32 %v4157, %v4240
        %v4242 = vpop.f32.mrf.mxu0
        %v4243 = vpop.f32.mrf.mxu0
        %v4244 = vpop.f32.mrf.mxu0
        %4245 = vdwg.mxu0
        %4246 = vst [vmem:[%s567] sm:$0x1] %v4241
        %s4247 = sand.u32 %s423, 1
        %s4248 = scalar_lea.sflag [#allocation3], %s4247
        %s4249 = sand.u32 %s423, 1
        %s4250 = scalar_lea.vmem [#allocation2], %s4249
        // Predicated region
        $region93: #{vit_forward.1} parent=91 // pred_check
          %p4251 = pneg %p433
        $region94: #{vit_forward.1} parent=91 // pred_check_branch
          %4253 = sbr.rel (%p4251) target = $region96
        $region95: #{vit_forward.1} parent=91 // pred_region
          %s4255 = ssub.s32 16, 16
          %4256 = vsyncadd %s4248, %s4255
          %s4257 = smul.addr %s32, 16
          %s4258 = scalar_lea.hbm %s18, %s4257
          %s4260 = sshll.u32 %s4250, 4
          %s4261 = int_to_ptr.vmem [resolvable:$true] %s4260
          %4263 = dma.vmem_to_hbm [thread:$0]  %s4261, 16, %s4258, %s4248
        $region96: #{vit_forward.1} parent=91 // pred_fallthru
          _
      $region92: #{vit_forward.1} parent=5 // pred_fallthru
        _
      %p4264 = scmp.le.s32.totalorder 2, %s27
      // Predicated region
      $region97: #{vit_forward.1} parent=5 // pred_check
        %p4265 = pneg %p4264
      $region98: #{vit_forward.1} parent=5 // pred_check_branch
        %4267 = sbr.rel (%p4265) target = $region100
      $region99: #{vit_forward.1} parent=5 // pred_region
        %s4268 = ssub.s32 %s27, 2
        // Predicated region
        $region101: #{vit_forward.1} parent=99 // pred_check
          %p4269 = pneg %p439
        $region102: #{vit_forward.1} parent=99 // pred_check_branch
          %4271 = sbr.rel (%p4269) target = $region104
        $region103: #{vit_forward.1} parent=99 // pred_region
          %s4272 = sand.u32 %s424, 1
          %s4273 = scalar_lea.sflag [#allocation3], %s4272
          %s4274 = sand.u32 %s424, 1
          %s4275 = scalar_lea.vmem [#allocation2], %s4274
          %4276 = dma.done %s4273, 16
        $region104: #{vit_forward.1} parent=99 // pred_fallthru
          _
      $region100: #{vit_forward.1} parent=5 // pred_fallthru
        _
    $region6: #{vit_forward.1} parent=1 // loop_footer
      %s31 = sadd.s32 1, %s27
    $region7: #{vit_forward.1} parent=1 // loop_footer_branch
      %26 = sbr.rel target = $region3
    $region8: #{vit_forward.1} parent=1 // loop_exit
      _
    %4277 = vsyncpa [#allocation3], 1
    %s4278 = scalar_lea.sflag [#allocation3], 1
    %4279 = vsyncpa %s4278, 1

</llo_original>
